<compile_context>
chip_gen: v5e
topology: v5e:2x2
jax: 0.10.0
libtpu: 0.0.40
codegen_flags: <defaults>
</compile_context>

<pallas_src>
import jax
import jax.numpy as jnp
from jax.experimental import pallas as pl
from jax.experimental.pallas import tpu as pltpu  # noqa: F401  (TPU backend)

NUM_LAYERS = 2
EMBED_DIM = 32
NUM_HEADS = 4
HEAD_DIM = EMBED_DIM // NUM_HEADS
FFN_DIM = 64
B = 2
NQ = 8          # number of object queries
NK = 16         # encoder memory length (H*W)
SCALE = 1.0 / (HEAD_DIM ** 0.5)
LN_EPS = 1e-5
NEG_INF = -1e30

# --- static lane offsets inside the per-layer weight slab (rows = EMBED_DIM) --
W_SAQK = 0                        # (D, 2D) packed [Wq*scale | Wk]
W_SAV = W_SAQK + 2 * EMBED_DIM    # 64
W_SAO = W_SAV + EMBED_DIM         # 96
W_CAQ = W_SAO + EMBED_DIM         # 128  (pre-scaled)
W_CAK = W_CAQ + EMBED_DIM         # 160
W_CAV = W_CAK + EMBED_DIM         # 192
W_CAO = W_CAV + EMBED_DIM         # 224
W_FW1 = W_CAO + EMBED_DIM         # 256
W_FW2T = W_FW1 + FFN_DIM          # 320  (fc2 stored transposed: (D, F))
W_SLAB = W_FW2T + FFN_DIM         # 384 = 3 * 128 lanes

# --- rows inside the per-layer bias/gain slab (width 64 lanes, zero padded) ---
(B_SAQK, B_SAV, B_SAO, B_N1G, B_N1B, B_CAQ, B_CAK, B_CAV, B_CAO,
 B_N2G, B_N2B, B_FB1, B_FB2, B_N3G, B_N3B) = range(15)
B_ROWS = 15
B_WIDTH = 2 * EMBED_DIM           # 64


# ---------------------------------------------------------------------------
# Pallas kernel: whole decoder (both layers) in one invocation
# ---------------------------------------------------------------------------
def decoder_kernel(q0_ref, qp_ref, k_ref, v_ref, kp_ref, sa_mask_ref,
                   ca_mask_ref, w_ref, b_ref, png_ref, pnb_ref, out_ref):
    x = q0_ref[...]                     # (B*NQ, D)
    qp = qp_ref[...]                    # (B*NQ, D)
    k_in = k_ref[...] + kp_ref[...]     # (B*NK, D)  key + key_pos
    v_in = v_ref[...]                   # (B*NK, D)  value (no pos)
    sa_mask = sa_mask_ref[...]          # (B*NQ, B*NQ) additive block mask
    ca_mask = ca_mask_ref[...]          # (B*NQ, B*NK) block + key-padding mask

    def ln(y, g, b):
        mu = jnp.mean(y, axis=-1, keepdims=True)
        var = jnp.mean((y - mu) ** 2, axis=-1, keepdims=True)
        return (y - mu) * jax.lax.rsqrt(var + LN_EPS) * g + b

    def split_heads(m):
        # (rows, D) -> (H, rows, HEAD_DIM): heads become the leading batch dim
        # of ONE batched contraction instead of 4 separate per-head chains.
        return jnp.stack(
            [m[:, h * HEAD_DIM:(h + 1) * HEAD_DIM] for h in range(NUM_HEADS)],
            axis=0)

    def mha(Q, K, V, wo_r, bo, add_mask):
        # Q: (NQa, D), K/V: (NKa, D), wo_r: (H, HD, D), add_mask: (NQa, NKa).
        # NOTE: a row whose keys are ALL masked gives a uniform (not NaN)
        # attention here; the harness guarantees >=1 unmasked key per batch.
        qh, kh, vh = split_heads(Q), split_heads(K), split_heads(V)
        s = jnp.einsum('hqd,hkd->hqk', qh, kh,
                       preferred_element_type=jnp.float32)      # (H, NQa, NKa)
        s = s + add_mask
        s = s - jnp.max(s, axis=-1, keepdims=True)
        e = jnp.exp(s)
        denom = jnp.sum(e, axis=-1, keepdims=True)
        inv = pl.reciprocal(denom, approx=True)                  # EUP slot
        inv = inv * (2.0 - denom * inv)                          # Newton -> f32
        p = e * inv
        o = jnp.einsum('hqk,hkd->hqd', p, vh,
                       preferred_element_type=jnp.float32)       # (H, NQa, HD)
        # output projection: one batched matmul over heads + leading-dim sum
        op = jnp.einsum('hqd,hdo->hqo', o, wo_r,
                        preferred_element_type=jnp.float32)      # (H, NQa, D)
        return jnp.sum(op, axis=0) + bo

    for l in range(NUM_LAYERS):          # fully unrolled (NUM_LAYERS is tiny)
        def w(lo, hi, _l=l):
            return w_ref[_l, :, lo:hi]

        def bias(row, width=EMBED_DIM, _l=l):
            return b_ref[_l, row:row + 1, :width]

        # ---- self-attention: q/k get query_pos; value & residual do not ----
        qk = jnp.dot(x + qp, w(W_SAQK, W_SAV),
                     preferred_element_type=jnp.float32) + bias(B_SAQK, 2 * EMBED_DIM)
        vproj = jnp.dot(x, w(W_SAV, W_SAO),
                        preferred_element_type=jnp.float32) + bias(B_SAV)
        wo_r = w(W_SAO, W_CAQ).reshape(NUM_HEADS, HEAD_DIM, EMBED_DIM)
        sa = mha(qk[:, :EMBED_DIM], qk[:, EMBED_DIM:], vproj, wo_r,
                 bias(B_SAO), sa_mask)
        x = ln(x + sa, bias(B_N1G), bias(B_N1B))

        # ---- cross-attention against encoder memory (key padding mask) ----
        qc = jnp.dot(x + qp, w(W_CAQ, W_CAK),
                     preferred_element_type=jnp.float32) + bias(B_CAQ)
        kc = jnp.dot(k_in, w(W_CAK, W_CAV),
                     preferred_element_type=jnp.float32) + bias(B_CAK)
        vc = jnp.dot(v_in, w(W_CAV, W_CAO),
                     preferred_element_type=jnp.float32) + bias(B_CAV)
        wo2_r = w(W_CAO, W_FW1).reshape(NUM_HEADS, HEAD_DIM, EMBED_DIM)
        ca = mha(qc, kc, vc, wo2_r, bias(B_CAO), ca_mask)
        x = ln(x + ca, bias(B_N2G), bias(B_N2B))

        # ---- FFN (fc1 -> ReLU -> fc2) with residual, then norm3 ----
        # TODO(synk): assumes DETR-style FFN that adds its identity before
        # norm3; if nora's FFN is a plain Mlp with no residual, drop `x +`.
        h1 = jnp.maximum(
            jnp.dot(x, w(W_FW1, W_FW2T),
                    preferred_element_type=jnp.float32) + bias(B_FB1, FFN_DIM),
            0.0)
        ffn = jax.lax.dot_general(
            h1, w(W_FW2T, W_SLAB), (((1,), (1,)), ((), ())),
            preferred_element_type=jnp.float32) + bias(B_FB2)
        x = ln(x + ffn, bias(B_N3G), bias(B_N3B))

        # return_intermediate=True: post_norm applied to this layer's output
        out_ref[l] = ln(x, png_ref[...], pnb_ref[...])


# ---------------------------------------------------------------------------
# one-time parameter packing (weight transform, outside the per-call hot path)
# ---------------------------------------------------------------------------
def pack_params(layer_params, post_params):
    w_layers, b_layers = [], []
    for lp in layer_params:
        (sa_wqk, sa_bqk, sa_wv, sa_bv, sa_wo, sa_bo, n1g, n1b,
         ca_wq, ca_bq, ca_wk, ca_bk, ca_wv, ca_bv, ca_wo, ca_bo, n2g, n2b,
         fw1, fb1, fw2, fb2, n3g, n3b) = lp
        D = EMBED_DIM
        # fold the softmax scale into the Q projections (weights AND biases)
        sa_wqk = jnp.concatenate([sa_wqk[:, :D] * SCALE, sa_wqk[:, D:]], axis=1)
        sa_bqk = jnp.concatenate([sa_bqk[:, :D] * SCALE, sa_bqk[:, D:]], axis=1)
        ca_wq = ca_wq * SCALE
        ca_bq = ca_bq * SCALE

        w_slab = jnp.concatenate(
            [sa_wqk, sa_wv, sa_wo, ca_wq, ca_wk, ca_wv, ca_wo, fw1, fw2.T],
            axis=1)
        assert w_slab.shape == (EMBED_DIM, W_SLAB)

        def pad_row(v):
            return jnp.pad(v, ((0, 0), (0, B_WIDTH - v.shape[1])))

        b_slab = jnp.concatenate(
            [pad_row(v) for v in (sa_bqk, sa_bv, sa_bo, n1g, n1b,
                                  ca_bq, ca_bk, ca_bv, ca_bo, n2g, n2b,
                                  fb1, fb2, n3g, n3b)], axis=0)
        assert b_slab.shape == (B_ROWS, B_WIDTH)
        w_layers.append(w_slab)
        b_layers.append(b_slab)
    return (jnp.stack(w_layers).astype(jnp.float32),
            jnp.stack(b_layers).astype(jnp.float32),
            post_params[0].astype(jnp.float32),
            post_params[1].astype(jnp.float32))


# ---------------------------------------------------------------------------
# wrapper: single grid-less pallas_call (whole-array VMEM blocks)
# ---------------------------------------------------------------------------
def detr_decoder_forward(query, key_mem, value, query_pos, key_pos,
                         key_padding_mask, w_slab, b_slab, pn_g, pn_b):
    """return_intermediate=True: returns (num_layers, B, NQ, D)."""
    q_flat = query.reshape(B * NQ, EMBED_DIM)
    qp_flat = query_pos.reshape(B * NQ, EMBED_DIM)
    k_flat = key_mem.reshape(B * NK, EMBED_DIM)
    v_flat = value.reshape(B * NK, EMBED_DIM)
    kp_flat = key_pos.reshape(B * NK, EMBED_DIM)

    # batch is folded into the row dim; additive block masks keep attention
    # inside each batch element and carry the key padding mask (cross-attn).
    qb = jnp.repeat(jnp.arange(B, dtype=jnp.int32), NQ)       # (B*NQ,)
    kb = jnp.repeat(jnp.arange(B, dtype=jnp.int32), NK)       # (B*NK,)
    sa_mask = jnp.where(qb[:, None] == qb[None, :], 0.0, NEG_INF
                        ).astype(jnp.float32)                  # (B*NQ, B*NQ)
    pad = key_padding_mask.reshape(B * NK)
    ca_keep = (qb[:, None] == kb[None, :]) & jnp.logical_not(pad)[None, :]
    ca_mask = jnp.where(ca_keep, 0.0, NEG_INF).astype(jnp.float32)

    out = pl.pallas_call(
        decoder_kernel,
        out_shape=jax.ShapeDtypeStruct((NUM_LAYERS, B * NQ, EMBED_DIM),
                                       jnp.float32),
    )(q_flat, qp_flat, k_flat, v_flat, kp_flat, sa_mask, ca_mask,
      w_slab, b_slab, pn_g, pn_b)
    return out.reshape(NUM_LAYERS, B, NQ, EMBED_DIM)


# ---------------------------------------------------------------------------
# deterministic parameter init (self-attn Q/K packed into one (D, 2D) matrix)
# ---------------------------------------------------------------------------
def init_layer_params(key):
    keys = iter(jax.random.split(key, 32))
    D, F = EMBED_DIM, FFN_DIM

    def w(shape):
        return (0.02 * jax.random.normal(next(keys), shape)).astype(jnp.float32)

    def bias(shape):
        return (0.1 * jax.random.normal(next(keys), shape)).astype(jnp.float32)

    def gain(shape):
        return (1.0 + 0.1 * jax.random.normal(next(keys), shape)).astype(jnp.float32)

    return (
        w((D, 2 * D)), bias((1, 2 * D)),      # self-attn packed [Wq | Wk], [bq | bk]
        w((D, D)), bias((1, D)),              # self-attn Wv, bv
        w((D, D)), bias((1, D)),              # self-attn Wo, bo
        gain((1, D)), bias((1, D)),           # norm1
        w((D, D)), bias((1, D)),              # cross-attn Wq, bq
        w((D, D)), bias((1, D)),              # cross-attn Wk, bk
        w((D, D)), bias((1, D)),              # cross-attn Wv, bv
        w((D, D)), bias((1, D)),              # cross-attn Wo, bo
        gain((1, D)), bias((1, D)),           # norm2
        w((D, F)), bias((1, F)),              # ffn fc1
        w((F, D)), bias((1, D)),              # ffn fc2
        gain((1, D)), bias((1, D)),           # norm3
    )


# ---------------------------------------------------------------------------
# pure-JAX reference (independent formulation: per-batch heads, jax softmax)
# ---------------------------------------------------------------------------
def _ref_ln(x, g, b):
    mu = jnp.mean(x, axis=-1, keepdims=True)
    var = jnp.mean((x - mu) ** 2, axis=-1, keepdims=True)
    return (x - mu) * jax.lax.rsqrt(var + LN_EPS) * g + b


def _ref_mha(q_in, k_in, v_in, wq, bq, wk, bk, wv, bv, wo, bo, add_mask):
    Q = q_in @ wq + bq
    K = k_in @ wk + bk
    V = v_in @ wv + bv
    b_, sq, _ = Q.shape
    sk = K.shape[1]
    Qh = Q.reshape(b_, sq, NUM_HEADS, HEAD_DIM).transpose(0, 2, 1, 3)
    Kh = K.reshape(b_, sk, NUM_HEADS, HEAD_DIM).transpose(0, 2, 1, 3)
    Vh = V.reshape(b_, sk, NUM_HEADS, HEAD_DIM).transpose(0, 2, 1, 3)
    s = jnp.einsum('bhqd,bhkd->bhqk', Qh * SCALE, Kh)
    if add_mask is not None:
        s = s + add_mask[:, None, :, :]
    p = jax.nn.softmax(s, axis=-1)
    o = jnp.einsum('bhqk,bhkd->bhqd', p, Vh)
    o = o.transpose(0, 2, 1, 3).reshape(b_, sq, EMBED_DIM)
    return o @ wo + bo


def _ref_layer(x, mem, val, qp, kp, mask_add, p):
    (sa_wqk, sa_bqk, sa_wv, sa_bv, sa_wo, sa_bo, n1g, n1b,
     ca_wq, ca_bq, ca_wk, ca_bk, ca_wv, ca_bv, ca_wo, ca_bo, n2g, n2b,
     fw1, fb1, fw2, fb2, n3g, n3b) = p
    D = EMBED_DIM
    sa = _ref_mha(x + qp, x + qp, x,
                  sa_wqk[:, :D], sa_bqk[:, :D], sa_wqk[:, D:], sa_bqk[:, D:],
                  sa_wv, sa_bv, sa_wo, sa_bo, None)
    x = _ref_ln(x + sa, n1g, n1b)
    ca = _ref_mha(x + qp, mem + kp, val,
                  ca_wq, ca_bq, ca_wk, ca_bk, ca_wv, ca_bv, ca_wo, ca_bo,
                  mask_add)
    x = _ref_ln(x + ca, n2g, n2b)
    hidden = jax.nn.relu(x @ fw1 + fb1)
    x = _ref_ln(x + (hidden @ fw2 + fb2), n3g, n3b)
    return x


def ref_forward(query, key_mem, value, query_pos, key_pos, key_padding_mask,
                layer_params, post_params):
    mask_add = jnp.where(key_padding_mask, NEG_INF, 0.0).astype(
        jnp.float32).reshape(B, 1, NK)
    x = query
    inters = []
    for lp in layer_params:
        x = _ref_layer(x, key_mem, value, query_pos, key_pos, mask_add, lp)
        inters.append(_ref_ln(x, post_params[0], post_params[1]))
    return jnp.stack(inters)


if __name__ == "__main__":
    key = jax.random.PRNGKey(0)
    kq, kk, kqp, kkp, kmsk, kpar, kpn = jax.random.split(key, 7)
    query = jax.random.normal(kq, (B, NQ, EMBED_DIM), dtype=jnp.float32)
    memory = jax.random.normal(kk, (B, NK, EMBED_DIM), dtype=jnp.float32)
    value = memory                      # DETR uses the same memory as key/value
    query_pos = jax.random.normal(kqp, (B, NQ, EMBED_DIM), dtype=jnp.float32)
    key_pos = jax.random.normal(kkp, (B, NK, EMBED_DIM), dtype=jnp.float32)
    key_padding_mask = jax.random.bernoulli(kmsk, 0.25, (B, NK))
    key_padding_mask = key_padding_mask.at[:, 0].set(False)   # never fully masked

    layer_params = tuple(init_layer_params(jax.random.fold_in(kpar, l))
                         for l in range(NUM_LAYERS))
    kpn1, kpn2 = jax.random.split(kpn)
    post_params = (
        (1.0 + 0.1 * jax.random.normal(kpn1, (1, EMBED_DIM))).astype(jnp.float32),
        (0.1 * jax.random.normal(kpn2, (1, EMBED_DIM))).astype(jnp.float32))

    # one-time packing of the 24 per-layer tensors into two slabs
    w_slab, b_slab, pn_g, pn_b = pack_params(layer_params, post_params)

    fwd = jax.jit(detr_decoder_forward)
    out = fwd(query, memory, value, query_pos, key_pos, key_padding_mask,
              w_slab, b_slab, pn_g, pn_b)
    out = jax.block_until_ready(out)
    assert out.shape == (NUM_LAYERS, B, NQ, EMBED_DIM)

    ref = ref_forward(query, memory, value, query_pos, key_pos,
                      key_padding_mask, layer_params, post_params)
    ref = jax.block_until_ready(ref)
    assert jnp.allclose(out, ref, atol=1e-4, rtol=1e-4), "mismatch vs reference"

    print("KERNEL_OK")
</pallas_src>

<mosaic_0001>
module attributes {stable_mosaic.version = 11 : i64} {
  func.func @decoder_kernel(%arg0: memref<16x32xf32, #tpu.memory_space<vmem>>, %arg1: memref<16x32xf32, #tpu.memory_space<vmem>>, %arg2: memref<32x32xf32, #tpu.memory_space<vmem>>, %arg3: memref<32x32xf32, #tpu.memory_space<vmem>>, %arg4: memref<32x32xf32, #tpu.memory_space<vmem>>, %arg5: memref<16x16xf32, #tpu.memory_space<vmem>>, %arg6: memref<16x32xf32, #tpu.memory_space<vmem>>, %arg7: memref<2x32x384xf32, #tpu.memory_space<vmem>>, %arg8: memref<2x15x64xf32, #tpu.memory_space<vmem>>, %arg9: memref<1x32xf32, #tpu.memory_space<vmem>>, %arg10: memref<1x32xf32, #tpu.memory_space<vmem>>, %arg11: memref<2x16x32xf32, #tpu.memory_space<vmem>>) attributes {dimension_semantics = [], scalar_prefetch = 0 : i64, scratch_operands = 0 : i64, tpu.core_type = #tpu.core_type<tc>} {
    %c0 = arith.constant 0 : index
    %c0_0 = arith.constant 0 : index
    %0 = vector.load %arg0[%c0, %c0_0] : memref<16x32xf32, #tpu.memory_space<vmem>>, vector<16x32xf32>
    %c0_1 = arith.constant 0 : index
    %c0_2 = arith.constant 0 : index
    %1 = vector.load %arg1[%c0_1, %c0_2] : memref<16x32xf32, #tpu.memory_space<vmem>>, vector<16x32xf32>
    %c0_3 = arith.constant 0 : index
    %c0_4 = arith.constant 0 : index
    %2 = vector.load %arg2[%c0_3, %c0_4] : memref<32x32xf32, #tpu.memory_space<vmem>>, vector<32x32xf32>
    %c0_5 = arith.constant 0 : index
    %c0_6 = arith.constant 0 : index
    %3 = vector.load %arg4[%c0_5, %c0_6] : memref<32x32xf32, #tpu.memory_space<vmem>>, vector<32x32xf32>
    %4 = arith.addf %2, %3 : vector<32x32xf32>
    %c0_7 = arith.constant 0 : index
    %c0_8 = arith.constant 0 : index
    %5 = vector.load %arg3[%c0_7, %c0_8] : memref<32x32xf32, #tpu.memory_space<vmem>>, vector<32x32xf32>
    %c0_9 = arith.constant 0 : index
    %c0_10 = arith.constant 0 : index
    %6 = vector.load %arg5[%c0_9, %c0_10] : memref<16x16xf32, #tpu.memory_space<vmem>>, vector<16x16xf32>
    %c0_11 = arith.constant 0 : index
    %c0_12 = arith.constant 0 : index
    %7 = vector.load %arg6[%c0_11, %c0_12] : memref<16x32xf32, #tpu.memory_space<vmem>>, vector<16x32xf32>
    %8 = arith.addf %0, %1 : vector<16x32xf32>
    %c0_13 = arith.constant 0 : index
    %c0_14 = arith.constant 0 : index
    %c0_15 = arith.constant 0 : index
    %9 = vector.load %arg7[%c0_13, %c0_14, %c0_15] : memref<2x32x384xf32, #tpu.memory_space<vmem>>, vector<1x32x64xf32>
    %10 = vector.shape_cast %9 : vector<1x32x64xf32> to vector<32x64xf32>
    %cst = arith.constant dense<0.000000e+00> : vector<16x64xf32>
    %11 = tpu.matmul %8, %10, %cst {dimension_numbers = #tpu.dot_dimension_numbers<[1], [0], [0], [1], [0, 0, 1, 1], [], []>} : vector<16x32xf32>, vector<32x64xf32>, vector<16x64xf32> -> vector<16x64xf32>
    %c0_16 = arith.constant 0 : index
    %c0_17 = arith.constant 0 : index
    %c0_18 = arith.constant 0 : index
    %12 = vector.load %arg8[%c0_16, %c0_17, %c0_18] : memref<2x15x64xf32, #tpu.memory_space<vmem>>, vector<1x1x64xf32>
    %13 = vector.shape_cast %12 : vector<1x1x64xf32> to vector<1x64xf32>
    %14 = vector.broadcast %13 : vector<1x64xf32> to vector<16x64xf32>
    %15 = arith.addf %11, %14 : vector<16x64xf32>
    %c0_19 = arith.constant 0 : index
    %c0_20 = arith.constant 0 : index
    %c64 = arith.constant 64 : index
    %16 = vector.load %arg7[%c0_19, %c0_20, %c64] : memref<2x32x384xf32, #tpu.memory_space<vmem>>, vector<1x32x32xf32>
    %17 = vector.shape_cast %16 : vector<1x32x32xf32> to vector<32x32xf32>
    %cst_21 = arith.constant dense<0.000000e+00> : vector<16x32xf32>
    %18 = tpu.matmul %0, %17, %cst_21 {dimension_numbers = #tpu.dot_dimension_numbers<[1], [0], [0], [1], [0, 0, 1, 1], [], []>} : vector<16x32xf32>, vector<32x32xf32>, vector<16x32xf32> -> vector<16x32xf32>
    %c0_22 = arith.constant 0 : index
    %c1 = arith.constant 1 : index
    %c0_23 = arith.constant 0 : index
    %19 = vector.load %arg8[%c0_22, %c1, %c0_23] : memref<2x15x64xf32, #tpu.memory_space<vmem>>, vector<1x1x32xf32>
    %20 = vector.shape_cast %19 : vector<1x1x32xf32> to vector<1x32xf32>
    %21 = vector.broadcast %20 : vector<1x32xf32> to vector<16x32xf32>
    %22 = arith.addf %18, %21 : vector<16x32xf32>
    %c0_24 = arith.constant 0 : index
    %c0_25 = arith.constant 0 : index
    %c96 = arith.constant 96 : index
    %23 = vector.load %arg7[%c0_24, %c0_25, %c96] : memref<2x32x384xf32, #tpu.memory_space<vmem>>, vector<1x32x32xf32>
    %24 = vector.shape_cast %23 : vector<1x32x32xf32> to vector<32x32xf32>
    %25 = vector.shape_cast %24 : vector<32x32xf32> to vector<4x8x32xf32>
    %26 = vector.extract_strided_slice %15 {offsets = [0, 0], sizes = [16, 32], strides = [1, 1]} : vector<16x64xf32> to vector<16x32xf32>
    %27 = vector.extract_strided_slice %15 {offsets = [0, 32], sizes = [16, 32], strides = [1, 1]} : vector<16x64xf32> to vector<16x32xf32>
    %c0_26 = arith.constant 0 : index
    %c2 = arith.constant 2 : index
    %c0_27 = arith.constant 0 : index
    %28 = vector.load %arg8[%c0_26, %c2, %c0_27] : memref<2x15x64xf32, #tpu.memory_space<vmem>>, vector<1x1x32xf32>
    %29 = vector.shape_cast %28 : vector<1x1x32xf32> to vector<1x32xf32>
    %30 = vector.extract_strided_slice %26 {offsets = [0, 0], sizes = [16, 8], strides = [1, 1]} : vector<16x32xf32> to vector<16x8xf32>
    %31 = vector.extract_strided_slice %26 {offsets = [0, 8], sizes = [16, 8], strides = [1, 1]} : vector<16x32xf32> to vector<16x8xf32>
    %32 = vector.extract_strided_slice %26 {offsets = [0, 16], sizes = [16, 8], strides = [1, 1]} : vector<16x32xf32> to vector<16x8xf32>
    %33 = vector.extract_strided_slice %26 {offsets = [0, 24], sizes = [16, 8], strides = [1, 1]} : vector<16x32xf32> to vector<16x8xf32>
    %34 = vector.shape_cast %30 : vector<16x8xf32> to vector<1x16x8xf32>
    %35 = vector.shape_cast %31 : vector<16x8xf32> to vector<1x16x8xf32>
    %36 = vector.shape_cast %32 : vector<16x8xf32> to vector<1x16x8xf32>
    %37 = vector.shape_cast %33 : vector<16x8xf32> to vector<1x16x8xf32>
    %38 = tpu.concatenate %34, %35, %36, %37 in 0 : vector<1x16x8xf32>, vector<1x16x8xf32>, vector<1x16x8xf32>, vector<1x16x8xf32> -> vector<4x16x8xf32>
    %39 = vector.extract_strided_slice %27 {offsets = [0, 0], sizes = [16, 8], strides = [1, 1]} : vector<16x32xf32> to vector<16x8xf32>
    %40 = vector.extract_strided_slice %27 {offsets = [0, 8], sizes = [16, 8], strides = [1, 1]} : vector<16x32xf32> to vector<16x8xf32>
    %41 = vector.extract_strided_slice %27 {offsets = [0, 16], sizes = [16, 8], strides = [1, 1]} : vector<16x32xf32> to vector<16x8xf32>
    %42 = vector.extract_strided_slice %27 {offsets = [0, 24], sizes = [16, 8], strides = [1, 1]} : vector<16x32xf32> to vector<16x8xf32>
    %43 = vector.shape_cast %39 : vector<16x8xf32> to vector<1x16x8xf32>
    %44 = vector.shape_cast %40 : vector<16x8xf32> to vector<1x16x8xf32>
    %45 = vector.shape_cast %41 : vector<16x8xf32> to vector<1x16x8xf32>
    %46 = vector.shape_cast %42 : vector<16x8xf32> to vector<1x16x8xf32>
    %47 = tpu.concatenate %43, %44, %45, %46 in 0 : vector<1x16x8xf32>, vector<1x16x8xf32>, vector<1x16x8xf32>, vector<1x16x8xf32> -> vector<4x16x8xf32>
    %48 = vector.extract_strided_slice %22 {offsets = [0, 0], sizes = [16, 8], strides = [1, 1]} : vector<16x32xf32> to vector<16x8xf32>
    %49 = vector.extract_strided_slice %22 {offsets = [0, 8], sizes = [16, 8], strides = [1, 1]} : vector<16x32xf32> to vector<16x8xf32>
    %50 = vector.extract_strided_slice %22 {offsets = [0, 16], sizes = [16, 8], strides = [1, 1]} : vector<16x32xf32> to vector<16x8xf32>
    %51 = vector.extract_strided_slice %22 {offsets = [0, 24], sizes = [16, 8], strides = [1, 1]} : vector<16x32xf32> to vector<16x8xf32>
    %52 = vector.shape_cast %48 : vector<16x8xf32> to vector<1x16x8xf32>
    %53 = vector.shape_cast %49 : vector<16x8xf32> to vector<1x16x8xf32>
    %54 = vector.shape_cast %50 : vector<16x8xf32> to vector<1x16x8xf32>
    %55 = vector.shape_cast %51 : vector<16x8xf32> to vector<1x16x8xf32>
    %56 = tpu.concatenate %52, %53, %54, %55 in 0 : vector<1x16x8xf32>, vector<1x16x8xf32>, vector<1x16x8xf32>, vector<1x16x8xf32> -> vector<4x16x8xf32>
    "tpu.trace_start"() <{level = 10 : i32, message = "hqd,hkd->hqk"}> : () -> ()
    %cst_28 = arith.constant dense<0.000000e+00> : vector<4x16x16xf32>
    %57 = tpu.matmul %38, %47, %cst_28 {dimension_numbers = #tpu.dot_dimension_numbers<[2], [2], [1], [1], [0, 0, 0, 1, 1, 1], [0], [0]>} : vector<4x16x8xf32>, vector<4x16x8xf32>, vector<4x16x16xf32> -> vector<4x16x16xf32>
    "tpu.trace_stop"() : () -> ()
    %58 = vector.shape_cast %6 : vector<16x16xf32> to vector<1x16x16xf32>
    %59 = vector.broadcast %58 : vector<1x16x16xf32> to vector<4x16x16xf32>
    %60 = arith.addf %57, %59 : vector<4x16x16xf32>
    %cst_29 = arith.constant dense<0xFF800000> : vector<4x16xf32>
    %61 = vector.multi_reduction <maximumf>, %60, %cst_29 [2] : vector<4x16x16xf32> to vector<4x16xf32>
    %62 = vector.shape_cast %61 : vector<4x16xf32> to vector<4x16x1xf32>
    %63 = vector.broadcast %62 : vector<4x16x1xf32> to vector<4x16x16xf32>
    %64 = arith.subf %60, %63 : vector<4x16x16xf32>
    %65 = math.exp %64 : vector<4x16x16xf32>
    %cst_30 = arith.constant dense<0.000000e+00> : vector<4x16xf32>
    %66 = vector.multi_reduction <add>, %65, %cst_30 [2] : vector<4x16x16xf32> to vector<4x16xf32>
    %67 = vector.shape_cast %66 : vector<4x16xf32> to vector<4x16x1xf32>
    %68 = tpu.reciprocal %67 {approx = true} : vector<4x16x1xf32> -> vector<4x16x1xf32>
    %69 = arith.mulf %67, %68 : vector<4x16x1xf32>
    %cst_31 = arith.constant 2.000000e+00 : f32
    %70 = vector.broadcast %cst_31 : f32 to vector<4x16x1xf32>
    %71 = arith.subf %70, %69 : vector<4x16x1xf32>
    %72 = arith.mulf %68, %71 : vector<4x16x1xf32>
    %73 = vector.broadcast %72 : vector<4x16x1xf32> to vector<4x16x16xf32>
    %74 = arith.mulf %65, %73 : vector<4x16x16xf32>
    "tpu.trace_start"() <{level = 10 : i32, message = "hqk,hkd->hqd"}> : () -> ()
    %cst_32 = arith.constant dense<0.000000e+00> : vector<4x16x8xf32>
    %75 = tpu.matmul %74, %56, %cst_32 {dimension_numbers = #tpu.dot_dimension_numbers<[2], [1], [1], [2], [0, 0, 0, 1, 1, 2], [0], [0]>} : vector<4x16x16xf32>, vector<4x16x8xf32>, vector<4x16x8xf32> -> vector<4x16x8xf32>
    "tpu.trace_stop"() : () -> ()
    "tpu.trace_start"() <{level = 10 : i32, message = "hqd,hdo->hqo"}> : () -> ()
    %cst_33 = arith.constant dense<0.000000e+00> : vector<4x16x32xf32>
    %76 = tpu.matmul %75, %25, %cst_33 {dimension_numbers = #tpu.dot_dimension_numbers<[2], [1], [1], [2], [0, 0, 0, 1, 1, 2], [0], [0]>} : vector<4x16x8xf32>, vector<4x8x32xf32>, vector<4x16x32xf32> -> vector<4x16x32xf32>
    "tpu.trace_stop"() : () -> ()
    %cst_34 = arith.constant dense<0.000000e+00> : vector<16x32xf32>
    %77 = vector.multi_reduction <add>, %76, %cst_34 [0] : vector<4x16x32xf32> to vector<16x32xf32>
    %78 = vector.broadcast %29 : vector<1x32xf32> to vector<16x32xf32>
    %79 = arith.addf %77, %78 : vector<16x32xf32>
    %80 = arith.addf %0, %79 : vector<16x32xf32>
    %c0_35 = arith.constant 0 : index
    %c3 = arith.constant 3 : index
    %c0_36 = arith.constant 0 : index
    %81 = vector.load %arg8[%c0_35, %c3, %c0_36] : memref<2x15x64xf32, #tpu.memory_space<vmem>>, vector<1x1x32xf32>
    %82 = vector.shape_cast %81 : vector<1x1x32xf32> to vector<1x32xf32>
    %c0_37 = arith.constant 0 : index
    %c4 = arith.constant 4 : index
    %c0_38 = arith.constant 0 : index
    %83 = vector.load %arg8[%c0_37, %c4, %c0_38] : memref<2x15x64xf32, #tpu.memory_space<vmem>>, vector<1x1x32xf32>
    %84 = vector.shape_cast %83 : vector<1x1x32xf32> to vector<1x32xf32>
    %cst_39 = arith.constant dense<0.000000e+00> : vector<16xf32>
    %85 = vector.multi_reduction <add>, %80, %cst_39 [1] : vector<16x32xf32> to vector<16xf32>
    %86 = vector.shape_cast %85 : vector<16xf32> to vector<16x1xf32>
    %cst_40 = arith.constant 3.200000e+01 : f32
    %87 = vector.broadcast %cst_40 : f32 to vector<16x1xf32>
    %88 = arith.divf %86, %87 : vector<16x1xf32>
    %89 = vector.broadcast %88 : vector<16x1xf32> to vector<16x32xf32>
    %90 = arith.subf %80, %89 : vector<16x32xf32>
    %91 = arith.mulf %90, %90 : vector<16x32xf32>
    %cst_41 = arith.constant dense<0.000000e+00> : vector<16xf32>
    %92 = vector.multi_reduction <add>, %91, %cst_41 [1] : vector<16x32xf32> to vector<16xf32>
    %93 = vector.shape_cast %92 : vector<16xf32> to vector<16x1xf32>
    %cst_42 = arith.constant 3.200000e+01 : f32
    %94 = vector.broadcast %cst_42 : f32 to vector<16x1xf32>
    %95 = arith.divf %93, %94 : vector<16x1xf32>
    %96 = vector.broadcast %88 : vector<16x1xf32> to vector<16x32xf32>
    %97 = arith.subf %80, %96 : vector<16x32xf32>
    %cst_43 = arith.constant 9.99999974E-6 : f32
    %98 = vector.broadcast %cst_43 : f32 to vector<16x1xf32>
    %99 = arith.addf %95, %98 : vector<16x1xf32>
    %100 = math.rsqrt %99 : vector<16x1xf32>
    %101 = vector.broadcast %100 : vector<16x1xf32> to vector<16x32xf32>
    %102 = arith.mulf %97, %101 : vector<16x32xf32>
    %103 = vector.broadcast %82 : vector<1x32xf32> to vector<16x32xf32>
    %104 = arith.mulf %102, %103 : vector<16x32xf32>
    %105 = vector.broadcast %84 : vector<1x32xf32> to vector<16x32xf32>
    %106 = arith.addf %104, %105 : vector<16x32xf32>
    %107 = arith.addf %106, %1 : vector<16x32xf32>
    %c0_44 = arith.constant 0 : index
    %c0_45 = arith.constant 0 : index
    %c128 = arith.constant 128 : index
    %108 = vector.load %arg7[%c0_44, %c0_45, %c128] : memref<2x32x384xf32, #tpu.memory_space<vmem>>, vector<1x32x32xf32>
    %109 = vector.shape_cast %108 : vector<1x32x32xf32> to vector<32x32xf32>
    %cst_46 = arith.constant dense<0.000000e+00> : vector<16x32xf32>
    %110 = tpu.matmul %107, %109, %cst_46 {dimension_numbers = #tpu.dot_dimension_numbers<[1], [0], [0], [1], [0, 0, 1, 1], [], []>} : vector<16x32xf32>, vector<32x32xf32>, vector<16x32xf32> -> vector<16x32xf32>
    %c0_47 = arith.constant 0 : index
    %c5 = arith.constant 5 : index
    %c0_48 = arith.constant 0 : index
    %111 = vector.load %arg8[%c0_47, %c5, %c0_48] : memref<2x15x64xf32, #tpu.memory_space<vmem>>, vector<1x1x32xf32>
    %112 = vector.shape_cast %111 : vector<1x1x32xf32> to vector<1x32xf32>
    %113 = vector.broadcast %112 : vector<1x32xf32> to vector<16x32xf32>
    %114 = arith.addf %110, %113 : vector<16x32xf32>
    %c0_49 = arith.constant 0 : index
    %c0_50 = arith.constant 0 : index
    %c160 = arith.constant 160 : index
    %115 = vector.load %arg7[%c0_49, %c0_50, %c160] : memref<2x32x384xf32, #tpu.memory_space<vmem>>, vector<1x32x32xf32>
    %116 = vector.shape_cast %115 : vector<1x32x32xf32> to vector<32x32xf32>
    %cst_51 = arith.constant dense<0.000000e+00> : vector<32x32xf32>
    %117 = tpu.matmul %4, %116, %cst_51 {dimension_numbers = #tpu.dot_dimension_numbers<[1], [0], [0], [1], [0, 0, 1, 1], [], []>} : vector<32x32xf32>, vector<32x32xf32>, vector<32x32xf32> -> vector<32x32xf32>
    %c0_52 = arith.constant 0 : index
    %c6 = arith.constant 6 : index
    %c0_53 = arith.constant 0 : index
    %118 = vector.load %arg8[%c0_52, %c6, %c0_53] : memref<2x15x64xf32, #tpu.memory_space<vmem>>, vector<1x1x32xf32>
    %119 = vector.shape_cast %118 : vector<1x1x32xf32> to vector<1x32xf32>
    %120 = vector.broadcast %119 : vector<1x32xf32> to vector<32x32xf32>
    %121 = arith.addf %117, %120 : vector<32x32xf32>
    %c0_54 = arith.constant 0 : index
    %c0_55 = arith.constant 0 : index
    %c192 = arith.constant 192 : index
    %122 = vector.load %arg7[%c0_54, %c0_55, %c192] : memref<2x32x384xf32, #tpu.memory_space<vmem>>, vector<1x32x32xf32>
    %123 = vector.shape_cast %122 : vector<1x32x32xf32> to vector<32x32xf32>
    %cst_56 = arith.constant dense<0.000000e+00> : vector<32x32xf32>
    %124 = tpu.matmul %5, %123, %cst_56 {dimension_numbers = #tpu.dot_dimension_numbers<[1], [0], [0], [1], [0, 0, 1, 1], [], []>} : vector<32x32xf32>, vector<32x32xf32>, vector<32x32xf32> -> vector<32x32xf32>
    %c0_57 = arith.constant 0 : index
    %c7 = arith.constant 7 : index
    %c0_58 = arith.constant 0 : index
    %125 = vector.load %arg8[%c0_57, %c7, %c0_58] : memref<2x15x64xf32, #tpu.memory_space<vmem>>, vector<1x1x32xf32>
    %126 = vector.shape_cast %125 : vector<1x1x32xf32> to vector<1x32xf32>
    %127 = vector.broadcast %126 : vector<1x32xf32> to vector<32x32xf32>
    %128 = arith.addf %124, %127 : vector<32x32xf32>
    %c0_59 = arith.constant 0 : index
    %c0_60 = arith.constant 0 : index
    %c224 = arith.constant 224 : index
    %129 = vector.load %arg7[%c0_59, %c0_60, %c224] : memref<2x32x384xf32, #tpu.memory_space<vmem>>, vector<1x32x32xf32>
    %130 = vector.shape_cast %129 : vector<1x32x32xf32> to vector<32x32xf32>
    %131 = vector.shape_cast %130 : vector<32x32xf32> to vector<4x8x32xf32>
    %c0_61 = arith.constant 0 : index
    %c8 = arith.constant 8 : index
    %c0_62 = arith.constant 0 : index
    %132 = vector.load %arg8[%c0_61, %c8, %c0_62] : memref<2x15x64xf32, #tpu.memory_space<vmem>>, vector<1x1x32xf32>
    %133 = vector.shape_cast %132 : vector<1x1x32xf32> to vector<1x32xf32>
    %134 = vector.extract_strided_slice %114 {offsets = [0, 0], sizes = [16, 8], strides = [1, 1]} : vector<16x32xf32> to vector<16x8xf32>
    %135 = vector.extract_strided_slice %114 {offsets = [0, 8], sizes = [16, 8], strides = [1, 1]} : vector<16x32xf32> to vector<16x8xf32>
    %136 = vector.extract_strided_slice %114 {offsets = [0, 16], sizes = [16, 8], strides = [1, 1]} : vector<16x32xf32> to vector<16x8xf32>
    %137 = vector.extract_strided_slice %114 {offsets = [0, 24], sizes = [16, 8], strides = [1, 1]} : vector<16x32xf32> to vector<16x8xf32>
    %138 = vector.shape_cast %134 : vector<16x8xf32> to vector<1x16x8xf32>
    %139 = vector.shape_cast %135 : vector<16x8xf32> to vector<1x16x8xf32>
    %140 = vector.shape_cast %136 : vector<16x8xf32> to vector<1x16x8xf32>
    %141 = vector.shape_cast %137 : vector<16x8xf32> to vector<1x16x8xf32>
    %142 = tpu.concatenate %138, %139, %140, %141 in 0 : vector<1x16x8xf32>, vector<1x16x8xf32>, vector<1x16x8xf32>, vector<1x16x8xf32> -> vector<4x16x8xf32>
    %143 = vector.extract_strided_slice %121 {offsets = [0, 0], sizes = [32, 8], strides = [1, 1]} : vector<32x32xf32> to vector<32x8xf32>
    %144 = vector.extract_strided_slice %121 {offsets = [0, 8], sizes = [32, 8], strides = [1, 1]} : vector<32x32xf32> to vector<32x8xf32>
    %145 = vector.extract_strided_slice %121 {offsets = [0, 16], sizes = [32, 8], strides = [1, 1]} : vector<32x32xf32> to vector<32x8xf32>
    %146 = vector.extract_strided_slice %121 {offsets = [0, 24], sizes = [32, 8], strides = [1, 1]} : vector<32x32xf32> to vector<32x8xf32>
    %147 = vector.shape_cast %143 : vector<32x8xf32> to vector<1x32x8xf32>
    %148 = vector.shape_cast %144 : vector<32x8xf32> to vector<1x32x8xf32>
    %149 = vector.shape_cast %145 : vector<32x8xf32> to vector<1x32x8xf32>
    %150 = vector.shape_cast %146 : vector<32x8xf32> to vector<1x32x8xf32>
    %151 = tpu.concatenate %147, %148, %149, %150 in 0 : vector<1x32x8xf32>, vector<1x32x8xf32>, vector<1x32x8xf32>, vector<1x32x8xf32> -> vector<4x32x8xf32>
    %152 = vector.extract_strided_slice %128 {offsets = [0, 0], sizes = [32, 8], strides = [1, 1]} : vector<32x32xf32> to vector<32x8xf32>
    %153 = vector.extract_strided_slice %128 {offsets = [0, 8], sizes = [32, 8], strides = [1, 1]} : vector<32x32xf32> to vector<32x8xf32>
    %154 = vector.extract_strided_slice %128 {offsets = [0, 16], sizes = [32, 8], strides = [1, 1]} : vector<32x32xf32> to vector<32x8xf32>
    %155 = vector.extract_strided_slice %128 {offsets = [0, 24], sizes = [32, 8], strides = [1, 1]} : vector<32x32xf32> to vector<32x8xf32>
    %156 = vector.shape_cast %152 : vector<32x8xf32> to vector<1x32x8xf32>
    %157 = vector.shape_cast %153 : vector<32x8xf32> to vector<1x32x8xf32>
    %158 = vector.shape_cast %154 : vector<32x8xf32> to vector<1x32x8xf32>
    %159 = vector.shape_cast %155 : vector<32x8xf32> to vector<1x32x8xf32>
    %160 = tpu.concatenate %156, %157, %158, %159 in 0 : vector<1x32x8xf32>, vector<1x32x8xf32>, vector<1x32x8xf32>, vector<1x32x8xf32> -> vector<4x32x8xf32>
    "tpu.trace_start"() <{level = 10 : i32, message = "hqd,hkd->hqk"}> : () -> ()
    %cst_63 = arith.constant dense<0.000000e+00> : vector<4x16x32xf32>
    %161 = tpu.matmul %142, %151, %cst_63 {dimension_numbers = #tpu.dot_dimension_numbers<[2], [2], [1], [1], [0, 0, 0, 1, 1, 1], [0], [0]>} : vector<4x16x8xf32>, vector<4x32x8xf32>, vector<4x16x32xf32> -> vector<4x16x32xf32>
    "tpu.trace_stop"() : () -> ()
    %162 = vector.shape_cast %7 : vector<16x32xf32> to vector<1x16x32xf32>
    %163 = vector.broadcast %162 : vector<1x16x32xf32> to vector<4x16x32xf32>
    %164 = arith.addf %161, %163 : vector<4x16x32xf32>
    %cst_64 = arith.constant dense<0xFF800000> : vector<4x16xf32>
    %165 = vector.multi_reduction <maximumf>, %164, %cst_64 [2] : vector<4x16x32xf32> to vector<4x16xf32>
    %166 = vector.shape_cast %165 : vector<4x16xf32> to vector<4x16x1xf32>
    %167 = vector.broadcast %166 : vector<4x16x1xf32> to vector<4x16x32xf32>
    %168 = arith.subf %164, %167 : vector<4x16x32xf32>
    %169 = math.exp %168 : vector<4x16x32xf32>
    %cst_65 = arith.constant dense<0.000000e+00> : vector<4x16xf32>
    %170 = vector.multi_reduction <add>, %169, %cst_65 [2] : vector<4x16x32xf32> to vector<4x16xf32>
    %171 = vector.shape_cast %170 : vector<4x16xf32> to vector<4x16x1xf32>
    %172 = tpu.reciprocal %171 {approx = true} : vector<4x16x1xf32> -> vector<4x16x1xf32>
    %173 = arith.mulf %171, %172 : vector<4x16x1xf32>
    %cst_66 = arith.constant 2.000000e+00 : f32
    %174 = vector.broadcast %cst_66 : f32 to vector<4x16x1xf32>
    %175 = arith.subf %174, %173 : vector<4x16x1xf32>
    %176 = arith.mulf %172, %175 : vector<4x16x1xf32>
    %177 = vector.broadcast %176 : vector<4x16x1xf32> to vector<4x16x32xf32>
    %178 = arith.mulf %169, %177 : vector<4x16x32xf32>
    "tpu.trace_start"() <{level = 10 : i32, message = "hqk,hkd->hqd"}> : () -> ()
    %cst_67 = arith.constant dense<0.000000e+00> : vector<4x16x8xf32>
    %179 = tpu.matmul %178, %160, %cst_67 {dimension_numbers = #tpu.dot_dimension_numbers<[2], [1], [1], [2], [0, 0, 0, 1, 1, 2], [0], [0]>} : vector<4x16x32xf32>, vector<4x32x8xf32>, vector<4x16x8xf32> -> vector<4x16x8xf32>
    "tpu.trace_stop"() : () -> ()
    "tpu.trace_start"() <{level = 10 : i32, message = "hqd,hdo->hqo"}> : () -> ()
    %cst_68 = arith.constant dense<0.000000e+00> : vector<4x16x32xf32>
    %180 = tpu.matmul %179, %131, %cst_68 {dimension_numbers = #tpu.dot_dimension_numbers<[2], [1], [1], [2], [0, 0, 0, 1, 1, 2], [0], [0]>} : vector<4x16x8xf32>, vector<4x8x32xf32>, vector<4x16x32xf32> -> vector<4x16x32xf32>
    "tpu.trace_stop"() : () -> ()
    %cst_69 = arith.constant dense<0.000000e+00> : vector<16x32xf32>
    %181 = vector.multi_reduction <add>, %180, %cst_69 [0] : vector<4x16x32xf32> to vector<16x32xf32>
    %182 = vector.broadcast %133 : vector<1x32xf32> to vector<16x32xf32>
    %183 = arith.addf %181, %182 : vector<16x32xf32>
    %184 = arith.addf %106, %183 : vector<16x32xf32>
    %c0_70 = arith.constant 0 : index
    %c9 = arith.constant 9 : index
    %c0_71 = arith.constant 0 : index
    %185 = vector.load %arg8[%c0_70, %c9, %c0_71] : memref<2x15x64xf32, #tpu.memory_space<vmem>>, vector<1x1x32xf32>
    %186 = vector.shape_cast %185 : vector<1x1x32xf32> to vector<1x32xf32>
    %c0_72 = arith.constant 0 : index
    %c10 = arith.constant 10 : index
    %c0_73 = arith.constant 0 : index
    %187 = vector.load %arg8[%c0_72, %c10, %c0_73] : memref<2x15x64xf32, #tpu.memory_space<vmem>>, vector<1x1x32xf32>
    %188 = vector.shape_cast %187 : vector<1x1x32xf32> to vector<1x32xf32>
    %cst_74 = arith.constant dense<0.000000e+00> : vector<16xf32>
    %189 = vector.multi_reduction <add>, %184, %cst_74 [1] : vector<16x32xf32> to vector<16xf32>
    %190 = vector.shape_cast %189 : vector<16xf32> to vector<16x1xf32>
    %cst_75 = arith.constant 3.200000e+01 : f32
    %191 = vector.broadcast %cst_75 : f32 to vector<16x1xf32>
    %192 = arith.divf %190, %191 : vector<16x1xf32>
    %193 = vector.broadcast %192 : vector<16x1xf32> to vector<16x32xf32>
    %194 = arith.subf %184, %193 : vector<16x32xf32>
    %195 = arith.mulf %194, %194 : vector<16x32xf32>
    %cst_76 = arith.constant dense<0.000000e+00> : vector<16xf32>
    %196 = vector.multi_reduction <add>, %195, %cst_76 [1] : vector<16x32xf32> to vector<16xf32>
    %197 = vector.shape_cast %196 : vector<16xf32> to vector<16x1xf32>
    %cst_77 = arith.constant 3.200000e+01 : f32
    %198 = vector.broadcast %cst_77 : f32 to vector<16x1xf32>
    %199 = arith.divf %197, %198 : vector<16x1xf32>
    %200 = vector.broadcast %192 : vector<16x1xf32> to vector<16x32xf32>
    %201 = arith.subf %184, %200 : vector<16x32xf32>
    %cst_78 = arith.constant 9.99999974E-6 : f32
    %202 = vector.broadcast %cst_78 : f32 to vector<16x1xf32>
    %203 = arith.addf %199, %202 : vector<16x1xf32>
    %204 = math.rsqrt %203 : vector<16x1xf32>
    %205 = vector.broadcast %204 : vector<16x1xf32> to vector<16x32xf32>
    %206 = arith.mulf %201, %205 : vector<16x32xf32>
    %207 = vector.broadcast %186 : vector<1x32xf32> to vector<16x32xf32>
    %208 = arith.mulf %206, %207 : vector<16x32xf32>
    %209 = vector.broadcast %188 : vector<1x32xf32> to vector<16x32xf32>
    %210 = arith.addf %208, %209 : vector<16x32xf32>
    %c0_79 = arith.constant 0 : index
    %c0_80 = arith.constant 0 : index
    %c256 = arith.constant 256 : index
    %211 = vector.load %arg7[%c0_79, %c0_80, %c256] : memref<2x32x384xf32, #tpu.memory_space<vmem>>, vector<1x32x64xf32>
    %212 = vector.shape_cast %211 : vector<1x32x64xf32> to vector<32x64xf32>
    %cst_81 = arith.constant dense<0.000000e+00> : vector<16x64xf32>
    %213 = tpu.matmul %210, %212, %cst_81 {dimension_numbers = #tpu.dot_dimension_numbers<[1], [0], [0], [1], [0, 0, 1, 1], [], []>} : vector<16x32xf32>, vector<32x64xf32>, vector<16x64xf32> -> vector<16x64xf32>
    %c0_82 = arith.constant 0 : index
    %c11 = arith.constant 11 : index
    %c0_83 = arith.constant 0 : index
    %214 = vector.load %arg8[%c0_82, %c11, %c0_83] : memref<2x15x64xf32, #tpu.memory_space<vmem>>, vector<1x1x64xf32>
    %215 = vector.shape_cast %214 : vector<1x1x64xf32> to vector<1x64xf32>
    %216 = vector.broadcast %215 : vector<1x64xf32> to vector<16x64xf32>
    %217 = arith.addf %213, %216 : vector<16x64xf32>
    %cst_84 = arith.constant 0.000000e+00 : f32
    %218 = vector.broadcast %cst_84 : f32 to vector<16x64xf32>
    %219 = arith.maximumf %217, %218 : vector<16x64xf32>
    %c0_85 = arith.constant 0 : index
    %c0_86 = arith.constant 0 : index
    %c320 = arith.constant 320 : index
    %220 = vector.load %arg7[%c0_85, %c0_86, %c320] : memref<2x32x384xf32, #tpu.memory_space<vmem>>, vector<1x32x64xf32>
    %221 = vector.shape_cast %220 : vector<1x32x64xf32> to vector<32x64xf32>
    %cst_87 = arith.constant dense<0.000000e+00> : vector<16x32xf32>
    %222 = tpu.matmul %219, %221, %cst_87 {dimension_numbers = #tpu.dot_dimension_numbers<[1], [1], [0], [0], [0, 0, 1, 0], [], []>} : vector<16x64xf32>, vector<32x64xf32>, vector<16x32xf32> -> vector<16x32xf32>
    %c0_88 = arith.constant 0 : index
    %c12 = arith.constant 12 : index
    %c0_89 = arith.constant 0 : index
    %223 = vector.load %arg8[%c0_88, %c12, %c0_89] : memref<2x15x64xf32, #tpu.memory_space<vmem>>, vector<1x1x32xf32>
    %224 = vector.shape_cast %223 : vector<1x1x32xf32> to vector<1x32xf32>
    %225 = vector.broadcast %224 : vector<1x32xf32> to vector<16x32xf32>
    %226 = arith.addf %222, %225 : vector<16x32xf32>
    %227 = arith.addf %210, %226 : vector<16x32xf32>
    %c0_90 = arith.constant 0 : index
    %c13 = arith.constant 13 : index
    %c0_91 = arith.constant 0 : index
    %228 = vector.load %arg8[%c0_90, %c13, %c0_91] : memref<2x15x64xf32, #tpu.memory_space<vmem>>, vector<1x1x32xf32>
    %229 = vector.shape_cast %228 : vector<1x1x32xf32> to vector<1x32xf32>
    %c0_92 = arith.constant 0 : index
    %c14 = arith.constant 14 : index
    %c0_93 = arith.constant 0 : index
    %230 = vector.load %arg8[%c0_92, %c14, %c0_93] : memref<2x15x64xf32, #tpu.memory_space<vmem>>, vector<1x1x32xf32>
    %231 = vector.shape_cast %230 : vector<1x1x32xf32> to vector<1x32xf32>
    %cst_94 = arith.constant dense<0.000000e+00> : vector<16xf32>
    %232 = vector.multi_reduction <add>, %227, %cst_94 [1] : vector<16x32xf32> to vector<16xf32>
    %233 = vector.shape_cast %232 : vector<16xf32> to vector<16x1xf32>
    %cst_95 = arith.constant 3.200000e+01 : f32
    %234 = vector.broadcast %cst_95 : f32 to vector<16x1xf32>
    %235 = arith.divf %233, %234 : vector<16x1xf32>
    %236 = vector.broadcast %235 : vector<16x1xf32> to vector<16x32xf32>
    %237 = arith.subf %227, %236 : vector<16x32xf32>
    %238 = arith.mulf %237, %237 : vector<16x32xf32>
    %cst_96 = arith.constant dense<0.000000e+00> : vector<16xf32>
    %239 = vector.multi_reduction <add>, %238, %cst_96 [1] : vector<16x32xf32> to vector<16xf32>
    %240 = vector.shape_cast %239 : vector<16xf32> to vector<16x1xf32>
    %cst_97 = arith.constant 3.200000e+01 : f32
    %241 = vector.broadcast %cst_97 : f32 to vector<16x1xf32>
    %242 = arith.divf %240, %241 : vector<16x1xf32>
    %243 = vector.broadcast %235 : vector<16x1xf32> to vector<16x32xf32>
    %244 = arith.subf %227, %243 : vector<16x32xf32>
    %cst_98 = arith.constant 9.99999974E-6 : f32
    %245 = vector.broadcast %cst_98 : f32 to vector<16x1xf32>
    %246 = arith.addf %242, %245 : vector<16x1xf32>
    %247 = math.rsqrt %246 : vector<16x1xf32>
    %248 = vector.broadcast %247 : vector<16x1xf32> to vector<16x32xf32>
    %249 = arith.mulf %244, %248 : vector<16x32xf32>
    %250 = vector.broadcast %229 : vector<1x32xf32> to vector<16x32xf32>
    %251 = arith.mulf %249, %250 : vector<16x32xf32>
    %252 = vector.broadcast %231 : vector<1x32xf32> to vector<16x32xf32>
    %253 = arith.addf %251, %252 : vector<16x32xf32>
    %c0_99 = arith.constant 0 : index
    %c0_100 = arith.constant 0 : index
    %254 = vector.load %arg9[%c0_99, %c0_100] : memref<1x32xf32, #tpu.memory_space<vmem>>, vector<1x32xf32>
    %c0_101 = arith.constant 0 : index
    %c0_102 = arith.constant 0 : index
    %255 = vector.load %arg10[%c0_101, %c0_102] : memref<1x32xf32, #tpu.memory_space<vmem>>, vector<1x32xf32>
    %cst_103 = arith.constant dense<0.000000e+00> : vector<16xf32>
    %256 = vector.multi_reduction <add>, %253, %cst_103 [1] : vector<16x32xf32> to vector<16xf32>
    %257 = vector.shape_cast %256 : vector<16xf32> to vector<16x1xf32>
    %cst_104 = arith.constant 3.200000e+01 : f32
    %258 = vector.broadcast %cst_104 : f32 to vector<16x1xf32>
    %259 = arith.divf %257, %258 : vector<16x1xf32>
    %260 = vector.broadcast %259 : vector<16x1xf32> to vector<16x32xf32>
    %261 = arith.subf %253, %260 : vector<16x32xf32>
    %262 = arith.mulf %261, %261 : vector<16x32xf32>
    %cst_105 = arith.constant dense<0.000000e+00> : vector<16xf32>
    %263 = vector.multi_reduction <add>, %262, %cst_105 [1] : vector<16x32xf32> to vector<16xf32>
    %264 = vector.shape_cast %263 : vector<16xf32> to vector<16x1xf32>
    %cst_106 = arith.constant 3.200000e+01 : f32
    %265 = vector.broadcast %cst_106 : f32 to vector<16x1xf32>
    %266 = arith.divf %264, %265 : vector<16x1xf32>
    %267 = vector.broadcast %259 : vector<16x1xf32> to vector<16x32xf32>
    %268 = arith.subf %253, %267 : vector<16x32xf32>
    %cst_107 = arith.constant 9.99999974E-6 : f32
    %269 = vector.broadcast %cst_107 : f32 to vector<16x1xf32>
    %270 = arith.addf %266, %269 : vector<16x1xf32>
    %271 = math.rsqrt %270 : vector<16x1xf32>
    %272 = vector.broadcast %271 : vector<16x1xf32> to vector<16x32xf32>
    %273 = arith.mulf %268, %272 : vector<16x32xf32>
    %274 = vector.broadcast %254 : vector<1x32xf32> to vector<16x32xf32>
    %275 = arith.mulf %273, %274 : vector<16x32xf32>
    %276 = vector.broadcast %255 : vector<1x32xf32> to vector<16x32xf32>
    %277 = arith.addf %275, %276 : vector<16x32xf32>
    %c0_108 = arith.constant 0 : index
    %c0_109 = arith.constant 0 : index
    %c0_110 = arith.constant 0 : index
    %278 = vector.load %arg11[%c0_108, %c0_109, %c0_110] : memref<2x16x32xf32, #tpu.memory_space<vmem>>, vector<1x16x32xf32>
    %279 = vector.shape_cast %278 : vector<1x16x32xf32> to vector<16x32xf32>
    %280 = vector.shape_cast %277 : vector<16x32xf32> to vector<1x16x32xf32>
    tpu.vector_store %arg11[%c0_108, %c0_109, %c0_110], %280 {strides = array<i32>} : memref<2x16x32xf32, #tpu.memory_space<vmem>>, vector<1x16x32xf32>,
    %281 = arith.addf %253, %1 : vector<16x32xf32>
    %c1_111 = arith.constant 1 : index
    %c0_112 = arith.constant 0 : index
    %c0_113 = arith.constant 0 : index
    %282 = vector.load %arg7[%c1_111, %c0_112, %c0_113] : memref<2x32x384xf32, #tpu.memory_space<vmem>>, vector<1x32x64xf32>
    %283 = vector.shape_cast %282 : vector<1x32x64xf32> to vector<32x64xf32>
    %cst_114 = arith.constant dense<0.000000e+00> : vector<16x64xf32>
    %284 = tpu.matmul %281, %283, %cst_114 {dimension_numbers = #tpu.dot_dimension_numbers<[1], [0], [0], [1], [0, 0, 1, 1], [], []>} : vector<16x32xf32>, vector<32x64xf32>, vector<16x64xf32> -> vector<16x64xf32>
    %c1_115 = arith.constant 1 : index
    %c0_116 = arith.constant 0 : index
    %c0_117 = arith.constant 0 : index
    %285 = vector.load %arg8[%c1_115, %c0_116, %c0_117] : memref<2x15x64xf32, #tpu.memory_space<vmem>>, vector<1x1x64xf32>
    %286 = vector.shape_cast %285 : vector<1x1x64xf32> to vector<1x64xf32>
    %287 = vector.broadcast %286 : vector<1x64xf32> to vector<16x64xf32>
    %288 = arith.addf %284, %287 : vector<16x64xf32>
    %c1_118 = arith.constant 1 : index
    %c0_119 = arith.constant 0 : index
    %c64_120 = arith.constant 64 : index
    %289 = vector.load %arg7[%c1_118, %c0_119, %c64_120] : memref<2x32x384xf32, #tpu.memory_space<vmem>>, vector<1x32x32xf32>
    %290 = vector.shape_cast %289 : vector<1x32x32xf32> to vector<32x32xf32>
    %cst_121 = arith.constant dense<0.000000e+00> : vector<16x32xf32>
    %291 = tpu.matmul %253, %290, %cst_121 {dimension_numbers = #tpu.dot_dimension_numbers<[1], [0], [0], [1], [0, 0, 1, 1], [], []>} : vector<16x32xf32>, vector<32x32xf32>, vector<16x32xf32> -> vector<16x32xf32>
    %c1_122 = arith.constant 1 : index
    %c1_123 = arith.constant 1 : index
    %c0_124 = arith.constant 0 : index
    %292 = vector.load %arg8[%c1_122, %c1_123, %c0_124] : memref<2x15x64xf32, #tpu.memory_space<vmem>>, vector<1x1x32xf32>
    %293 = vector.shape_cast %292 : vector<1x1x32xf32> to vector<1x32xf32>
    %294 = vector.broadcast %293 : vector<1x32xf32> to vector<16x32xf32>
    %295 = arith.addf %291, %294 : vector<16x32xf32>
    %c1_125 = arith.constant 1 : index
    %c0_126 = arith.constant 0 : index
    %c96_127 = arith.constant 96 : index
    %296 = vector.load %arg7[%c1_125, %c0_126, %c96_127] : memref<2x32x384xf32, #tpu.memory_space<vmem>>, vector<1x32x32xf32>
    %297 = vector.shape_cast %296 : vector<1x32x32xf32> to vector<32x32xf32>
    %298 = vector.shape_cast %297 : vector<32x32xf32> to vector<4x8x32xf32>
    %299 = vector.extract_strided_slice %288 {offsets = [0, 0], sizes = [16, 32], strides = [1, 1]} : vector<16x64xf32> to vector<16x32xf32>
    %300 = vector.extract_strided_slice %288 {offsets = [0, 32], sizes = [16, 32], strides = [1, 1]} : vector<16x64xf32> to vector<16x32xf32>
    %c1_128 = arith.constant 1 : index
    %c2_129 = arith.constant 2 : index
    %c0_130 = arith.constant 0 : index
    %301 = vector.load %arg8[%c1_128, %c2_129, %c0_130] : memref<2x15x64xf32, #tpu.memory_space<vmem>>, vector<1x1x32xf32>
    %302 = vector.shape_cast %301 : vector<1x1x32xf32> to vector<1x32xf32>
    %303 = vector.extract_strided_slice %299 {offsets = [0, 0], sizes = [16, 8], strides = [1, 1]} : vector<16x32xf32> to vector<16x8xf32>
    %304 = vector.extract_strided_slice %299 {offsets = [0, 8], sizes = [16, 8], strides = [1, 1]} : vector<16x32xf32> to vector<16x8xf32>
    %305 = vector.extract_strided_slice %299 {offsets = [0, 16], sizes = [16, 8], strides = [1, 1]} : vector<16x32xf32> to vector<16x8xf32>
    %306 = vector.extract_strided_slice %299 {offsets = [0, 24], sizes = [16, 8], strides = [1, 1]} : vector<16x32xf32> to vector<16x8xf32>
    %307 = vector.shape_cast %303 : vector<16x8xf32> to vector<1x16x8xf32>
    %308 = vector.shape_cast %304 : vector<16x8xf32> to vector<1x16x8xf32>
    %309 = vector.shape_cast %305 : vector<16x8xf32> to vector<1x16x8xf32>
    %310 = vector.shape_cast %306 : vector<16x8xf32> to vector<1x16x8xf32>
    %311 = tpu.concatenate %307, %308, %309, %310 in 0 : vector<1x16x8xf32>, vector<1x16x8xf32>, vector<1x16x8xf32>, vector<1x16x8xf32> -> vector<4x16x8xf32>
    %312 = vector.extract_strided_slice %300 {offsets = [0, 0], sizes = [16, 8], strides = [1, 1]} : vector<16x32xf32> to vector<16x8xf32>
    %313 = vector.extract_strided_slice %300 {offsets = [0, 8], sizes = [16, 8], strides = [1, 1]} : vector<16x32xf32> to vector<16x8xf32>
    %314 = vector.extract_strided_slice %300 {offsets = [0, 16], sizes = [16, 8], strides = [1, 1]} : vector<16x32xf32> to vector<16x8xf32>
    %315 = vector.extract_strided_slice %300 {offsets = [0, 24], sizes = [16, 8], strides = [1, 1]} : vector<16x32xf32> to vector<16x8xf32>
    %316 = vector.shape_cast %312 : vector<16x8xf32> to vector<1x16x8xf32>
    %317 = vector.shape_cast %313 : vector<16x8xf32> to vector<1x16x8xf32>
    %318 = vector.shape_cast %314 : vector<16x8xf32> to vector<1x16x8xf32>
    %319 = vector.shape_cast %315 : vector<16x8xf32> to vector<1x16x8xf32>
    %320 = tpu.concatenate %316, %317, %318, %319 in 0 : vector<1x16x8xf32>, vector<1x16x8xf32>, vector<1x16x8xf32>, vector<1x16x8xf32> -> vector<4x16x8xf32>
    %321 = vector.extract_strided_slice %295 {offsets = [0, 0], sizes = [16, 8], strides = [1, 1]} : vector<16x32xf32> to vector<16x8xf32>
    %322 = vector.extract_strided_slice %295 {offsets = [0, 8], sizes = [16, 8], strides = [1, 1]} : vector<16x32xf32> to vector<16x8xf32>
    %323 = vector.extract_strided_slice %295 {offsets = [0, 16], sizes = [16, 8], strides = [1, 1]} : vector<16x32xf32> to vector<16x8xf32>
    %324 = vector.extract_strided_slice %295 {offsets = [0, 24], sizes = [16, 8], strides = [1, 1]} : vector<16x32xf32> to vector<16x8xf32>
    %325 = vector.shape_cast %321 : vector<16x8xf32> to vector<1x16x8xf32>
    %326 = vector.shape_cast %322 : vector<16x8xf32> to vector<1x16x8xf32>
    %327 = vector.shape_cast %323 : vector<16x8xf32> to vector<1x16x8xf32>
    %328 = vector.shape_cast %324 : vector<16x8xf32> to vector<1x16x8xf32>
    %329 = tpu.concatenate %325, %326, %327, %328 in 0 : vector<1x16x8xf32>, vector<1x16x8xf32>, vector<1x16x8xf32>, vector<1x16x8xf32> -> vector<4x16x8xf32>
    "tpu.trace_start"() <{level = 10 : i32, message = "hqd,hkd->hqk"}> : () -> ()
    %cst_131 = arith.constant dense<0.000000e+00> : vector<4x16x16xf32>
    %330 = tpu.matmul %311, %320, %cst_131 {dimension_numbers = #tpu.dot_dimension_numbers<[2], [2], [1], [1], [0, 0, 0, 1, 1, 1], [0], [0]>} : vector<4x16x8xf32>, vector<4x16x8xf32>, vector<4x16x16xf32> -> vector<4x16x16xf32>
    "tpu.trace_stop"() : () -> ()
    %331 = vector.shape_cast %6 : vector<16x16xf32> to vector<1x16x16xf32>
    %332 = vector.broadcast %331 : vector<1x16x16xf32> to vector<4x16x16xf32>
    %333 = arith.addf %330, %332 : vector<4x16x16xf32>
    %cst_132 = arith.constant dense<0xFF800000> : vector<4x16xf32>
    %334 = vector.multi_reduction <maximumf>, %333, %cst_132 [2] : vector<4x16x16xf32> to vector<4x16xf32>
    %335 = vector.shape_cast %334 : vector<4x16xf32> to vector<4x16x1xf32>
    %336 = vector.broadcast %335 : vector<4x16x1xf32> to vector<4x16x16xf32>
    %337 = arith.subf %333, %336 : vector<4x16x16xf32>
    %338 = math.exp %337 : vector<4x16x16xf32>
    %cst_133 = arith.constant dense<0.000000e+00> : vector<4x16xf32>
    %339 = vector.multi_reduction <add>, %338, %cst_133 [2] : vector<4x16x16xf32> to vector<4x16xf32>
    %340 = vector.shape_cast %339 : vector<4x16xf32> to vector<4x16x1xf32>
    %341 = tpu.reciprocal %340 {approx = true} : vector<4x16x1xf32> -> vector<4x16x1xf32>
    %342 = arith.mulf %340, %341 : vector<4x16x1xf32>
    %cst_134 = arith.constant 2.000000e+00 : f32
    %343 = vector.broadcast %cst_134 : f32 to vector<4x16x1xf32>
    %344 = arith.subf %343, %342 : vector<4x16x1xf32>
    %345 = arith.mulf %341, %344 : vector<4x16x1xf32>
    %346 = vector.broadcast %345 : vector<4x16x1xf32> to vector<4x16x16xf32>
    %347 = arith.mulf %338, %346 : vector<4x16x16xf32>
    "tpu.trace_start"() <{level = 10 : i32, message = "hqk,hkd->hqd"}> : () -> ()
    %cst_135 = arith.constant dense<0.000000e+00> : vector<4x16x8xf32>
    %348 = tpu.matmul %347, %329, %cst_135 {dimension_numbers = #tpu.dot_dimension_numbers<[2], [1], [1], [2], [0, 0, 0, 1, 1, 2], [0], [0]>} : vector<4x16x16xf32>, vector<4x16x8xf32>, vector<4x16x8xf32> -> vector<4x16x8xf32>
    "tpu.trace_stop"() : () -> ()
    "tpu.trace_start"() <{level = 10 : i32, message = "hqd,hdo->hqo"}> : () -> ()
    %cst_136 = arith.constant dense<0.000000e+00> : vector<4x16x32xf32>
    %349 = tpu.matmul %348, %298, %cst_136 {dimension_numbers = #tpu.dot_dimension_numbers<[2], [1], [1], [2], [0, 0, 0, 1, 1, 2], [0], [0]>} : vector<4x16x8xf32>, vector<4x8x32xf32>, vector<4x16x32xf32> -> vector<4x16x32xf32>
    "tpu.trace_stop"() : () -> ()
    %cst_137 = arith.constant dense<0.000000e+00> : vector<16x32xf32>
    %350 = vector.multi_reduction <add>, %349, %cst_137 [0] : vector<4x16x32xf32> to vector<16x32xf32>
    %351 = vector.broadcast %302 : vector<1x32xf32> to vector<16x32xf32>
    %352 = arith.addf %350, %351 : vector<16x32xf32>
    %353 = arith.addf %253, %352 : vector<16x32xf32>
    %c1_138 = arith.constant 1 : index
    %c3_139 = arith.constant 3 : index
    %c0_140 = arith.constant 0 : index
    %354 = vector.load %arg8[%c1_138, %c3_139, %c0_140] : memref<2x15x64xf32, #tpu.memory_space<vmem>>, vector<1x1x32xf32>
    %355 = vector.shape_cast %354 : vector<1x1x32xf32> to vector<1x32xf32>
    %c1_141 = arith.constant 1 : index
    %c4_142 = arith.constant 4 : index
    %c0_143 = arith.constant 0 : index
    %356 = vector.load %arg8[%c1_141, %c4_142, %c0_143] : memref<2x15x64xf32, #tpu.memory_space<vmem>>, vector<1x1x32xf32>
    %357 = vector.shape_cast %356 : vector<1x1x32xf32> to vector<1x32xf32>
    %cst_144 = arith.constant dense<0.000000e+00> : vector<16xf32>
    %358 = vector.multi_reduction <add>, %353, %cst_144 [1] : vector<16x32xf32> to vector<16xf32>
    %359 = vector.shape_cast %358 : vector<16xf32> to vector<16x1xf32>
    %cst_145 = arith.constant 3.200000e+01 : f32
    %360 = vector.broadcast %cst_145 : f32 to vector<16x1xf32>
    %361 = arith.divf %359, %360 : vector<16x1xf32>
    %362 = vector.broadcast %361 : vector<16x1xf32> to vector<16x32xf32>
    %363 = arith.subf %353, %362 : vector<16x32xf32>
    %364 = arith.mulf %363, %363 : vector<16x32xf32>
    %cst_146 = arith.constant dense<0.000000e+00> : vector<16xf32>
    %365 = vector.multi_reduction <add>, %364, %cst_146 [1] : vector<16x32xf32> to vector<16xf32>
    %366 = vector.shape_cast %365 : vector<16xf32> to vector<16x1xf32>
    %cst_147 = arith.constant 3.200000e+01 : f32
    %367 = vector.broadcast %cst_147 : f32 to vector<16x1xf32>
    %368 = arith.divf %366, %367 : vector<16x1xf32>
    %369 = vector.broadcast %361 : vector<16x1xf32> to vector<16x32xf32>
    %370 = arith.subf %353, %369 : vector<16x32xf32>
    %cst_148 = arith.constant 9.99999974E-6 : f32
    %371 = vector.broadcast %cst_148 : f32 to vector<16x1xf32>
    %372 = arith.addf %368, %371 : vector<16x1xf32>
    %373 = math.rsqrt %372 : vector<16x1xf32>
    %374 = vector.broadcast %373 : vector<16x1xf32> to vector<16x32xf32>
    %375 = arith.mulf %370, %374 : vector<16x32xf32>
    %376 = vector.broadcast %355 : vector<1x32xf32> to vector<16x32xf32>
    %377 = arith.mulf %375, %376 : vector<16x32xf32>
    %378 = vector.broadcast %357 : vector<1x32xf32> to vector<16x32xf32>
    %379 = arith.addf %377, %378 : vector<16x32xf32>
    %380 = arith.addf %379, %1 : vector<16x32xf32>
    %c1_149 = arith.constant 1 : index
    %c0_150 = arith.constant 0 : index
    %c128_151 = arith.constant 128 : index
    %381 = vector.load %arg7[%c1_149, %c0_150, %c128_151] : memref<2x32x384xf32, #tpu.memory_space<vmem>>, vector<1x32x32xf32>
    %382 = vector.shape_cast %381 : vector<1x32x32xf32> to vector<32x32xf32>
    %cst_152 = arith.constant dense<0.000000e+00> : vector<16x32xf32>
    %383 = tpu.matmul %380, %382, %cst_152 {dimension_numbers = #tpu.dot_dimension_numbers<[1], [0], [0], [1], [0, 0, 1, 1], [], []>} : vector<16x32xf32>, vector<32x32xf32>, vector<16x32xf32> -> vector<16x32xf32>
    %c1_153 = arith.constant 1 : index
    %c5_154 = arith.constant 5 : index
    %c0_155 = arith.constant 0 : index
    %384 = vector.load %arg8[%c1_153, %c5_154, %c0_155] : memref<2x15x64xf32, #tpu.memory_space<vmem>>, vector<1x1x32xf32>
    %385 = vector.shape_cast %384 : vector<1x1x32xf32> to vector<1x32xf32>
    %386 = vector.broadcast %385 : vector<1x32xf32> to vector<16x32xf32>
    %387 = arith.addf %383, %386 : vector<16x32xf32>
    %c1_156 = arith.constant 1 : index
    %c0_157 = arith.constant 0 : index
    %c160_158 = arith.constant 160 : index
    %388 = vector.load %arg7[%c1_156, %c0_157, %c160_158] : memref<2x32x384xf32, #tpu.memory_space<vmem>>, vector<1x32x32xf32>
    %389 = vector.shape_cast %388 : vector<1x32x32xf32> to vector<32x32xf32>
    %cst_159 = arith.constant dense<0.000000e+00> : vector<32x32xf32>
    %390 = tpu.matmul %4, %389, %cst_159 {dimension_numbers = #tpu.dot_dimension_numbers<[1], [0], [0], [1], [0, 0, 1, 1], [], []>} : vector<32x32xf32>, vector<32x32xf32>, vector<32x32xf32> -> vector<32x32xf32>
    %c1_160 = arith.constant 1 : index
    %c6_161 = arith.constant 6 : index
    %c0_162 = arith.constant 0 : index
    %391 = vector.load %arg8[%c1_160, %c6_161, %c0_162] : memref<2x15x64xf32, #tpu.memory_space<vmem>>, vector<1x1x32xf32>
    %392 = vector.shape_cast %391 : vector<1x1x32xf32> to vector<1x32xf32>
    %393 = vector.broadcast %392 : vector<1x32xf32> to vector<32x32xf32>
    %394 = arith.addf %390, %393 : vector<32x32xf32>
    %c1_163 = arith.constant 1 : index
    %c0_164 = arith.constant 0 : index
    %c192_165 = arith.constant 192 : index
    %395 = vector.load %arg7[%c1_163, %c0_164, %c192_165] : memref<2x32x384xf32, #tpu.memory_space<vmem>>, vector<1x32x32xf32>
    %396 = vector.shape_cast %395 : vector<1x32x32xf32> to vector<32x32xf32>
    %cst_166 = arith.constant dense<0.000000e+00> : vector<32x32xf32>
    %397 = tpu.matmul %5, %396, %cst_166 {dimension_numbers = #tpu.dot_dimension_numbers<[1], [0], [0], [1], [0, 0, 1, 1], [], []>} : vector<32x32xf32>, vector<32x32xf32>, vector<32x32xf32> -> vector<32x32xf32>
    %c1_167 = arith.constant 1 : index
    %c7_168 = arith.constant 7 : index
    %c0_169 = arith.constant 0 : index
    %398 = vector.load %arg8[%c1_167, %c7_168, %c0_169] : memref<2x15x64xf32, #tpu.memory_space<vmem>>, vector<1x1x32xf32>
    %399 = vector.shape_cast %398 : vector<1x1x32xf32> to vector<1x32xf32>
    %400 = vector.broadcast %399 : vector<1x32xf32> to vector<32x32xf32>
    %401 = arith.addf %397, %400 : vector<32x32xf32>
    %c1_170 = arith.constant 1 : index
    %c0_171 = arith.constant 0 : index
    %c224_172 = arith.constant 224 : index
    %402 = vector.load %arg7[%c1_170, %c0_171, %c224_172] : memref<2x32x384xf32, #tpu.memory_space<vmem>>, vector<1x32x32xf32>
    %403 = vector.shape_cast %402 : vector<1x32x32xf32> to vector<32x32xf32>
    %404 = vector.shape_cast %403 : vector<32x32xf32> to vector<4x8x32xf32>
    %c1_173 = arith.constant 1 : index
    %c8_174 = arith.constant 8 : index
    %c0_175 = arith.constant 0 : index
    %405 = vector.load %arg8[%c1_173, %c8_174, %c0_175] : memref<2x15x64xf32, #tpu.memory_space<vmem>>, vector<1x1x32xf32>
    %406 = vector.shape_cast %405 : vector<1x1x32xf32> to vector<1x32xf32>
    %407 = vector.extract_strided_slice %387 {offsets = [0, 0], sizes = [16, 8], strides = [1, 1]} : vector<16x32xf32> to vector<16x8xf32>
    %408 = vector.extract_strided_slice %387 {offsets = [0, 8], sizes = [16, 8], strides = [1, 1]} : vector<16x32xf32> to vector<16x8xf32>
    %409 = vector.extract_strided_slice %387 {offsets = [0, 16], sizes = [16, 8], strides = [1, 1]} : vector<16x32xf32> to vector<16x8xf32>
    %410 = vector.extract_strided_slice %387 {offsets = [0, 24], sizes = [16, 8], strides = [1, 1]} : vector<16x32xf32> to vector<16x8xf32>
    %411 = vector.shape_cast %407 : vector<16x8xf32> to vector<1x16x8xf32>
    %412 = vector.shape_cast %408 : vector<16x8xf32> to vector<1x16x8xf32>
    %413 = vector.shape_cast %409 : vector<16x8xf32> to vector<1x16x8xf32>
    %414 = vector.shape_cast %410 : vector<16x8xf32> to vector<1x16x8xf32>
    %415 = tpu.concatenate %411, %412, %413, %414 in 0 : vector<1x16x8xf32>, vector<1x16x8xf32>, vector<1x16x8xf32>, vector<1x16x8xf32> -> vector<4x16x8xf32>
    %416 = vector.extract_strided_slice %394 {offsets = [0, 0], sizes = [32, 8], strides = [1, 1]} : vector<32x32xf32> to vector<32x8xf32>
    %417 = vector.extract_strided_slice %394 {offsets = [0, 8], sizes = [32, 8], strides = [1, 1]} : vector<32x32xf32> to vector<32x8xf32>
    %418 = vector.extract_strided_slice %394 {offsets = [0, 16], sizes = [32, 8], strides = [1, 1]} : vector<32x32xf32> to vector<32x8xf32>
    %419 = vector.extract_strided_slice %394 {offsets = [0, 24], sizes = [32, 8], strides = [1, 1]} : vector<32x32xf32> to vector<32x8xf32>
    %420 = vector.shape_cast %416 : vector<32x8xf32> to vector<1x32x8xf32>
    %421 = vector.shape_cast %417 : vector<32x8xf32> to vector<1x32x8xf32>
    %422 = vector.shape_cast %418 : vector<32x8xf32> to vector<1x32x8xf32>
    %423 = vector.shape_cast %419 : vector<32x8xf32> to vector<1x32x8xf32>
    %424 = tpu.concatenate %420, %421, %422, %423 in 0 : vector<1x32x8xf32>, vector<1x32x8xf32>, vector<1x32x8xf32>, vector<1x32x8xf32> -> vector<4x32x8xf32>
    %425 = vector.extract_strided_slice %401 {offsets = [0, 0], sizes = [32, 8], strides = [1, 1]} : vector<32x32xf32> to vector<32x8xf32>
    %426 = vector.extract_strided_slice %401 {offsets = [0, 8], sizes = [32, 8], strides = [1, 1]} : vector<32x32xf32> to vector<32x8xf32>
    %427 = vector.extract_strided_slice %401 {offsets = [0, 16], sizes = [32, 8], strides = [1, 1]} : vector<32x32xf32> to vector<32x8xf32>
    %428 = vector.extract_strided_slice %401 {offsets = [0, 24], sizes = [32, 8], strides = [1, 1]} : vector<32x32xf32> to vector<32x8xf32>
    %429 = vector.shape_cast %425 : vector<32x8xf32> to vector<1x32x8xf32>
    %430 = vector.shape_cast %426 : vector<32x8xf32> to vector<1x32x8xf32>
    %431 = vector.shape_cast %427 : vector<32x8xf32> to vector<1x32x8xf32>
    %432 = vector.shape_cast %428 : vector<32x8xf32> to vector<1x32x8xf32>
    %433 = tpu.concatenate %429, %430, %431, %432 in 0 : vector<1x32x8xf32>, vector<1x32x8xf32>, vector<1x32x8xf32>, vector<1x32x8xf32> -> vector<4x32x8xf32>
    "tpu.trace_start"() <{level = 10 : i32, message = "hqd,hkd->hqk"}> : () -> ()
    %cst_176 = arith.constant dense<0.000000e+00> : vector<4x16x32xf32>
    %434 = tpu.matmul %415, %424, %cst_176 {dimension_numbers = #tpu.dot_dimension_numbers<[2], [2], [1], [1], [0, 0, 0, 1, 1, 1], [0], [0]>} : vector<4x16x8xf32>, vector<4x32x8xf32>, vector<4x16x32xf32> -> vector<4x16x32xf32>
    "tpu.trace_stop"() : () -> ()
    %435 = vector.shape_cast %7 : vector<16x32xf32> to vector<1x16x32xf32>
    %436 = vector.broadcast %435 : vector<1x16x32xf32> to vector<4x16x32xf32>
    %437 = arith.addf %434, %436 : vector<4x16x32xf32>
    %cst_177 = arith.constant dense<0xFF800000> : vector<4x16xf32>
    %438 = vector.multi_reduction <maximumf>, %437, %cst_177 [2] : vector<4x16x32xf32> to vector<4x16xf32>
    %439 = vector.shape_cast %438 : vector<4x16xf32> to vector<4x16x1xf32>
    %440 = vector.broadcast %439 : vector<4x16x1xf32> to vector<4x16x32xf32>
    %441 = arith.subf %437, %440 : vector<4x16x32xf32>
    %442 = math.exp %441 : vector<4x16x32xf32>
    %cst_178 = arith.constant dense<0.000000e+00> : vector<4x16xf32>
    %443 = vector.multi_reduction <add>, %442, %cst_178 [2] : vector<4x16x32xf32> to vector<4x16xf32>
    %444 = vector.shape_cast %443 : vector<4x16xf32> to vector<4x16x1xf32>
    %445 = tpu.reciprocal %444 {approx = true} : vector<4x16x1xf32> -> vector<4x16x1xf32>
    %446 = arith.mulf %444, %445 : vector<4x16x1xf32>
    %cst_179 = arith.constant 2.000000e+00 : f32
    %447 = vector.broadcast %cst_179 : f32 to vector<4x16x1xf32>
    %448 = arith.subf %447, %446 : vector<4x16x1xf32>
    %449 = arith.mulf %445, %448 : vector<4x16x1xf32>
    %450 = vector.broadcast %449 : vector<4x16x1xf32> to vector<4x16x32xf32>
    %451 = arith.mulf %442, %450 : vector<4x16x32xf32>
    "tpu.trace_start"() <{level = 10 : i32, message = "hqk,hkd->hqd"}> : () -> ()
    %cst_180 = arith.constant dense<0.000000e+00> : vector<4x16x8xf32>
    %452 = tpu.matmul %451, %433, %cst_180 {dimension_numbers = #tpu.dot_dimension_numbers<[2], [1], [1], [2], [0, 0, 0, 1, 1, 2], [0], [0]>} : vector<4x16x32xf32>, vector<4x32x8xf32>, vector<4x16x8xf32> -> vector<4x16x8xf32>
    "tpu.trace_stop"() : () -> ()
    "tpu.trace_start"() <{level = 10 : i32, message = "hqd,hdo->hqo"}> : () -> ()
    %cst_181 = arith.constant dense<0.000000e+00> : vector<4x16x32xf32>
    %453 = tpu.matmul %452, %404, %cst_181 {dimension_numbers = #tpu.dot_dimension_numbers<[2], [1], [1], [2], [0, 0, 0, 1, 1, 2], [0], [0]>} : vector<4x16x8xf32>, vector<4x8x32xf32>, vector<4x16x32xf32> -> vector<4x16x32xf32>
    "tpu.trace_stop"() : () -> ()
    %cst_182 = arith.constant dense<0.000000e+00> : vector<16x32xf32>
    %454 = vector.multi_reduction <add>, %453, %cst_182 [0] : vector<4x16x32xf32> to vector<16x32xf32>
    %455 = vector.broadcast %406 : vector<1x32xf32> to vector<16x32xf32>
    %456 = arith.addf %454, %455 : vector<16x32xf32>
    %457 = arith.addf %379, %456 : vector<16x32xf32>
    %c1_183 = arith.constant 1 : index
    %c9_184 = arith.constant 9 : index
    %c0_185 = arith.constant 0 : index
    %458 = vector.load %arg8[%c1_183, %c9_184, %c0_185] : memref<2x15x64xf32, #tpu.memory_space<vmem>>, vector<1x1x32xf32>
    %459 = vector.shape_cast %458 : vector<1x1x32xf32> to vector<1x32xf32>
    %c1_186 = arith.constant 1 : index
    %c10_187 = arith.constant 10 : index
    %c0_188 = arith.constant 0 : index
    %460 = vector.load %arg8[%c1_186, %c10_187, %c0_188] : memref<2x15x64xf32, #tpu.memory_space<vmem>>, vector<1x1x32xf32>
    %461 = vector.shape_cast %460 : vector<1x1x32xf32> to vector<1x32xf32>
    %cst_189 = arith.constant dense<0.000000e+00> : vector<16xf32>
    %462 = vector.multi_reduction <add>, %457, %cst_189 [1] : vector<16x32xf32> to vector<16xf32>
    %463 = vector.shape_cast %462 : vector<16xf32> to vector<16x1xf32>
    %cst_190 = arith.constant 3.200000e+01 : f32
    %464 = vector.broadcast %cst_190 : f32 to vector<16x1xf32>
    %465 = arith.divf %463, %464 : vector<16x1xf32>
    %466 = vector.broadcast %465 : vector<16x1xf32> to vector<16x32xf32>
    %467 = arith.subf %457, %466 : vector<16x32xf32>
    %468 = arith.mulf %467, %467 : vector<16x32xf32>
    %cst_191 = arith.constant dense<0.000000e+00> : vector<16xf32>
    %469 = vector.multi_reduction <add>, %468, %cst_191 [1] : vector<16x32xf32> to vector<16xf32>
    %470 = vector.shape_cast %469 : vector<16xf32> to vector<16x1xf32>
    %cst_192 = arith.constant 3.200000e+01 : f32
    %471 = vector.broadcast %cst_192 : f32 to vector<16x1xf32>
    %472 = arith.divf %470, %471 : vector<16x1xf32>
    %473 = vector.broadcast %465 : vector<16x1xf32> to vector<16x32xf32>
    %474 = arith.subf %457, %473 : vector<16x32xf32>
    %cst_193 = arith.constant 9.99999974E-6 : f32
    %475 = vector.broadcast %cst_193 : f32 to vector<16x1xf32>
    %476 = arith.addf %472, %475 : vector<16x1xf32>
    %477 = math.rsqrt %476 : vector<16x1xf32>
    %478 = vector.broadcast %477 : vector<16x1xf32> to vector<16x32xf32>
    %479 = arith.mulf %474, %478 : vector<16x32xf32>
    %480 = vector.broadcast %459 : vector<1x32xf32> to vector<16x32xf32>
    %481 = arith.mulf %479, %480 : vector<16x32xf32>
    %482 = vector.broadcast %461 : vector<1x32xf32> to vector<16x32xf32>
    %483 = arith.addf %481, %482 : vector<16x32xf32>
    %c1_194 = arith.constant 1 : index
    %c0_195 = arith.constant 0 : index
    %c256_196 = arith.constant 256 : index
    %484 = vector.load %arg7[%c1_194, %c0_195, %c256_196] : memref<2x32x384xf32, #tpu.memory_space<vmem>>, vector<1x32x64xf32>
    %485 = vector.shape_cast %484 : vector<1x32x64xf32> to vector<32x64xf32>
    %cst_197 = arith.constant dense<0.000000e+00> : vector<16x64xf32>
    %486 = tpu.matmul %483, %485, %cst_197 {dimension_numbers = #tpu.dot_dimension_numbers<[1], [0], [0], [1], [0, 0, 1, 1], [], []>} : vector<16x32xf32>, vector<32x64xf32>, vector<16x64xf32> -> vector<16x64xf32>
    %c1_198 = arith.constant 1 : index
    %c11_199 = arith.constant 11 : index
    %c0_200 = arith.constant 0 : index
    %487 = vector.load %arg8[%c1_198, %c11_199, %c0_200] : memref<2x15x64xf32, #tpu.memory_space<vmem>>, vector<1x1x64xf32>
    %488 = vector.shape_cast %487 : vector<1x1x64xf32> to vector<1x64xf32>
    %489 = vector.broadcast %488 : vector<1x64xf32> to vector<16x64xf32>
    %490 = arith.addf %486, %489 : vector<16x64xf32>
    %cst_201 = arith.constant 0.000000e+00 : f32
    %491 = vector.broadcast %cst_201 : f32 to vector<16x64xf32>
    %492 = arith.maximumf %490, %491 : vector<16x64xf32>
    %c1_202 = arith.constant 1 : index
    %c0_203 = arith.constant 0 : index
    %c320_204 = arith.constant 320 : index
    %493 = vector.load %arg7[%c1_202, %c0_203, %c320_204] : memref<2x32x384xf32, #tpu.memory_space<vmem>>, vector<1x32x64xf32>
    %494 = vector.shape_cast %493 : vector<1x32x64xf32> to vector<32x64xf32>
    %cst_205 = arith.constant dense<0.000000e+00> : vector<16x32xf32>
    %495 = tpu.matmul %492, %494, %cst_205 {dimension_numbers = #tpu.dot_dimension_numbers<[1], [1], [0], [0], [0, 0, 1, 0], [], []>} : vector<16x64xf32>, vector<32x64xf32>, vector<16x32xf32> -> vector<16x32xf32>
    %c1_206 = arith.constant 1 : index
    %c12_207 = arith.constant 12 : index
    %c0_208 = arith.constant 0 : index
    %496 = vector.load %arg8[%c1_206, %c12_207, %c0_208] : memref<2x15x64xf32, #tpu.memory_space<vmem>>, vector<1x1x32xf32>
    %497 = vector.shape_cast %496 : vector<1x1x32xf32> to vector<1x32xf32>
    %498 = vector.broadcast %497 : vector<1x32xf32> to vector<16x32xf32>
    %499 = arith.addf %495, %498 : vector<16x32xf32>
    %500 = arith.addf %483, %499 : vector<16x32xf32>
    %c1_209 = arith.constant 1 : index
    %c13_210 = arith.constant 13 : index
    %c0_211 = arith.constant 0 : index
    %501 = vector.load %arg8[%c1_209, %c13_210, %c0_211] : memref<2x15x64xf32, #tpu.memory_space<vmem>>, vector<1x1x32xf32>
    %502 = vector.shape_cast %501 : vector<1x1x32xf32> to vector<1x32xf32>
    %c1_212 = arith.constant 1 : index
    %c14_213 = arith.constant 14 : index
    %c0_214 = arith.constant 0 : index
    %503 = vector.load %arg8[%c1_212, %c14_213, %c0_214] : memref<2x15x64xf32, #tpu.memory_space<vmem>>, vector<1x1x32xf32>
    %504 = vector.shape_cast %503 : vector<1x1x32xf32> to vector<1x32xf32>
    %cst_215 = arith.constant dense<0.000000e+00> : vector<16xf32>
    %505 = vector.multi_reduction <add>, %500, %cst_215 [1] : vector<16x32xf32> to vector<16xf32>
    %506 = vector.shape_cast %505 : vector<16xf32> to vector<16x1xf32>
    %cst_216 = arith.constant 3.200000e+01 : f32
    %507 = vector.broadcast %cst_216 : f32 to vector<16x1xf32>
    %508 = arith.divf %506, %507 : vector<16x1xf32>
    %509 = vector.broadcast %508 : vector<16x1xf32> to vector<16x32xf32>
    %510 = arith.subf %500, %509 : vector<16x32xf32>
    %511 = arith.mulf %510, %510 : vector<16x32xf32>
    %cst_217 = arith.constant dense<0.000000e+00> : vector<16xf32>
    %512 = vector.multi_reduction <add>, %511, %cst_217 [1] : vector<16x32xf32> to vector<16xf32>
    %513 = vector.shape_cast %512 : vector<16xf32> to vector<16x1xf32>
    %cst_218 = arith.constant 3.200000e+01 : f32
    %514 = vector.broadcast %cst_218 : f32 to vector<16x1xf32>
    %515 = arith.divf %513, %514 : vector<16x1xf32>
    %516 = vector.broadcast %508 : vector<16x1xf32> to vector<16x32xf32>
    %517 = arith.subf %500, %516 : vector<16x32xf32>
    %cst_219 = arith.constant 9.99999974E-6 : f32
    %518 = vector.broadcast %cst_219 : f32 to vector<16x1xf32>
    %519 = arith.addf %515, %518 : vector<16x1xf32>
    %520 = math.rsqrt %519 : vector<16x1xf32>
    %521 = vector.broadcast %520 : vector<16x1xf32> to vector<16x32xf32>
    %522 = arith.mulf %517, %521 : vector<16x32xf32>
    %523 = vector.broadcast %502 : vector<1x32xf32> to vector<16x32xf32>
    %524 = arith.mulf %522, %523 : vector<16x32xf32>
    %525 = vector.broadcast %504 : vector<1x32xf32> to vector<16x32xf32>
    %526 = arith.addf %524, %525 : vector<16x32xf32>
    %c0_220 = arith.constant 0 : index
    %c0_221 = arith.constant 0 : index
    %527 = vector.load %arg9[%c0_220, %c0_221] : memref<1x32xf32, #tpu.memory_space<vmem>>, vector<1x32xf32>
    %c0_222 = arith.constant 0 : index
    %c0_223 = arith.constant 0 : index
    %528 = vector.load %arg10[%c0_222, %c0_223] : memref<1x32xf32, #tpu.memory_space<vmem>>, vector<1x32xf32>
    %cst_224 = arith.constant dense<0.000000e+00> : vector<16xf32>
    %529 = vector.multi_reduction <add>, %526, %cst_224 [1] : vector<16x32xf32> to vector<16xf32>
    %530 = vector.shape_cast %529 : vector<16xf32> to vector<16x1xf32>
    %cst_225 = arith.constant 3.200000e+01 : f32
    %531 = vector.broadcast %cst_225 : f32 to vector<16x1xf32>
    %532 = arith.divf %530, %531 : vector<16x1xf32>
    %533 = vector.broadcast %532 : vector<16x1xf32> to vector<16x32xf32>
    %534 = arith.subf %526, %533 : vector<16x32xf32>
    %535 = arith.mulf %534, %534 : vector<16x32xf32>
    %cst_226 = arith.constant dense<0.000000e+00> : vector<16xf32>
    %536 = vector.multi_reduction <add>, %535, %cst_226 [1] : vector<16x32xf32> to vector<16xf32>
    %537 = vector.shape_cast %536 : vector<16xf32> to vector<16x1xf32>
    %cst_227 = arith.constant 3.200000e+01 : f32
    %538 = vector.broadcast %cst_227 : f32 to vector<16x1xf32>
    %539 = arith.divf %537, %538 : vector<16x1xf32>
    %540 = vector.broadcast %532 : vector<16x1xf32> to vector<16x32xf32>
    %541 = arith.subf %526, %540 : vector<16x32xf32>
    %cst_228 = arith.constant 9.99999974E-6 : f32
    %542 = vector.broadcast %cst_228 : f32 to vector<16x1xf32>
    %543 = arith.addf %539, %542 : vector<16x1xf32>
    %544 = math.rsqrt %543 : vector<16x1xf32>
    %545 = vector.broadcast %544 : vector<16x1xf32> to vector<16x32xf32>
    %546 = arith.mulf %541, %545 : vector<16x32xf32>
    %547 = vector.broadcast %527 : vector<1x32xf32> to vector<16x32xf32>
    %548 = arith.mulf %546, %547 : vector<16x32xf32>
    %549 = vector.broadcast %528 : vector<1x32xf32> to vector<16x32xf32>
    %550 = arith.addf %548, %549 : vector<16x32xf32>
    %c1_229 = arith.constant 1 : index
    %c0_230 = arith.constant 0 : index
    %c0_231 = arith.constant 0 : index
    %551 = vector.load %arg11[%c1_229, %c0_230, %c0_231] : memref<2x16x32xf32, #tpu.memory_space<vmem>>, vector<1x16x32xf32>
    %552 = vector.shape_cast %551 : vector<1x16x32xf32> to vector<16x32xf32>
    %553 = vector.shape_cast %550 : vector<16x32xf32> to vector<1x16x32xf32>
    tpu.vector_store %arg11[%c1_229, %c0_230, %c0_231], %553 {strides = array<i32>} : memref<2x16x32xf32, #tpu.memory_space<vmem>>, vector<1x16x32xf32>,
    return
  }
}

</mosaic_0001>

<llo_original>
// kernel: eq.25
$region0: #{eq.25}
  %s0 = inlined_call_operand.vmem [shape: s32[2,16], index: 0, kind: input, shape index: {}]
  %s1 = inlined_call_operand.vmem [shape: s32[32], index: 1, kind: output, shape index: {}]
  $region1: #{eq.25} parent=0
    #allocation0 [shape = 'u8[4096]{0}', space=vmem, size = 0x1000, scoped, tag = 'scoped mem for output reshape']
    #allocation1 [shape = 'u8[4096]{0}', space=vmem, size = 0x1000, scoped, tag = 'scoped mem for input reshape']
    %s3 = ssub.s32 4, 1
    %v4 = vld [vmem:[%s0] sm:%s3]
    %5 = vst [vmem:[#allocation1] sm:%s3] %v4
    %v6 = vld [vmem:[#allocation1] sm:$0x1]
    %vm7 = vcmask 130048
    %8 = vst.msk [vmem:[#allocation0] sm:$0x1] %vm7, %v6
    %s9 = scalar_lea.vmem [#allocation1], 1
    %v10 = vld [vmem:[%s9] sm:$0x1]
    %11 = vrot.lane.b32.xlu0 %v10, 16
    %v12 = vpop.permute.xlu0 %11
    %vm13 = vcmask 261248
    %14 = vst.msk [vmem:[#allocation0] sm:$0x1] %vm13, %v12
    %s16 = ssub.s32 2, 1
    %v17 = vld [vmem:[#allocation0] sm:%s16]
    %s19 = ssub.s32 2, 1
    %20 = vst [vmem:[%s1] sm:%s19] %v17

// kernel: eq.15
$region0: #{eq.15}
  %s0 = inlined_call_operand.vmem [shape: s32[2,8], index: 0, kind: input, shape index: {}]
  %s1 = inlined_call_operand.vmem [shape: s32[16], index: 1, kind: output, shape index: {}]
  $region1: #{eq.15} parent=0
    #allocation0 [shape = 'u8[4096]{0}', space=vmem, size = 0x1000, scoped, tag = 'scoped mem for output reshape']
    #allocation1 [shape = 'u8[4096]{0}', space=vmem, size = 0x1000, scoped, tag = 'scoped mem for input reshape']
    %s3 = ssub.s32 4, 1
    %v4 = vld [vmem:[%s0] sm:%s3]
    %5 = vst [vmem:[#allocation1] sm:%s3] %v4
    %v6 = vld [vmem:[#allocation1] sm:$0x1]
    %vm7 = vcmask 64512
    %8 = vst.msk [vmem:[#allocation0] sm:$0x1] %vm7, %v6
    %s9 = scalar_lea.vmem [#allocation1], 1
    %v10 = vld [vmem:[%s9] sm:$0x1]
    %11 = vrot.lane.b32.xlu0 %v10, 8
    %v12 = vpop.permute.xlu0 %11
    %vm13 = vcmask 130112
    %14 = vst.msk [vmem:[#allocation0] sm:$0x1] %vm13, %v12
    %s16 = ssub.s32 2, 1
    %v17 = vld [vmem:[#allocation0] sm:%s16]
    %s19 = ssub.s32 2, 1
    %20 = vst [vmem:[%s1] sm:%s19] %v17

// kernel: detr_decoder_forward.1
$region0: #{detr_decoder_forward.1}
  #allocation0 [shape = 'u32[]', space=smem, size = 0x4, offset = 0x4, fixed_abs, tag = 'smem constant byte address 0x4 - core index']
  #allocation1 [shape = 'u32[72,128]{1,0:T(1,128)}', space=vmem, size = 0x9000, scoped, tag = 'internal scratch']
  %s0 = inlined_call_operand.vmem [shape: f32[16,32], index: 0, kind: input, shape index: {}]
  %s1 = inlined_call_operand.hbm [shape: f32[16,32], index: 1, kind: input, shape index: {}]
  %s2 = inlined_call_operand.vmem [shape: f32[32,32], index: 2, kind: input, shape index: {}]
  %s3 = inlined_call_operand.vmem [shape: f32[32,32], index: 3, kind: input, shape index: {}]
  %s4 = inlined_call_operand.hbm [shape: f32[32,32], index: 4, kind: input, shape index: {}]
  %s5 = inlined_call_operand.vmem [shape: f32[16,16], index: 5, kind: input, shape index: {}]
  %s6 = inlined_call_operand.vmem [shape: f32[16,32], index: 6, kind: input, shape index: {}]
  %s7 = inlined_call_operand.hbm [shape: f32[2,32,384], index: 7, kind: input, shape index: {}]
  %s8 = inlined_call_operand.vmem [shape: f32[2,15,64], index: 8, kind: input, shape index: {}]
  %s9 = inlined_call_operand.vmem [shape: f32[1,32], index: 9, kind: input, shape index: {}]
  %s10 = inlined_call_operand.vmem [shape: f32[1,32], index: 10, kind: input, shape index: {}]
  %s11 = inlined_call_operand.hbm [shape: f32[2,16,32], index: 11, kind: output, shape index: {}]
  %s12 = sld [smem:[#allocation0]]
  $region66: #{detr_decoder_forward.1} parent=0
    _
  %s14 = ssub.s32 1, %s12
  %s15 = scalar_select 0, %s14, %s12
  $region1: #{detr_decoder_forward.1} parent=0
    #allocation2 [shape = 'u8[8192]{0}', space=vmem, size = 0x2000, scoped, tag = 'input window, operand 1, single buffered']
    #allocation3 [shape = 's32[1]{0}', space=sflag, size = 0x4, scoped, tag = 'scoped memory for detr_decoder_forward.1']
    #allocation4 [shape = 's32[1]{0}', space=sflag, size = 0x4, scoped, tag = 'scoped memory for detr_decoder_forward.1']
    #allocation5 [shape = 'u8[16384]{0}', space=vmem, size = 0x4000, scoped, tag = 'input window, operand 4, single buffered']
    #allocation6 [shape = 's32[1]{0}', space=sflag, size = 0x4, scoped, tag = 'scoped memory for detr_decoder_forward.1']
    #allocation7 [shape = 'u8[98304]{0}', space=vmem, size = 0x18000, scoped, tag = 'input window, operand 7, single buffered']
    #allocation8 [shape = 'u8[16384]{0}', space=vmem, size = 0x4000, scoped, tag = 'output window, operand 0, single buffered']
    %16 = vsyncpa [#allocation3], 0
    %17 = vsyncpa [#allocation6], 0
    %18 = vsyncpa [#allocation4], 0
    // Predicated region
    $region2: #{detr_decoder_forward.1} parent=1 // pred_check
      _
    $region3: #{detr_decoder_forward.1} parent=1 // pred_check_branch
      %20 = sbr.rel (0) target = $region5
    $region4: #{detr_decoder_forward.1} parent=1 // pred_region
      _
    $region5: #{detr_decoder_forward.1} parent=1 // pred_fallthru
      _
    // Predicated region
    $region6: #{detr_decoder_forward.1} parent=1 // pred_check
      _
    $region7: #{detr_decoder_forward.1} parent=1 // pred_check_branch
      %22 = sbr.rel (0) target = $region9
    $region8: #{detr_decoder_forward.1} parent=1 // pred_region
      %24 = vsyncadd [#allocation3], 0
      %s25 = sshll.u32 %s1, 4
      %s26 = int_to_ptr.hbm [resolvable:$true] %s25
      %s27 = sshll.u32 [#allocation2], 4
      %s28 = int_to_ptr.vmem [resolvable:$true] %s27
      %33 = dma.hbm_to_vmem [thread:$0]  %s26, 256, %s28, [#allocation3], 128, 128, 8
    $region9: #{detr_decoder_forward.1} parent=1 // pred_fallthru
      _
    // Predicated region
    $region10: #{detr_decoder_forward.1} parent=1 // pred_check
      _
    $region11: #{detr_decoder_forward.1} parent=1 // pred_check_branch
      %35 = sbr.rel (0) target = $region13
    $region12: #{detr_decoder_forward.1} parent=1 // pred_region
      _
    $region13: #{detr_decoder_forward.1} parent=1 // pred_fallthru
      _
    // Predicated region
    $region14: #{detr_decoder_forward.1} parent=1 // pred_check
      _
    $region15: #{detr_decoder_forward.1} parent=1 // pred_check_branch
      %37 = sbr.rel (0) target = $region17
    $region16: #{detr_decoder_forward.1} parent=1 // pred_region
      _
    $region17: #{detr_decoder_forward.1} parent=1 // pred_fallthru
      _
    // Predicated region
    $region18: #{detr_decoder_forward.1} parent=1 // pred_check
      _
    $region19: #{detr_decoder_forward.1} parent=1 // pred_check_branch
      %39 = sbr.rel (0) target = $region21
    $region20: #{detr_decoder_forward.1} parent=1 // pred_region
      %41 = vsyncadd [#allocation6], 0
      %s42 = sshll.u32 %s4, 4
      %s43 = int_to_ptr.hbm [resolvable:$true] %s42
      %s44 = sshll.u32 [#allocation5], 4
      %s45 = int_to_ptr.vmem [resolvable:$true] %s44
      %50 = dma.hbm_to_vmem [thread:$0]  %s43, 512, %s45, [#allocation6], 128, 128, 8
    $region21: #{detr_decoder_forward.1} parent=1 // pred_fallthru
      _
    // Predicated region
    $region22: #{detr_decoder_forward.1} parent=1 // pred_check
      _
    $region23: #{detr_decoder_forward.1} parent=1 // pred_check_branch
      %52 = sbr.rel (0) target = $region25
    $region24: #{detr_decoder_forward.1} parent=1 // pred_region
      _
    $region25: #{detr_decoder_forward.1} parent=1 // pred_fallthru
      _
    // Predicated region
    $region26: #{detr_decoder_forward.1} parent=1 // pred_check
      _
    $region27: #{detr_decoder_forward.1} parent=1 // pred_check_branch
      %54 = sbr.rel (0) target = $region29
    $region28: #{detr_decoder_forward.1} parent=1 // pred_region
      _
    $region29: #{detr_decoder_forward.1} parent=1 // pred_fallthru
      _
    // Predicated region
    $region30: #{detr_decoder_forward.1} parent=1 // pred_check
      _
    $region31: #{detr_decoder_forward.1} parent=1 // pred_check_branch
      %56 = sbr.rel (0) target = $region33
    $region32: #{detr_decoder_forward.1} parent=1 // pred_region
      %58 = vsyncadd [#allocation6], 0
      %s59 = sshll.u32 %s7, 4
      %s60 = int_to_ptr.hbm [resolvable:$true] %s59
      %s61 = sshll.u32 [#allocation7], 4
      %s62 = int_to_ptr.vmem [resolvable:$true] %s61
      %67 = dma.hbm_to_vmem [thread:$0]  %s60, 3072, %s62, [#allocation6], 384, 384, 24
    $region33: #{detr_decoder_forward.1} parent=1 // pred_fallthru
      _
    // Predicated region
    $region34: #{detr_decoder_forward.1} parent=1 // pred_check
      _
    $region35: #{detr_decoder_forward.1} parent=1 // pred_check_branch
      %69 = sbr.rel (0) target = $region37
    $region36: #{detr_decoder_forward.1} parent=1 // pred_region
      _
    $region37: #{detr_decoder_forward.1} parent=1 // pred_fallthru
      _
    // Predicated region
    $region38: #{detr_decoder_forward.1} parent=1 // pred_check
      _
    $region39: #{detr_decoder_forward.1} parent=1 // pred_check_branch
      %71 = sbr.rel (0) target = $region41
    $region40: #{detr_decoder_forward.1} parent=1 // pred_region
      _
    $region41: #{detr_decoder_forward.1} parent=1 // pred_fallthru
      _
    // Predicated region
    $region42: #{detr_decoder_forward.1} parent=1 // pred_check
      _
    $region43: #{detr_decoder_forward.1} parent=1 // pred_check_branch
      %73 = sbr.rel (0) target = $region45
    $region44: #{detr_decoder_forward.1} parent=1 // pred_region
      _
    $region45: #{detr_decoder_forward.1} parent=1 // pred_fallthru
      _
    // Predicated region
    $region46: #{detr_decoder_forward.1} parent=1 // pred_check
      _
    $region47: #{detr_decoder_forward.1} parent=1 // pred_check_branch
      %75 = sbr.rel (0) target = $region49
    $region48: #{detr_decoder_forward.1} parent=1 // pred_region
      %77 = dma.done [#allocation3], 256
    $region49: #{detr_decoder_forward.1} parent=1 // pred_fallthru
      _
    // Predicated region
    $region50: #{detr_decoder_forward.1} parent=1 // pred_check
      _
    $region51: #{detr_decoder_forward.1} parent=1 // pred_check_branch
      %79 = sbr.rel (0) target = $region53
    $region52: #{detr_decoder_forward.1} parent=1 // pred_region
      %81 = dma.done [#allocation6], 512
    $region53: #{detr_decoder_forward.1} parent=1 // pred_fallthru
      _
    // Predicated region
    $region54: #{detr_decoder_forward.1} parent=1 // pred_check
      _
    $region55: #{detr_decoder_forward.1} parent=1 // pred_check_branch
      %83 = sbr.rel (0) target = $region57
    $region56: #{detr_decoder_forward.1} parent=1 // pred_region
      %85 = dma.done [#allocation6], 3072
    $region57: #{detr_decoder_forward.1} parent=1 // pred_fallthru
      _
    %v86 = vld [vmem:[%s0] sm:$0xff]
    %v87 = vld [vmem:[%s0 + $0x8] sm:$0xff]
    %v88 = vld [vmem:[#allocation2] sm:$0xff]
    %v89 = vld [vmem:[#allocation2 + $0x8] sm:$0xff]
    %v90 = vld [vmem:[%s2] sm:$0xff]
    %v91 = vld [vmem:[%s2 + $0x8] sm:$0xff]
    %v92 = vld [vmem:[%s2 + $0x10] sm:$0xff]
    %v93 = vld [vmem:[%s2 + $0x18] sm:$0xff]
    %v94 = vld [vmem:[#allocation5] sm:$0xff]
    %v95 = vld [vmem:[#allocation5 + $0x8] sm:$0xff]
    %v96 = vld [vmem:[#allocation5 + $0x10] sm:$0xff]
    %v97 = vld [vmem:[#allocation5 + $0x18] sm:$0xff]
    %v98 = vadd.f32 %v90, %v94
    %v99 = vadd.f32 %v91, %v95
    %v100 = vadd.f32 %v92, %v96
    %v101 = vadd.f32 %v93, %v97
    %v102 = vld [vmem:[%s3] sm:$0xff]
    %v103 = vld [vmem:[%s3 + $0x8] sm:$0xff]
    %v104 = vld [vmem:[%s3 + $0x10] sm:$0xff]
    %v105 = vld [vmem:[%s3 + $0x18] sm:$0xff]
    %v106 = vld [vmem:[%s5] sm:$0xff]
    %v107 = vld [vmem:[%s5 + $0x8] sm:$0xff]
    %v108 = vld [vmem:[%s6] sm:$0xff]
    %v109 = vld [vmem:[%s6 + $0x8] sm:$0xff]
    %v110 = vadd.f32 %v86, %v88
    %v111 = vadd.f32 %v87, %v89
    %v112 = vld [vmem:[#allocation7] sm:$0xff]
    %v113 = vld [vmem:[#allocation7 + $0x18] sm:$0xff]
    %v114 = vld [vmem:[#allocation7 + $0x30] sm:$0xff]
    %v115 = vld [vmem:[#allocation7 + $0x48] sm:$0xff]
    %v116 = vld [vmem:[%s8] sm:$0x1]
    %v117 = vperm.slane %v116, 0
    %vm118 = vcmask 261120
    %v120 = vsel %vm118, %v110, 0
    %v123 = vsel %vm118, %v111, 0
    %125 = vmatpush.msra.mxu0 0.0
    %126 = vmatpush.msra.mxu0 0.0
    %127 = vmatpush.msra.mxu0 0.0
    %128 = vmatpush.msra.mxu0 0.0
    %129 = vmatpush.msra.mxu0 0.0
    %130 = vmatpush.msra.mxu0 0.0
    %131 = vmatpush.msra.mxu0 0.0
    %132 = vmatpush.msra.mxu0 0.0
    %133 = vmatpush.msra.mxu0 0.0
    %134 = vmatpush.msra.mxu0 0.0
    %135 = vmatpush.msra.mxu0 0.0
    %136 = vmatpush.msra.mxu0 0.0
    %137 = vmatpush.msra.mxu0 %v115
    %138 = vmatpush.msra.mxu0 %v114
    %139 = vmatpush.msra.mxu0 %v113
    %140 = vmatpush.msra.mxu0 %v112
    %141 = vmatmul.f32.gmra.mxu0 %v120
    %v142 = vpop.f32.mrf.mxu0
    %v143 = vadd.f32 %v117, %v142
    %144 = vmatmul.f32.gmra.mxu0 %v123
    %v145 = vpop.f32.mrf.mxu0
    %v146 = vadd.f32 %v117, %v145
    %147 = vdwg.mxu0
    %v148 = vld [vmem:[%s8 + $0x1] sm:$0x1]
    %v149 = vperm.slane %v148, 0
    %154 = vrot.lane.b32.xlu0 %v112, 64
    %v155 = vpop.permute.xlu0 %154
    %156 = vrot.lane.b32.xlu0 %v113, 64
    %v157 = vpop.permute.xlu0 %156
    %158 = vrot.lane.b32.xlu0 %v114, 64
    %v159 = vpop.permute.xlu0 %158
    %160 = vrot.lane.b32.xlu0 %v115, 64
    %v161 = vpop.permute.xlu0 %160
    %v167 = vsel %vm118, %v86, 0
    %v170 = vsel %vm118, %v87, 0
    %172 = vmatpush.msra.mxu0 0.0
    %173 = vmatpush.msra.mxu0 0.0
    %174 = vmatpush.msra.mxu0 0.0
    %175 = vmatpush.msra.mxu0 0.0
    %176 = vmatpush.msra.mxu0 0.0
    %177 = vmatpush.msra.mxu0 0.0
    %178 = vmatpush.msra.mxu0 0.0
    %179 = vmatpush.msra.mxu0 0.0
    %180 = vmatpush.msra.mxu0 0.0
    %181 = vmatpush.msra.mxu0 0.0
    %182 = vmatpush.msra.mxu0 0.0
    %183 = vmatpush.msra.mxu0 0.0
    %184 = vmatpush.msra.mxu0 %v161
    %185 = vmatpush.msra.mxu0 %v159
    %186 = vmatpush.msra.mxu0 %v157
    %187 = vmatpush.msra.mxu0 %v155
    %188 = vmatmul.f32.gmra.mxu0 %v167
    %v189 = vpop.f32.mrf.mxu0
    %v190 = vadd.f32 %v149, %v189
    %191 = vmatmul.f32.gmra.mxu0 %v170
    %v192 = vpop.f32.mrf.mxu0
    %v193 = vadd.f32 %v149, %v192
    %194 = vdwg.mxu0
    %v195 = vld [vmem:[%s8 + $0x2] sm:$0x1]
    %198 = vrot.lane.b32.xlu0 %v143, 120
    %v199 = vpop.permute.xlu0 %198
    %200 = vrot.lane.b32.xlu0 %v146, 120
    %v201 = vpop.permute.xlu0 %200
    %202 = vrot.lane.b32.xlu0 %v143, 112
    %v203 = vpop.permute.xlu0 %202
    %204 = vrot.lane.b32.xlu0 %v146, 112
    %v205 = vpop.permute.xlu0 %204
    %206 = vrot.lane.b32.xlu0 %v143, 104
    %v207 = vpop.permute.xlu0 %206
    %208 = vrot.lane.b32.xlu0 %v146, 104
    %v209 = vpop.permute.xlu0 %208
    %212 = vrot.lane.b32.xlu0 %v190, 120
    %v213 = vpop.permute.xlu0 %212
    %214 = vrot.lane.b32.xlu0 %v193, 120
    %v215 = vpop.permute.xlu0 %214
    %218 = vrot.lane.b32.xlu0 %v190, 112
    %v219 = vpop.permute.xlu0 %218
    %220 = vrot.lane.b32.xlu0 %v193, 112
    %v221 = vpop.permute.xlu0 %220
    %224 = vrot.lane.b32.xlu0 %v190, 104
    %v225 = vpop.permute.xlu0 %224
    %226 = vrot.lane.b32.xlu0 %v193, 104
    %v227 = vpop.permute.xlu0 %226
    %230 = vrot.lane.b32.xlu0 %v143, 96
    %v231 = vpop.permute.xlu0 %230
    %232 = vrot.lane.b32.xlu0 %v146, 96
    %v233 = vpop.permute.xlu0 %232
    %vm234 = vcmask 64512
    %v235 = vsel %vm234, %v143, 0
    %v237 = vsel %vm234, %v146, 0
    %v239 = vsel %vm234, %v231, 0
    %v241 = vsel %vm234, %v233, 0
    %243 = vmatpush.xpose.msra.mxu0 0.0
    %244 = vmatpush.xpose.msra.mxu0 0.0
    %245 = vmatpush.xpose.msra.mxu0 0.0
    %246 = vmatpush.xpose.msra.mxu0 0.0
    %247 = vmatpush.xpose.msra.mxu0 0.0
    %248 = vmatpush.xpose.msra.mxu0 0.0
    %249 = vmatpush.xpose.msra.mxu0 0.0
    %250 = vmatpush.xpose.msra.mxu0 0.0
    %251 = vmatpush.xpose.msra.mxu0 0.0
    %252 = vmatpush.xpose.msra.mxu0 0.0
    %253 = vmatpush.xpose.msra.mxu0 0.0
    %254 = vmatpush.xpose.msra.mxu0 0.0
    %255 = vmatpush.xpose.msra.mxu0 0.0
    %256 = vmatpush.xpose.msra.mxu0 0.0
    %257 = vmatpush.xpose.msra.mxu0 %v241
    %258 = vmatpush.xpose.msra.mxu0 %v239
    %259 = vmatmul.f32.gmra.mxu0 %v235
    %v260 = vpop.f32.mrf.mxu0
    %v261 = vadd.f32 %v106, %v260
    %262 = vmatmul.f32.gmra.mxu0 %v237
    %v263 = vpop.f32.mrf.mxu0
    %v264 = vadd.f32 %v107, %v263
    %265 = vdwg.mxu0
    %266 = vrot.lane.b32.xlu0 %v199, 96
    %v267 = vpop.permute.xlu0 %266
    %268 = vrot.lane.b32.xlu0 %v201, 96
    %v269 = vpop.permute.xlu0 %268
    %v270 = vsel %vm234, %v199, 0
    %v272 = vsel %vm234, %v201, 0
    %v274 = vsel %vm234, %v267, 0
    %v276 = vsel %vm234, %v269, 0
    %278 = vmatpush.xpose.msra.mxu0 0.0
    %279 = vmatpush.xpose.msra.mxu0 0.0
    %280 = vmatpush.xpose.msra.mxu0 0.0
    %281 = vmatpush.xpose.msra.mxu0 0.0
    %282 = vmatpush.xpose.msra.mxu0 0.0
    %283 = vmatpush.xpose.msra.mxu0 0.0
    %284 = vmatpush.xpose.msra.mxu0 0.0
    %285 = vmatpush.xpose.msra.mxu0 0.0
    %286 = vmatpush.xpose.msra.mxu0 0.0
    %287 = vmatpush.xpose.msra.mxu0 0.0
    %288 = vmatpush.xpose.msra.mxu0 0.0
    %289 = vmatpush.xpose.msra.mxu0 0.0
    %290 = vmatpush.xpose.msra.mxu0 0.0
    %291 = vmatpush.xpose.msra.mxu0 0.0
    %292 = vmatpush.xpose.msra.mxu0 %v276
    %293 = vmatpush.xpose.msra.mxu0 %v274
    %294 = vmatmul.f32.gmra.mxu0 %v270
    %v295 = vpop.f32.mrf.mxu0
    %v296 = vadd.f32 %v106, %v295
    %297 = vmatmul.f32.gmra.mxu0 %v272
    %v298 = vpop.f32.mrf.mxu0
    %v299 = vadd.f32 %v107, %v298
    %300 = vdwg.mxu0
    %301 = vrot.lane.b32.xlu0 %v203, 96
    %v302 = vpop.permute.xlu0 %301
    %303 = vrot.lane.b32.xlu0 %v205, 96
    %v304 = vpop.permute.xlu0 %303
    %v305 = vsel %vm234, %v203, 0
    %v307 = vsel %vm234, %v205, 0
    %v309 = vsel %vm234, %v302, 0
    %v311 = vsel %vm234, %v304, 0
    %313 = vmatpush.xpose.msra.mxu0 0.0
    %314 = vmatpush.xpose.msra.mxu0 0.0
    %315 = vmatpush.xpose.msra.mxu0 0.0
    %316 = vmatpush.xpose.msra.mxu0 0.0
    %317 = vmatpush.xpose.msra.mxu0 0.0
    %318 = vmatpush.xpose.msra.mxu0 0.0
    %319 = vmatpush.xpose.msra.mxu0 0.0
    %320 = vmatpush.xpose.msra.mxu0 0.0
    %321 = vmatpush.xpose.msra.mxu0 0.0
    %322 = vmatpush.xpose.msra.mxu0 0.0
    %323 = vmatpush.xpose.msra.mxu0 0.0
    %324 = vmatpush.xpose.msra.mxu0 0.0
    %325 = vmatpush.xpose.msra.mxu0 0.0
    %326 = vmatpush.xpose.msra.mxu0 0.0
    %327 = vmatpush.xpose.msra.mxu0 %v311
    %328 = vmatpush.xpose.msra.mxu0 %v309
    %329 = vmatmul.f32.gmra.mxu0 %v305
    %v330 = vpop.f32.mrf.mxu0
    %v331 = vadd.f32 %v106, %v330
    %332 = vmatmul.f32.gmra.mxu0 %v307
    %v333 = vpop.f32.mrf.mxu0
    %v334 = vadd.f32 %v107, %v333
    %335 = vdwg.mxu0
    %336 = vrot.lane.b32.xlu0 %v207, 96
    %v337 = vpop.permute.xlu0 %336
    %338 = vrot.lane.b32.xlu0 %v209, 96
    %v339 = vpop.permute.xlu0 %338
    %v340 = vsel %vm234, %v207, 0
    %v342 = vsel %vm234, %v209, 0
    %v344 = vsel %vm234, %v337, 0
    %v346 = vsel %vm234, %v339, 0
    %348 = vmatpush.xpose.msra.mxu0 0.0
    %349 = vmatpush.xpose.msra.mxu0 0.0
    %350 = vmatpush.xpose.msra.mxu0 0.0
    %351 = vmatpush.xpose.msra.mxu0 0.0
    %352 = vmatpush.xpose.msra.mxu0 0.0
    %353 = vmatpush.xpose.msra.mxu0 0.0
    %354 = vmatpush.xpose.msra.mxu0 0.0
    %355 = vmatpush.xpose.msra.mxu0 0.0
    %356 = vmatpush.xpose.msra.mxu0 0.0
    %357 = vmatpush.xpose.msra.mxu0 0.0
    %358 = vmatpush.xpose.msra.mxu0 0.0
    %359 = vmatpush.xpose.msra.mxu0 0.0
    %360 = vmatpush.xpose.msra.mxu0 0.0
    %361 = vmatpush.xpose.msra.mxu0 0.0
    %362 = vmatpush.xpose.msra.mxu0 %v346
    %363 = vmatpush.xpose.msra.mxu0 %v344
    %364 = vmatmul.f32.gmra.mxu0 %v340
    %v365 = vpop.f32.mrf.mxu0
    %v366 = vadd.f32 %v106, %v365
    %367 = vmatmul.f32.gmra.mxu0 %v342
    %v368 = vpop.f32.mrf.mxu0
    %v369 = vadd.f32 %v107, %v368
    %370 = vdwg.mxu0
    %vm371 = vcmask 130048
    %v372 = vsel %vm371, %v261, -inf
    %373 = vmax.xlane.f32.xlu0 %v372
    %v374 = vpop.xlane.xlu0 %373
    %v375 = vsel %vm371, %v264, -inf
    %376 = vmax.xlane.f32.xlu0 %v375
    %v377 = vpop.xlane.xlu0 %376
    %v378 = vsel %vm371, %v296, -inf
    %379 = vmax.xlane.f32.xlu0 %v378
    %v380 = vpop.xlane.xlu0 %379
    %v381 = vsel %vm371, %v299, -inf
    %382 = vmax.xlane.f32.xlu0 %v381
    %v383 = vpop.xlane.xlu0 %382
    %v384 = vsel %vm371, %v331, -inf
    %385 = vmax.xlane.f32.xlu0 %v384
    %v386 = vpop.xlane.xlu0 %385
    %v387 = vsel %vm371, %v334, -inf
    %388 = vmax.xlane.f32.xlu0 %v387
    %v389 = vpop.xlane.xlu0 %388
    %v390 = vsel %vm371, %v366, -inf
    %391 = vmax.xlane.f32.xlu0 %v390
    %v392 = vpop.xlane.xlu0 %391
    %v393 = vsel %vm371, %v369, -inf
    %394 = vmax.xlane.f32.xlu0 %v393
    %v395 = vpop.xlane.xlu0 %394
    %v396 = vsub.f32 %v261, %v374
    %v397 = vsub.f32 %v264, %v377
    %v398 = vsub.f32 %v296, %v380
    %v399 = vsub.f32 %v299, %v383
    %v400 = vsub.f32 %v331, %v386
    %v401 = vsub.f32 %v334, %v389
    %v402 = vsub.f32 %v366, %v392
    %v403 = vsub.f32 %v369, %v395
    %v404 = vmul.f32 %v396, 1.442695
    %v405 = vpow.pop %v404
    %v406 = vmul.f32 %v397, 1.442695
    %v407 = vpow.pop %v406
    %v408 = vmul.f32 %v398, 1.442695
    %v409 = vpow.pop %v408
    %v410 = vmul.f32 %v399, 1.442695
    %v411 = vpow.pop %v410
    %v412 = vmul.f32 %v400, 1.442695
    %v413 = vpow.pop %v412
    %v414 = vmul.f32 %v401, 1.442695
    %v415 = vpow.pop %v414
    %v416 = vmul.f32 %v402, 1.442695
    %v417 = vpow.pop %v416
    %v418 = vmul.f32 %v403, 1.442695
    %v419 = vpow.pop %v418
    %v420 = vsel %vm371, %v405, 0.0
    %421 = vadd.xlane.f32.xlu0 %v420
    %v422 = vpop.xlane.xlu0 %421
    %v423 = vsel %vm371, %v407, 0.0
    %424 = vadd.xlane.f32.xlu0 %v423
    %v425 = vpop.xlane.xlu0 %424
    %v426 = vsel %vm371, %v409, 0.0
    %427 = vadd.xlane.f32.xlu0 %v426
    %v428 = vpop.xlane.xlu0 %427
    %v429 = vsel %vm371, %v411, 0.0
    %430 = vadd.xlane.f32.xlu0 %v429
    %v431 = vpop.xlane.xlu0 %430
    %v432 = vsel %vm371, %v413, 0.0
    %433 = vadd.xlane.f32.xlu0 %v432
    %v434 = vpop.xlane.xlu0 %433
    %v435 = vsel %vm371, %v415, 0.0
    %436 = vadd.xlane.f32.xlu0 %v435
    %v437 = vpop.xlane.xlu0 %436
    %v438 = vsel %vm371, %v417, 0.0
    %439 = vadd.xlane.f32.xlu0 %v438
    %v440 = vpop.xlane.xlu0 %439
    %v441 = vsel %vm371, %v419, 0.0
    %442 = vadd.xlane.f32.xlu0 %v441
    %v443 = vpop.xlane.xlu0 %442
    %v444 = vrcp.pop %v422
    %v445 = vrcp.pop %v425
    %v446 = vrcp.pop %v428
    %v447 = vrcp.pop %v431
    %v448 = vrcp.pop %v434
    %v449 = vrcp.pop %v437
    %v450 = vrcp.pop %v440
    %v451 = vrcp.pop %v443
    %v452 = vmul.f32 %v422, %v444
    %v453 = vmul.f32 %v425, %v445
    %v454 = vmul.f32 %v428, %v446
    %v455 = vmul.f32 %v431, %v447
    %v456 = vmul.f32 %v434, %v448
    %v457 = vmul.f32 %v437, %v449
    %v458 = vmul.f32 %v440, %v450
    %v459 = vmul.f32 %v443, %v451
    %v460 = vsub.f32 2.0, %v452
    %v461 = vsub.f32 2.0, %v453
    %v462 = vsub.f32 2.0, %v454
    %v463 = vsub.f32 2.0, %v455
    %v464 = vsub.f32 2.0, %v456
    %v465 = vsub.f32 2.0, %v457
    %v466 = vsub.f32 2.0, %v458
    %v467 = vsub.f32 2.0, %v459
    %v468 = vmul.f32 %v444, %v460
    %v469 = vmul.f32 %v445, %v461
    %v470 = vmul.f32 %v446, %v462
    %v471 = vmul.f32 %v447, %v463
    %v472 = vmul.f32 %v448, %v464
    %v473 = vmul.f32 %v449, %v465
    %v474 = vmul.f32 %v450, %v466
    %v475 = vmul.f32 %v451, %v467
    %v476 = vmul.f32 %v405, %v468
    %v477 = vmul.f32 %v407, %v469
    %v478 = vmul.f32 %v409, %v470
    %v479 = vmul.f32 %v411, %v471
    %v480 = vmul.f32 %v413, %v472
    %v481 = vmul.f32 %v415, %v473
    %v482 = vmul.f32 %v417, %v474
    %v483 = vmul.f32 %v419, %v475
    %v485 = vsel %vm371, %v476, 0
    %v488 = vsel %vm371, %v477, 0
    %490 = vmatpush.msra.mxu0 0.0
    %491 = vmatpush.msra.mxu0 0.0
    %492 = vmatpush.msra.mxu0 0.0
    %493 = vmatpush.msra.mxu0 0.0
    %494 = vmatpush.msra.mxu0 0.0
    %495 = vmatpush.msra.mxu0 0.0
    %496 = vmatpush.msra.mxu0 0.0
    %497 = vmatpush.msra.mxu0 0.0
    %498 = vmatpush.msra.mxu0 0.0
    %499 = vmatpush.msra.mxu0 0.0
    %500 = vmatpush.msra.mxu0 0.0
    %501 = vmatpush.msra.mxu0 0.0
    %502 = vmatpush.msra.mxu0 0.0
    %503 = vmatpush.msra.mxu0 0.0
    %504 = vmatpush.msra.mxu0 %v193
    %505 = vmatpush.msra.mxu0 %v190
    %506 = vmatmul.f32.gmra.mxu0 %v485
    %v507 = vpop.f32.mrf.mxu0
    %v508 = vadd.f32 0.0, %v507
    %509 = vmatmul.f32.gmra.mxu0 %v488
    %v510 = vpop.f32.mrf.mxu0
    %v511 = vadd.f32 0.0, %v510
    %512 = vdwg.mxu0
    %v514 = vsel %vm371, %v478, 0
    %v517 = vsel %vm371, %v479, 0
    %519 = vmatpush.msra.mxu0 0.0
    %520 = vmatpush.msra.mxu0 0.0
    %521 = vmatpush.msra.mxu0 0.0
    %522 = vmatpush.msra.mxu0 0.0
    %523 = vmatpush.msra.mxu0 0.0
    %524 = vmatpush.msra.mxu0 0.0
    %525 = vmatpush.msra.mxu0 0.0
    %526 = vmatpush.msra.mxu0 0.0
    %527 = vmatpush.msra.mxu0 0.0
    %528 = vmatpush.msra.mxu0 0.0
    %529 = vmatpush.msra.mxu0 0.0
    %530 = vmatpush.msra.mxu0 0.0
    %531 = vmatpush.msra.mxu0 0.0
    %532 = vmatpush.msra.mxu0 0.0
    %533 = vmatpush.msra.mxu0 %v215
    %534 = vmatpush.msra.mxu0 %v213
    %535 = vmatmul.f32.gmra.mxu0 %v514
    %v536 = vpop.f32.mrf.mxu0
    %v537 = vadd.f32 0.0, %v536
    %538 = vmatmul.f32.gmra.mxu0 %v517
    %v539 = vpop.f32.mrf.mxu0
    %v540 = vadd.f32 0.0, %v539
    %541 = vdwg.mxu0
    %v543 = vsel %vm371, %v480, 0
    %v546 = vsel %vm371, %v481, 0
    %548 = vmatpush.msra.mxu0 0.0
    %549 = vmatpush.msra.mxu0 0.0
    %550 = vmatpush.msra.mxu0 0.0
    %551 = vmatpush.msra.mxu0 0.0
    %552 = vmatpush.msra.mxu0 0.0
    %553 = vmatpush.msra.mxu0 0.0
    %554 = vmatpush.msra.mxu0 0.0
    %555 = vmatpush.msra.mxu0 0.0
    %556 = vmatpush.msra.mxu0 0.0
    %557 = vmatpush.msra.mxu0 0.0
    %558 = vmatpush.msra.mxu0 0.0
    %559 = vmatpush.msra.mxu0 0.0
    %560 = vmatpush.msra.mxu0 0.0
    %561 = vmatpush.msra.mxu0 0.0
    %562 = vmatpush.msra.mxu0 %v221
    %563 = vmatpush.msra.mxu0 %v219
    %564 = vmatmul.f32.gmra.mxu0 %v543
    %v565 = vpop.f32.mrf.mxu0
    %v566 = vadd.f32 0.0, %v565
    %567 = vmatmul.f32.gmra.mxu0 %v546
    %v568 = vpop.f32.mrf.mxu0
    %v569 = vadd.f32 0.0, %v568
    %570 = vdwg.mxu0
    %v572 = vsel %vm371, %v482, 0
    %v575 = vsel %vm371, %v483, 0
    %577 = vmatpush.msra.mxu0 0.0
    %578 = vmatpush.msra.mxu0 0.0
    %579 = vmatpush.msra.mxu0 0.0
    %580 = vmatpush.msra.mxu0 0.0
    %581 = vmatpush.msra.mxu0 0.0
    %582 = vmatpush.msra.mxu0 0.0
    %583 = vmatpush.msra.mxu0 0.0
    %584 = vmatpush.msra.mxu0 0.0
    %585 = vmatpush.msra.mxu0 0.0
    %586 = vmatpush.msra.mxu0 0.0
    %587 = vmatpush.msra.mxu0 0.0
    %588 = vmatpush.msra.mxu0 0.0
    %589 = vmatpush.msra.mxu0 0.0
    %590 = vmatpush.msra.mxu0 0.0
    %591 = vmatpush.msra.mxu0 %v227
    %592 = vmatpush.msra.mxu0 %v225
    %593 = vmatmul.f32.gmra.mxu0 %v572
    %v594 = vpop.f32.mrf.mxu0
    %v595 = vadd.f32 0.0, %v594
    %596 = vmatmul.f32.gmra.mxu0 %v575
    %v597 = vpop.f32.mrf.mxu0
    %v598 = vadd.f32 0.0, %v597
    %599 = vdwg.mxu0
    %600 = vrot.lane.b32.xlu0 %v112, 32
    %v601 = vpop.permute.xlu0 %600
    %v604 = vsel %vm234, %v508, 0
    %v607 = vsel %vm234, %v511, 0
    %609 = vmatpush.msra.mxu0 0.0
    %610 = vmatpush.msra.mxu0 0.0
    %611 = vmatpush.msra.mxu0 0.0
    %612 = vmatpush.msra.mxu0 0.0
    %613 = vmatpush.msra.mxu0 0.0
    %614 = vmatpush.msra.mxu0 0.0
    %615 = vmatpush.msra.mxu0 0.0
    %616 = vmatpush.msra.mxu0 0.0
    %617 = vmatpush.msra.mxu0 0.0
    %618 = vmatpush.msra.mxu0 0.0
    %619 = vmatpush.msra.mxu0 0.0
    %620 = vmatpush.msra.mxu0 0.0
    %621 = vmatpush.msra.mxu0 0.0
    %622 = vmatpush.msra.mxu0 0.0
    %623 = vmatpush.msra.mxu0 0.0
    %624 = vmatpush.msra.mxu0 %v601
    %625 = vmatmul.f32.gmra.mxu0 %v604
    %v626 = vpop.f32.mrf.mxu0
    %v627 = vadd.f32 0.0, %v626
    %628 = vmatmul.f32.gmra.mxu0 %v607
    %v629 = vpop.f32.mrf.mxu0
    %v630 = vadd.f32 0.0, %v629
    %631 = vdwg.mxu0
    %632 = vrot.lane.b32.xlu0 %v113, 32
    %v633 = vpop.permute.xlu0 %632
    %v636 = vsel %vm234, %v537, 0
    %v639 = vsel %vm234, %v540, 0
    %641 = vmatpush.msra.mxu0 0.0
    %642 = vmatpush.msra.mxu0 0.0
    %643 = vmatpush.msra.mxu0 0.0
    %644 = vmatpush.msra.mxu0 0.0
    %645 = vmatpush.msra.mxu0 0.0
    %646 = vmatpush.msra.mxu0 0.0
    %647 = vmatpush.msra.mxu0 0.0
    %648 = vmatpush.msra.mxu0 0.0
    %649 = vmatpush.msra.mxu0 0.0
    %650 = vmatpush.msra.mxu0 0.0
    %651 = vmatpush.msra.mxu0 0.0
    %652 = vmatpush.msra.mxu0 0.0
    %653 = vmatpush.msra.mxu0 0.0
    %654 = vmatpush.msra.mxu0 0.0
    %655 = vmatpush.msra.mxu0 0.0
    %656 = vmatpush.msra.mxu0 %v633
    %657 = vmatmul.f32.gmra.mxu0 %v636
    %v658 = vpop.f32.mrf.mxu0
    %v659 = vadd.f32 0.0, %v658
    %660 = vmatmul.f32.gmra.mxu0 %v639
    %v661 = vpop.f32.mrf.mxu0
    %v662 = vadd.f32 0.0, %v661
    %663 = vdwg.mxu0
    %664 = vrot.lane.b32.xlu0 %v114, 32
    %v665 = vpop.permute.xlu0 %664
    %v668 = vsel %vm234, %v566, 0
    %v671 = vsel %vm234, %v569, 0
    %673 = vmatpush.msra.mxu0 0.0
    %674 = vmatpush.msra.mxu0 0.0
    %675 = vmatpush.msra.mxu0 0.0
    %676 = vmatpush.msra.mxu0 0.0
    %677 = vmatpush.msra.mxu0 0.0
    %678 = vmatpush.msra.mxu0 0.0
    %679 = vmatpush.msra.mxu0 0.0
    %680 = vmatpush.msra.mxu0 0.0
    %681 = vmatpush.msra.mxu0 0.0
    %682 = vmatpush.msra.mxu0 0.0
    %683 = vmatpush.msra.mxu0 0.0
    %684 = vmatpush.msra.mxu0 0.0
    %685 = vmatpush.msra.mxu0 0.0
    %686 = vmatpush.msra.mxu0 0.0
    %687 = vmatpush.msra.mxu0 0.0
    %688 = vmatpush.msra.mxu0 %v665
    %689 = vmatmul.f32.gmra.mxu0 %v668
    %v690 = vpop.f32.mrf.mxu0
    %v691 = vadd.f32 0.0, %v690
    %692 = vmatmul.f32.gmra.mxu0 %v671
    %v693 = vpop.f32.mrf.mxu0
    %v694 = vadd.f32 0.0, %v693
    %695 = vdwg.mxu0
    %696 = vrot.lane.b32.xlu0 %v115, 32
    %v697 = vpop.permute.xlu0 %696
    %v700 = vsel %vm234, %v595, 0
    %v703 = vsel %vm234, %v598, 0
    %705 = vmatpush.msra.mxu0 0.0
    %706 = vmatpush.msra.mxu0 0.0
    %707 = vmatpush.msra.mxu0 0.0
    %708 = vmatpush.msra.mxu0 0.0
    %709 = vmatpush.msra.mxu0 0.0
    %710 = vmatpush.msra.mxu0 0.0
    %711 = vmatpush.msra.mxu0 0.0
    %712 = vmatpush.msra.mxu0 0.0
    %713 = vmatpush.msra.mxu0 0.0
    %714 = vmatpush.msra.mxu0 0.0
    %715 = vmatpush.msra.mxu0 0.0
    %716 = vmatpush.msra.mxu0 0.0
    %717 = vmatpush.msra.mxu0 0.0
    %718 = vmatpush.msra.mxu0 0.0
    %719 = vmatpush.msra.mxu0 0.0
    %720 = vmatpush.msra.mxu0 %v697
    %721 = vmatmul.f32.gmra.mxu0 %v700
    %v722 = vpop.f32.mrf.mxu0
    %v723 = vadd.f32 0.0, %v722
    %724 = vmatmul.f32.gmra.mxu0 %v703
    %v725 = vpop.f32.mrf.mxu0
    %v726 = vadd.f32 0.0, %v725
    %727 = vdwg.mxu0
    %v728 = vsel %vm118, %v627, 0.0
    %v729 = vsel %vm118, %v659, 0.0
    %v730 = vadd.f32 %v728, %v729
    %v731 = vsel %vm118, %v691, 0.0
    %v732 = vadd.f32 %v730, %v731
    %v733 = vsel %vm118, %v723, 0.0
    %v734 = vadd.f32 %v732, %v733
    %v735 = vsel %vm118, %v630, 0.0
    %v736 = vsel %vm118, %v662, 0.0
    %v737 = vadd.f32 %v735, %v736
    %v738 = vsel %vm118, %v694, 0.0
    %v739 = vadd.f32 %v737, %v738
    %v740 = vsel %vm118, %v726, 0.0
    %v741 = vadd.f32 %v739, %v740
    %v742 = vperm.slane %v195, 0
    %v743 = vadd.f32 %v734, %v742
    %v744 = vadd.f32 %v741, %v742
    %v745 = vadd.f32 %v86, %v743
    %v746 = vadd.f32 %v87, %v744
    %v747 = vld [vmem:[%s8 + $0x3] sm:$0x1]
    %v748 = vld [vmem:[%s8 + $0x4] sm:$0x1]
    %v749 = vsel %vm118, %v745, 0.0
    %750 = vadd.xlane.f32.xlu0 %v749
    %v751 = vpop.xlane.xlu0 %750
    %v752 = vsel %vm118, %v746, 0.0
    %753 = vadd.xlane.f32.xlu0 %v752
    %v754 = vpop.xlane.xlu0 %753
    %v755 = vrcp.pop 32.0
    %v756 = vmul.f32 32.0, %v755
    %v757 = vsub.f32 1.0, %v756
    %v758 = vmul.f32 %v755, %v757
    %v759 = vadd.f32 %v755, %v758
    %vm760 = vweird.f32 %v755
    %v761 = vsel %vm760, %v755, %v759
    %v762 = vmul.f32 %v751, %v761
    %v763 = vmul.f32 %v754, %v761
    %v764 = vsub.f32 %v745, %v762
    %v765 = vsub.f32 %v746, %v763
    %v766 = vmul.f32 %v764, %v764
    %v767 = vmul.f32 %v765, %v765
    %v768 = vsel %vm118, %v766, 0.0
    %769 = vadd.xlane.f32.xlu0 %v768
    %v770 = vpop.xlane.xlu0 %769
    %v771 = vsel %vm118, %v767, 0.0
    %772 = vadd.xlane.f32.xlu0 %v771
    %v773 = vpop.xlane.xlu0 %772
    %v774 = vmul.f32 %v770, %v761
    %v775 = vmul.f32 %v773, %v761
    %v776 = vadd.f32 %v774, 1e-05
    %v777 = vadd.f32 %v775, 1e-05
    %v778 = vrsqrt.pop %v776
    %v779 = vmul.f32 %v778, %v776
    %v780 = vmul.f32 %v779, %v778
    %v781 = vmul.f32 0.5, %v780
    %v782 = vsub.f32 1.5, %v781
    %v783 = vmul.f32 %v778, %v782
    %vm784 = vweird.f32 %v776
    %vm785 = vweird.f32 %v778
    %vm786 = vmor %vm784, %vm785
    %v787 = vsel %vm786, %v778, %v783
    %v788 = vrsqrt.pop %v777
    %v789 = vmul.f32 %v788, %v777
    %v790 = vmul.f32 %v789, %v788
    %v791 = vmul.f32 0.5, %v790
    %v792 = vsub.f32 1.5, %v791
    %v793 = vmul.f32 %v788, %v792
    %vm794 = vweird.f32 %v777
    %vm795 = vweird.f32 %v788
    %vm796 = vmor %vm794, %vm795
    %v797 = vsel %vm796, %v788, %v793
    %v798 = vmul.f32 %v764, %v787
    %v799 = vmul.f32 %v765, %v797
    %v800 = vperm.slane %v747, 0
    %v801 = vmul.f32 %v798, %v800
    %v802 = vmul.f32 %v799, %v800
    %v803 = vperm.slane %v748, 0
    %v804 = vadd.f32 %v801, %v803
    %v805 = vadd.f32 %v802, %v803
    %v806 = vadd.f32 %v804, %v88
    %v807 = vadd.f32 %v805, %v89
    %v808 = vld [vmem:[#allocation7 + $0x8] sm:$0xff]
    %v809 = vld [vmem:[#allocation7 + $0x20] sm:$0xff]
    %v810 = vld [vmem:[#allocation7 + $0x38] sm:$0xff]
    %v811 = vld [vmem:[#allocation7 + $0x50] sm:$0xff]
    %v812 = vld [vmem:[%s8 + $0x5] sm:$0x1]
    %v813 = vperm.slane %v812, 0
    %v815 = vsel %vm118, %v806, 0
    %v818 = vsel %vm118, %v807, 0
    %820 = vmatpush.msra.mxu0 0.0
    %821 = vmatpush.msra.mxu0 0.0
    %822 = vmatpush.msra.mxu0 0.0
    %823 = vmatpush.msra.mxu0 0.0
    %824 = vmatpush.msra.mxu0 0.0
    %825 = vmatpush.msra.mxu0 0.0
    %826 = vmatpush.msra.mxu0 0.0
    %827 = vmatpush.msra.mxu0 0.0
    %828 = vmatpush.msra.mxu0 0.0
    %829 = vmatpush.msra.mxu0 0.0
    %830 = vmatpush.msra.mxu0 0.0
    %831 = vmatpush.msra.mxu0 0.0
    %832 = vmatpush.msra.mxu0 %v811
    %833 = vmatpush.msra.mxu0 %v810
    %834 = vmatpush.msra.mxu0 %v809
    %835 = vmatpush.msra.mxu0 %v808
    %836 = vmatmul.f32.gmra.mxu0 %v815
    %v837 = vpop.f32.mrf.mxu0
    %v838 = vadd.f32 %v813, %v837
    %839 = vmatmul.f32.gmra.mxu0 %v818
    %v840 = vpop.f32.mrf.mxu0
    %v841 = vadd.f32 %v813, %v840
    %842 = vdwg.mxu0
    %v843 = vld [vmem:[%s8 + $0x6] sm:$0x1]
    %v844 = vperm.slane %v843, 0
    %849 = vrot.lane.b32.xlu0 %v808, 96
    %v850 = vpop.permute.xlu0 %849
    %851 = vrot.lane.b32.xlu0 %v809, 96
    %v852 = vpop.permute.xlu0 %851
    %853 = vrot.lane.b32.xlu0 %v810, 96
    %v854 = vpop.permute.xlu0 %853
    %855 = vrot.lane.b32.xlu0 %v811, 96
    %v856 = vpop.permute.xlu0 %855
    %v862 = vsel %vm118, %v98, 0
    %v865 = vsel %vm118, %v99, 0
    %v868 = vsel %vm118, %v100, 0
    %v871 = vsel %vm118, %v101, 0
    %873 = vmatpush.msra.mxu0 0.0
    %874 = vmatpush.msra.mxu0 0.0
    %875 = vmatpush.msra.mxu0 0.0
    %876 = vmatpush.msra.mxu0 0.0
    %877 = vmatpush.msra.mxu0 0.0
    %878 = vmatpush.msra.mxu0 0.0
    %879 = vmatpush.msra.mxu0 0.0
    %880 = vmatpush.msra.mxu0 0.0
    %881 = vmatpush.msra.mxu0 0.0
    %882 = vmatpush.msra.mxu0 0.0
    %883 = vmatpush.msra.mxu0 0.0
    %884 = vmatpush.msra.mxu0 0.0
    %885 = vmatpush.msra.mxu0 %v856
    %886 = vmatpush.msra.mxu0 %v854
    %887 = vmatpush.msra.mxu0 %v852
    %888 = vmatpush.msra.mxu0 %v850
    %889 = vmatmul.f32.gmra.mxu0 %v862
    %v890 = vpop.f32.mrf.mxu0
    %v891 = vadd.f32 %v844, %v890
    %892 = vmatmul.f32.gmra.mxu0 %v865
    %v893 = vpop.f32.mrf.mxu0
    %v894 = vadd.f32 %v844, %v893
    %895 = vmatmul.f32.gmra.mxu0 %v868
    %v896 = vpop.f32.mrf.mxu0
    %v897 = vadd.f32 %v844, %v896
    %898 = vmatmul.f32.gmra.mxu0 %v871
    %v899 = vpop.f32.mrf.mxu0
    %v900 = vadd.f32 %v844, %v899
    %901 = vdwg.mxu0
    %v902 = vld [vmem:[%s8 + $0x7] sm:$0x1]
    %v903 = vperm.slane %v902, 0
    %904 = vrot.lane.b32.xlu0 %v808, 64
    %v905 = vpop.permute.xlu0 %904
    %906 = vrot.lane.b32.xlu0 %v809, 64
    %v907 = vpop.permute.xlu0 %906
    %908 = vrot.lane.b32.xlu0 %v810, 64
    %v909 = vpop.permute.xlu0 %908
    %910 = vrot.lane.b32.xlu0 %v811, 64
    %v911 = vpop.permute.xlu0 %910
    %v917 = vsel %vm118, %v102, 0
    %v920 = vsel %vm118, %v103, 0
    %v923 = vsel %vm118, %v104, 0
    %v926 = vsel %vm118, %v105, 0
    %928 = vmatpush.msra.mxu0 0.0
    %929 = vmatpush.msra.mxu0 0.0
    %930 = vmatpush.msra.mxu0 0.0
    %931 = vmatpush.msra.mxu0 0.0
    %932 = vmatpush.msra.mxu0 0.0
    %933 = vmatpush.msra.mxu0 0.0
    %934 = vmatpush.msra.mxu0 0.0
    %935 = vmatpush.msra.mxu0 0.0
    %936 = vmatpush.msra.mxu0 0.0
    %937 = vmatpush.msra.mxu0 0.0
    %938 = vmatpush.msra.mxu0 0.0
    %939 = vmatpush.msra.mxu0 0.0
    %940 = vmatpush.msra.mxu0 %v911
    %941 = vmatpush.msra.mxu0 %v909
    %942 = vmatpush.msra.mxu0 %v907
    %943 = vmatpush.msra.mxu0 %v905
    %944 = vmatmul.f32.gmra.mxu0 %v917
    %v945 = vpop.f32.mrf.mxu0
    %v946 = vadd.f32 %v903, %v945
    %947 = vmatmul.f32.gmra.mxu0 %v920
    %v948 = vpop.f32.mrf.mxu0
    %v949 = vadd.f32 %v903, %v948
    %950 = vmatmul.f32.gmra.mxu0 %v923
    %v951 = vpop.f32.mrf.mxu0
    %v952 = vadd.f32 %v903, %v951
    %953 = vmatmul.f32.gmra.mxu0 %v926
    %v954 = vpop.f32.mrf.mxu0
    %v955 = vadd.f32 %v903, %v954
    %956 = vdwg.mxu0
    %v957 = vld [vmem:[%s8 + $0x8] sm:$0x1]
    %960 = vrot.lane.b32.xlu0 %v838, 120
    %v961 = vpop.permute.xlu0 %960
    %962 = vrot.lane.b32.xlu0 %v841, 120
    %v963 = vpop.permute.xlu0 %962
    %964 = vrot.lane.b32.xlu0 %v838, 112
    %v965 = vpop.permute.xlu0 %964
    %966 = vrot.lane.b32.xlu0 %v841, 112
    %v967 = vpop.permute.xlu0 %966
    %968 = vrot.lane.b32.xlu0 %v838, 104
    %v969 = vpop.permute.xlu0 %968
    %970 = vrot.lane.b32.xlu0 %v841, 104
    %v971 = vpop.permute.xlu0 %970
    %976 = vrot.lane.b32.xlu0 %v891, 120
    %v977 = vpop.permute.xlu0 %976
    %978 = vrot.lane.b32.xlu0 %v894, 120
    %v979 = vpop.permute.xlu0 %978
    %980 = vrot.lane.b32.xlu0 %v897, 120
    %v981 = vpop.permute.xlu0 %980
    %982 = vrot.lane.b32.xlu0 %v900, 120
    %v983 = vpop.permute.xlu0 %982
    %984 = vrot.lane.b32.xlu0 %v891, 112
    %v985 = vpop.permute.xlu0 %984
    %986 = vrot.lane.b32.xlu0 %v894, 112
    %v987 = vpop.permute.xlu0 %986
    %988 = vrot.lane.b32.xlu0 %v897, 112
    %v989 = vpop.permute.xlu0 %988
    %990 = vrot.lane.b32.xlu0 %v900, 112
    %v991 = vpop.permute.xlu0 %990
    %992 = vrot.lane.b32.xlu0 %v891, 104
    %v993 = vpop.permute.xlu0 %992
    %994 = vrot.lane.b32.xlu0 %v894, 104
    %v995 = vpop.permute.xlu0 %994
    %996 = vrot.lane.b32.xlu0 %v897, 104
    %v997 = vpop.permute.xlu0 %996
    %998 = vrot.lane.b32.xlu0 %v900, 104
    %v999 = vpop.permute.xlu0 %998
    %1004 = vrot.lane.b32.xlu0 %v946, 120
    %v1005 = vpop.permute.xlu0 %1004
    %1006 = vrot.lane.b32.xlu0 %v949, 120
    %v1007 = vpop.permute.xlu0 %1006
    %1008 = vrot.lane.b32.xlu0 %v952, 120
    %v1009 = vpop.permute.xlu0 %1008
    %1010 = vrot.lane.b32.xlu0 %v955, 120
    %v1011 = vpop.permute.xlu0 %1010
    %1016 = vrot.lane.b32.xlu0 %v946, 112
    %v1017 = vpop.permute.xlu0 %1016
    %1018 = vrot.lane.b32.xlu0 %v949, 112
    %v1019 = vpop.permute.xlu0 %1018
    %1020 = vrot.lane.b32.xlu0 %v952, 112
    %v1021 = vpop.permute.xlu0 %1020
    %1022 = vrot.lane.b32.xlu0 %v955, 112
    %v1023 = vpop.permute.xlu0 %1022
    %1028 = vrot.lane.b32.xlu0 %v946, 104
    %v1029 = vpop.permute.xlu0 %1028
    %1030 = vrot.lane.b32.xlu0 %v949, 104
    %v1031 = vpop.permute.xlu0 %1030
    %1032 = vrot.lane.b32.xlu0 %v952, 104
    %v1033 = vpop.permute.xlu0 %1032
    %1034 = vrot.lane.b32.xlu0 %v955, 104
    %v1035 = vpop.permute.xlu0 %1034
    %v1040 = vsel %vm234, %v838, 0
    %v1042 = vsel %vm234, %v841, 0
    %v1044 = vsel %vm234, %v891, 0
    %v1046 = vsel %vm234, %v894, 0
    %v1048 = vsel %vm234, %v897, 0
    %v1050 = vsel %vm234, %v900, 0
    %1052 = vmatpush.xpose.msra.mxu0 0.0
    %1053 = vmatpush.xpose.msra.mxu0 0.0
    %1054 = vmatpush.xpose.msra.mxu0 0.0
    %1055 = vmatpush.xpose.msra.mxu0 0.0
    %1056 = vmatpush.xpose.msra.mxu0 0.0
    %1057 = vmatpush.xpose.msra.mxu0 0.0
    %1058 = vmatpush.xpose.msra.mxu0 0.0
    %1059 = vmatpush.xpose.msra.mxu0 0.0
    %1060 = vmatpush.xpose.msra.mxu0 0.0
    %1061 = vmatpush.xpose.msra.mxu0 0.0
    %1062 = vmatpush.xpose.msra.mxu0 0.0
    %1063 = vmatpush.xpose.msra.mxu0 0.0
    %1064 = vmatpush.xpose.msra.mxu0 %v1050
    %1065 = vmatpush.xpose.msra.mxu0 %v1048
    %1066 = vmatpush.xpose.msra.mxu0 %v1046
    %1067 = vmatpush.xpose.msra.mxu0 %v1044
    %1068 = vmatmul.f32.gmra.mxu0 %v1040
    %v1069 = vpop.f32.mrf.mxu0
    %v1070 = vadd.f32 %v108, %v1069
    %1071 = vmatmul.f32.gmra.mxu0 %v1042
    %v1072 = vpop.f32.mrf.mxu0
    %v1073 = vadd.f32 %v109, %v1072
    %1074 = vdwg.mxu0
    %v1075 = vsel %vm234, %v961, 0
    %v1077 = vsel %vm234, %v963, 0
    %v1079 = vsel %vm234, %v977, 0
    %v1081 = vsel %vm234, %v979, 0
    %v1083 = vsel %vm234, %v981, 0
    %v1085 = vsel %vm234, %v983, 0
    %1087 = vmatpush.xpose.msra.mxu0 0.0
    %1088 = vmatpush.xpose.msra.mxu0 0.0
    %1089 = vmatpush.xpose.msra.mxu0 0.0
    %1090 = vmatpush.xpose.msra.mxu0 0.0
    %1091 = vmatpush.xpose.msra.mxu0 0.0
    %1092 = vmatpush.xpose.msra.mxu0 0.0
    %1093 = vmatpush.xpose.msra.mxu0 0.0
    %1094 = vmatpush.xpose.msra.mxu0 0.0
    %1095 = vmatpush.xpose.msra.mxu0 0.0
    %1096 = vmatpush.xpose.msra.mxu0 0.0
    %1097 = vmatpush.xpose.msra.mxu0 0.0
    %1098 = vmatpush.xpose.msra.mxu0 0.0
    %1099 = vmatpush.xpose.msra.mxu0 %v1085
    %1100 = vmatpush.xpose.msra.mxu0 %v1083
    %1101 = vmatpush.xpose.msra.mxu0 %v1081
    %1102 = vmatpush.xpose.msra.mxu0 %v1079
    %1103 = vmatmul.f32.gmra.mxu0 %v1075
    %v1104 = vpop.f32.mrf.mxu0
    %v1105 = vadd.f32 %v108, %v1104
    %1106 = vmatmul.f32.gmra.mxu0 %v1077
    %v1107 = vpop.f32.mrf.mxu0
    %v1108 = vadd.f32 %v109, %v1107
    %1109 = vdwg.mxu0
    %v1110 = vsel %vm234, %v965, 0
    %v1112 = vsel %vm234, %v967, 0
    %v1114 = vsel %vm234, %v985, 0
    %v1116 = vsel %vm234, %v987, 0
    %v1118 = vsel %vm234, %v989, 0
    %v1120 = vsel %vm234, %v991, 0
    %1122 = vmatpush.xpose.msra.mxu0 0.0
    %1123 = vmatpush.xpose.msra.mxu0 0.0
    %1124 = vmatpush.xpose.msra.mxu0 0.0
    %1125 = vmatpush.xpose.msra.mxu0 0.0
    %1126 = vmatpush.xpose.msra.mxu0 0.0
    %1127 = vmatpush.xpose.msra.mxu0 0.0
    %1128 = vmatpush.xpose.msra.mxu0 0.0
    %1129 = vmatpush.xpose.msra.mxu0 0.0
    %1130 = vmatpush.xpose.msra.mxu0 0.0
    %1131 = vmatpush.xpose.msra.mxu0 0.0
    %1132 = vmatpush.xpose.msra.mxu0 0.0
    %1133 = vmatpush.xpose.msra.mxu0 0.0
    %1134 = vmatpush.xpose.msra.mxu0 %v1120
    %1135 = vmatpush.xpose.msra.mxu0 %v1118
    %1136 = vmatpush.xpose.msra.mxu0 %v1116
    %1137 = vmatpush.xpose.msra.mxu0 %v1114
    %1138 = vmatmul.f32.gmra.mxu0 %v1110
    %v1139 = vpop.f32.mrf.mxu0
    %v1140 = vadd.f32 %v108, %v1139
    %1141 = vmatmul.f32.gmra.mxu0 %v1112
    %v1142 = vpop.f32.mrf.mxu0
    %v1143 = vadd.f32 %v109, %v1142
    %1144 = vdwg.mxu0
    %v1145 = vsel %vm234, %v969, 0
    %v1147 = vsel %vm234, %v971, 0
    %v1149 = vsel %vm234, %v993, 0
    %v1151 = vsel %vm234, %v995, 0
    %v1153 = vsel %vm234, %v997, 0
    %v1155 = vsel %vm234, %v999, 0
    %1157 = vmatpush.xpose.msra.mxu0 0.0
    %1158 = vmatpush.xpose.msra.mxu0 0.0
    %1159 = vmatpush.xpose.msra.mxu0 0.0
    %1160 = vmatpush.xpose.msra.mxu0 0.0
    %1161 = vmatpush.xpose.msra.mxu0 0.0
    %1162 = vmatpush.xpose.msra.mxu0 0.0
    %1163 = vmatpush.xpose.msra.mxu0 0.0
    %1164 = vmatpush.xpose.msra.mxu0 0.0
    %1165 = vmatpush.xpose.msra.mxu0 0.0
    %1166 = vmatpush.xpose.msra.mxu0 0.0
    %1167 = vmatpush.xpose.msra.mxu0 0.0
    %1168 = vmatpush.xpose.msra.mxu0 0.0
    %1169 = vmatpush.xpose.msra.mxu0 %v1155
    %1170 = vmatpush.xpose.msra.mxu0 %v1153
    %1171 = vmatpush.xpose.msra.mxu0 %v1151
    %1172 = vmatpush.xpose.msra.mxu0 %v1149
    %1173 = vmatmul.f32.gmra.mxu0 %v1145
    %v1174 = vpop.f32.mrf.mxu0
    %v1175 = vadd.f32 %v108, %v1174
    %1176 = vmatmul.f32.gmra.mxu0 %v1147
    %v1177 = vpop.f32.mrf.mxu0
    %v1178 = vadd.f32 %v109, %v1177
    %1179 = vdwg.mxu0
    %v1180 = vsel %vm118, %v1070, -inf
    %1181 = vmax.xlane.f32.xlu0 %v1180
    %v1182 = vpop.xlane.xlu0 %1181
    %v1183 = vsel %vm118, %v1073, -inf
    %1184 = vmax.xlane.f32.xlu0 %v1183
    %v1185 = vpop.xlane.xlu0 %1184
    %v1186 = vsel %vm118, %v1105, -inf
    %1187 = vmax.xlane.f32.xlu0 %v1186
    %v1188 = vpop.xlane.xlu0 %1187
    %v1189 = vsel %vm118, %v1108, -inf
    %1190 = vmax.xlane.f32.xlu0 %v1189
    %v1191 = vpop.xlane.xlu0 %1190
    %v1192 = vsel %vm118, %v1140, -inf
    %1193 = vmax.xlane.f32.xlu0 %v1192
    %v1194 = vpop.xlane.xlu0 %1193
    %v1195 = vsel %vm118, %v1143, -inf
    %1196 = vmax.xlane.f32.xlu0 %v1195
    %v1197 = vpop.xlane.xlu0 %1196
    %v1198 = vsel %vm118, %v1175, -inf
    %1199 = vmax.xlane.f32.xlu0 %v1198
    %v1200 = vpop.xlane.xlu0 %1199
    %v1201 = vsel %vm118, %v1178, -inf
    %1202 = vmax.xlane.f32.xlu0 %v1201
    %v1203 = vpop.xlane.xlu0 %1202
    %v1204 = vsub.f32 %v1070, %v1182
    %v1205 = vsub.f32 %v1073, %v1185
    %v1206 = vsub.f32 %v1105, %v1188
    %v1207 = vsub.f32 %v1108, %v1191
    %v1208 = vsub.f32 %v1140, %v1194
    %v1209 = vsub.f32 %v1143, %v1197
    %v1210 = vsub.f32 %v1175, %v1200
    %v1211 = vsub.f32 %v1178, %v1203
    %v1212 = vmul.f32 %v1204, 1.442695
    %v1213 = vpow.pop %v1212
    %v1214 = vmul.f32 %v1205, 1.442695
    %v1215 = vpow.pop %v1214
    %v1216 = vmul.f32 %v1206, 1.442695
    %v1217 = vpow.pop %v1216
    %v1218 = vmul.f32 %v1207, 1.442695
    %v1219 = vpow.pop %v1218
    %v1220 = vmul.f32 %v1208, 1.442695
    %v1221 = vpow.pop %v1220
    %v1222 = vmul.f32 %v1209, 1.442695
    %v1223 = vpow.pop %v1222
    %v1224 = vmul.f32 %v1210, 1.442695
    %v1225 = vpow.pop %v1224
    %v1226 = vmul.f32 %v1211, 1.442695
    %v1227 = vpow.pop %v1226
    %v1228 = vsel %vm118, %v1213, 0.0
    %1229 = vadd.xlane.f32.xlu0 %v1228
    %v1230 = vpop.xlane.xlu0 %1229
    %v1231 = vsel %vm118, %v1215, 0.0
    %1232 = vadd.xlane.f32.xlu0 %v1231
    %v1233 = vpop.xlane.xlu0 %1232
    %v1234 = vsel %vm118, %v1217, 0.0
    %1235 = vadd.xlane.f32.xlu0 %v1234
    %v1236 = vpop.xlane.xlu0 %1235
    %v1237 = vsel %vm118, %v1219, 0.0
    %1238 = vadd.xlane.f32.xlu0 %v1237
    %v1239 = vpop.xlane.xlu0 %1238
    %v1240 = vsel %vm118, %v1221, 0.0
    %1241 = vadd.xlane.f32.xlu0 %v1240
    %v1242 = vpop.xlane.xlu0 %1241
    %v1243 = vsel %vm118, %v1223, 0.0
    %1244 = vadd.xlane.f32.xlu0 %v1243
    %v1245 = vpop.xlane.xlu0 %1244
    %v1246 = vsel %vm118, %v1225, 0.0
    %1247 = vadd.xlane.f32.xlu0 %v1246
    %v1248 = vpop.xlane.xlu0 %1247
    %v1249 = vsel %vm118, %v1227, 0.0
    %1250 = vadd.xlane.f32.xlu0 %v1249
    %v1251 = vpop.xlane.xlu0 %1250
    %v1252 = vrcp.pop %v1230
    %v1253 = vrcp.pop %v1233
    %v1254 = vrcp.pop %v1236
    %v1255 = vrcp.pop %v1239
    %v1256 = vrcp.pop %v1242
    %v1257 = vrcp.pop %v1245
    %v1258 = vrcp.pop %v1248
    %v1259 = vrcp.pop %v1251
    %v1260 = vmul.f32 %v1230, %v1252
    %v1261 = vmul.f32 %v1233, %v1253
    %v1262 = vmul.f32 %v1236, %v1254
    %v1263 = vmul.f32 %v1239, %v1255
    %v1264 = vmul.f32 %v1242, %v1256
    %v1265 = vmul.f32 %v1245, %v1257
    %v1266 = vmul.f32 %v1248, %v1258
    %v1267 = vmul.f32 %v1251, %v1259
    %v1268 = vsub.f32 2.0, %v1260
    %v1269 = vsub.f32 2.0, %v1261
    %v1270 = vsub.f32 2.0, %v1262
    %v1271 = vsub.f32 2.0, %v1263
    %v1272 = vsub.f32 2.0, %v1264
    %v1273 = vsub.f32 2.0, %v1265
    %v1274 = vsub.f32 2.0, %v1266
    %v1275 = vsub.f32 2.0, %v1267
    %v1276 = vmul.f32 %v1252, %v1268
    %v1277 = vmul.f32 %v1253, %v1269
    %v1278 = vmul.f32 %v1254, %v1270
    %v1279 = vmul.f32 %v1255, %v1271
    %v1280 = vmul.f32 %v1256, %v1272
    %v1281 = vmul.f32 %v1257, %v1273
    %v1282 = vmul.f32 %v1258, %v1274
    %v1283 = vmul.f32 %v1259, %v1275
    %v1284 = vmul.f32 %v1213, %v1276
    %v1285 = vmul.f32 %v1215, %v1277
    %v1286 = vmul.f32 %v1217, %v1278
    %v1287 = vmul.f32 %v1219, %v1279
    %v1288 = vmul.f32 %v1221, %v1280
    %v1289 = vmul.f32 %v1223, %v1281
    %v1290 = vmul.f32 %v1225, %v1282
    %v1291 = vmul.f32 %v1227, %v1283
    %v1293 = vsel %vm118, %v1284, 0
    %v1296 = vsel %vm118, %v1285, 0
    %1298 = vmatpush.msra.mxu0 0.0
    %1299 = vmatpush.msra.mxu0 0.0
    %1300 = vmatpush.msra.mxu0 0.0
    %1301 = vmatpush.msra.mxu0 0.0
    %1302 = vmatpush.msra.mxu0 0.0
    %1303 = vmatpush.msra.mxu0 0.0
    %1304 = vmatpush.msra.mxu0 0.0
    %1305 = vmatpush.msra.mxu0 0.0
    %1306 = vmatpush.msra.mxu0 0.0
    %1307 = vmatpush.msra.mxu0 0.0
    %1308 = vmatpush.msra.mxu0 0.0
    %1309 = vmatpush.msra.mxu0 0.0
    %1310 = vmatpush.msra.mxu0 %v955
    %1311 = vmatpush.msra.mxu0 %v952
    %1312 = vmatpush.msra.mxu0 %v949
    %1313 = vmatpush.msra.mxu0 %v946
    %1314 = vmatmul.f32.gmra.mxu0 %v1293
    %v1315 = vpop.f32.mrf.mxu0
    %v1316 = vadd.f32 0.0, %v1315
    %1317 = vmatmul.f32.gmra.mxu0 %v1296
    %v1318 = vpop.f32.mrf.mxu0
    %v1319 = vadd.f32 0.0, %v1318
    %1320 = vdwg.mxu0
    %v1322 = vsel %vm118, %v1286, 0
    %v1325 = vsel %vm118, %v1287, 0
    %1327 = vmatpush.msra.mxu0 0.0
    %1328 = vmatpush.msra.mxu0 0.0
    %1329 = vmatpush.msra.mxu0 0.0
    %1330 = vmatpush.msra.mxu0 0.0
    %1331 = vmatpush.msra.mxu0 0.0
    %1332 = vmatpush.msra.mxu0 0.0
    %1333 = vmatpush.msra.mxu0 0.0
    %1334 = vmatpush.msra.mxu0 0.0
    %1335 = vmatpush.msra.mxu0 0.0
    %1336 = vmatpush.msra.mxu0 0.0
    %1337 = vmatpush.msra.mxu0 0.0
    %1338 = vmatpush.msra.mxu0 0.0
    %1339 = vmatpush.msra.mxu0 %v1011
    %1340 = vmatpush.msra.mxu0 %v1009
    %1341 = vmatpush.msra.mxu0 %v1007
    %1342 = vmatpush.msra.mxu0 %v1005
    %1343 = vmatmul.f32.gmra.mxu0 %v1322
    %v1344 = vpop.f32.mrf.mxu0
    %v1345 = vadd.f32 0.0, %v1344
    %1346 = vmatmul.f32.gmra.mxu0 %v1325
    %v1347 = vpop.f32.mrf.mxu0
    %v1348 = vadd.f32 0.0, %v1347
    %1349 = vdwg.mxu0
    %v1351 = vsel %vm118, %v1288, 0
    %v1354 = vsel %vm118, %v1289, 0
    %1356 = vmatpush.msra.mxu0 0.0
    %1357 = vmatpush.msra.mxu0 0.0
    %1358 = vmatpush.msra.mxu0 0.0
    %1359 = vmatpush.msra.mxu0 0.0
    %1360 = vmatpush.msra.mxu0 0.0
    %1361 = vmatpush.msra.mxu0 0.0
    %1362 = vmatpush.msra.mxu0 0.0
    %1363 = vmatpush.msra.mxu0 0.0
    %1364 = vmatpush.msra.mxu0 0.0
    %1365 = vmatpush.msra.mxu0 0.0
    %1366 = vmatpush.msra.mxu0 0.0
    %1367 = vmatpush.msra.mxu0 0.0
    %1368 = vmatpush.msra.mxu0 %v1023
    %1369 = vmatpush.msra.mxu0 %v1021
    %1370 = vmatpush.msra.mxu0 %v1019
    %1371 = vmatpush.msra.mxu0 %v1017
    %1372 = vmatmul.f32.gmra.mxu0 %v1351
    %v1373 = vpop.f32.mrf.mxu0
    %v1374 = vadd.f32 0.0, %v1373
    %1375 = vmatmul.f32.gmra.mxu0 %v1354
    %v1376 = vpop.f32.mrf.mxu0
    %v1377 = vadd.f32 0.0, %v1376
    %1378 = vdwg.mxu0
    %v1380 = vsel %vm118, %v1290, 0
    %v1383 = vsel %vm118, %v1291, 0
    %1385 = vmatpush.msra.mxu0 0.0
    %1386 = vmatpush.msra.mxu0 0.0
    %1387 = vmatpush.msra.mxu0 0.0
    %1388 = vmatpush.msra.mxu0 0.0
    %1389 = vmatpush.msra.mxu0 0.0
    %1390 = vmatpush.msra.mxu0 0.0
    %1391 = vmatpush.msra.mxu0 0.0
    %1392 = vmatpush.msra.mxu0 0.0
    %1393 = vmatpush.msra.mxu0 0.0
    %1394 = vmatpush.msra.mxu0 0.0
    %1395 = vmatpush.msra.mxu0 0.0
    %1396 = vmatpush.msra.mxu0 0.0
    %1397 = vmatpush.msra.mxu0 %v1035
    %1398 = vmatpush.msra.mxu0 %v1033
    %1399 = vmatpush.msra.mxu0 %v1031
    %1400 = vmatpush.msra.mxu0 %v1029
    %1401 = vmatmul.f32.gmra.mxu0 %v1380
    %v1402 = vpop.f32.mrf.mxu0
    %v1403 = vadd.f32 0.0, %v1402
    %1404 = vmatmul.f32.gmra.mxu0 %v1383
    %v1405 = vpop.f32.mrf.mxu0
    %v1406 = vadd.f32 0.0, %v1405
    %1407 = vdwg.mxu0
    %1408 = vrot.lane.b32.xlu0 %v808, 32
    %v1409 = vpop.permute.xlu0 %1408
    %v1412 = vsel %vm234, %v1316, 0
    %v1415 = vsel %vm234, %v1319, 0
    %1417 = vmatpush.msra.mxu0 0.0
    %1418 = vmatpush.msra.mxu0 0.0
    %1419 = vmatpush.msra.mxu0 0.0
    %1420 = vmatpush.msra.mxu0 0.0
    %1421 = vmatpush.msra.mxu0 0.0
    %1422 = vmatpush.msra.mxu0 0.0
    %1423 = vmatpush.msra.mxu0 0.0
    %1424 = vmatpush.msra.mxu0 0.0
    %1425 = vmatpush.msra.mxu0 0.0
    %1426 = vmatpush.msra.mxu0 0.0
    %1427 = vmatpush.msra.mxu0 0.0
    %1428 = vmatpush.msra.mxu0 0.0
    %1429 = vmatpush.msra.mxu0 0.0
    %1430 = vmatpush.msra.mxu0 0.0
    %1431 = vmatpush.msra.mxu0 0.0
    %1432 = vmatpush.msra.mxu0 %v1409
    %1433 = vmatmul.f32.gmra.mxu0 %v1412
    %v1434 = vpop.f32.mrf.mxu0
    %v1435 = vadd.f32 0.0, %v1434
    %1436 = vmatmul.f32.gmra.mxu0 %v1415
    %v1437 = vpop.f32.mrf.mxu0
    %v1438 = vadd.f32 0.0, %v1437
    %1439 = vdwg.mxu0
    %1440 = vrot.lane.b32.xlu0 %v809, 32
    %v1441 = vpop.permute.xlu0 %1440
    %v1444 = vsel %vm234, %v1345, 0
    %v1447 = vsel %vm234, %v1348, 0
    %1449 = vmatpush.msra.mxu0 0.0
    %1450 = vmatpush.msra.mxu0 0.0
    %1451 = vmatpush.msra.mxu0 0.0
    %1452 = vmatpush.msra.mxu0 0.0
    %1453 = vmatpush.msra.mxu0 0.0
    %1454 = vmatpush.msra.mxu0 0.0
    %1455 = vmatpush.msra.mxu0 0.0
    %1456 = vmatpush.msra.mxu0 0.0
    %1457 = vmatpush.msra.mxu0 0.0
    %1458 = vmatpush.msra.mxu0 0.0
    %1459 = vmatpush.msra.mxu0 0.0
    %1460 = vmatpush.msra.mxu0 0.0
    %1461 = vmatpush.msra.mxu0 0.0
    %1462 = vmatpush.msra.mxu0 0.0
    %1463 = vmatpush.msra.mxu0 0.0
    %1464 = vmatpush.msra.mxu0 %v1441
    %1465 = vmatmul.f32.gmra.mxu0 %v1444
    %v1466 = vpop.f32.mrf.mxu0
    %v1467 = vadd.f32 0.0, %v1466
    %1468 = vmatmul.f32.gmra.mxu0 %v1447
    %v1469 = vpop.f32.mrf.mxu0
    %v1470 = vadd.f32 0.0, %v1469
    %1471 = vdwg.mxu0
    %1472 = vrot.lane.b32.xlu0 %v810, 32
    %v1473 = vpop.permute.xlu0 %1472
    %v1476 = vsel %vm234, %v1374, 0
    %v1479 = vsel %vm234, %v1377, 0
    %1481 = vmatpush.msra.mxu0 0.0
    %1482 = vmatpush.msra.mxu0 0.0
    %1483 = vmatpush.msra.mxu0 0.0
    %1484 = vmatpush.msra.mxu0 0.0
    %1485 = vmatpush.msra.mxu0 0.0
    %1486 = vmatpush.msra.mxu0 0.0
    %1487 = vmatpush.msra.mxu0 0.0
    %1488 = vmatpush.msra.mxu0 0.0
    %1489 = vmatpush.msra.mxu0 0.0
    %1490 = vmatpush.msra.mxu0 0.0
    %1491 = vmatpush.msra.mxu0 0.0
    %1492 = vmatpush.msra.mxu0 0.0
    %1493 = vmatpush.msra.mxu0 0.0
    %1494 = vmatpush.msra.mxu0 0.0
    %1495 = vmatpush.msra.mxu0 0.0
    %1496 = vmatpush.msra.mxu0 %v1473
    %1497 = vmatmul.f32.gmra.mxu0 %v1476
    %v1498 = vpop.f32.mrf.mxu0
    %v1499 = vadd.f32 0.0, %v1498
    %1500 = vmatmul.f32.gmra.mxu0 %v1479
    %v1501 = vpop.f32.mrf.mxu0
    %v1502 = vadd.f32 0.0, %v1501
    %1503 = vdwg.mxu0
    %1504 = vrot.lane.b32.xlu0 %v811, 32
    %v1505 = vpop.permute.xlu0 %1504
    %v1508 = vsel %vm234, %v1403, 0
    %v1511 = vsel %vm234, %v1406, 0
    %1513 = vmatpush.msra.mxu0 0.0
    %1514 = vmatpush.msra.mxu0 0.0
    %1515 = vmatpush.msra.mxu0 0.0
    %1516 = vmatpush.msra.mxu0 0.0
    %1517 = vmatpush.msra.mxu0 0.0
    %1518 = vmatpush.msra.mxu0 0.0
    %1519 = vmatpush.msra.mxu0 0.0
    %1520 = vmatpush.msra.mxu0 0.0
    %1521 = vmatpush.msra.mxu0 0.0
    %1522 = vmatpush.msra.mxu0 0.0
    %1523 = vmatpush.msra.mxu0 0.0
    %1524 = vmatpush.msra.mxu0 0.0
    %1525 = vmatpush.msra.mxu0 0.0
    %1526 = vmatpush.msra.mxu0 0.0
    %1527 = vmatpush.msra.mxu0 0.0
    %1528 = vmatpush.msra.mxu0 %v1505
    %1529 = vmatmul.f32.gmra.mxu0 %v1508
    %v1530 = vpop.f32.mrf.mxu0
    %v1531 = vadd.f32 0.0, %v1530
    %1532 = vmatmul.f32.gmra.mxu0 %v1511
    %v1533 = vpop.f32.mrf.mxu0
    %v1534 = vadd.f32 0.0, %v1533
    %1535 = vdwg.mxu0
    %v1536 = vsel %vm118, %v1435, 0.0
    %v1537 = vsel %vm118, %v1467, 0.0
    %v1538 = vadd.f32 %v1536, %v1537
    %v1539 = vsel %vm118, %v1499, 0.0
    %v1540 = vadd.f32 %v1538, %v1539
    %v1541 = vsel %vm118, %v1531, 0.0
    %v1542 = vadd.f32 %v1540, %v1541
    %v1543 = vsel %vm118, %v1438, 0.0
    %v1544 = vsel %vm118, %v1470, 0.0
    %v1545 = vadd.f32 %v1543, %v1544
    %v1546 = vsel %vm118, %v1502, 0.0
    %v1547 = vadd.f32 %v1545, %v1546
    %v1548 = vsel %vm118, %v1534, 0.0
    %v1549 = vadd.f32 %v1547, %v1548
    %v1550 = vperm.slane %v957, 0
    %v1551 = vadd.f32 %v1542, %v1550
    %v1552 = vadd.f32 %v1549, %v1550
    %v1553 = vadd.f32 %v804, %v1551
    %v1554 = vadd.f32 %v805, %v1552
    %v1555 = vld [vmem:[%s8 + $0x9] sm:$0x1]
    %v1556 = vld [vmem:[%s8 + $0xa] sm:$0x1]
    %v1557 = vsel %vm118, %v1553, 0.0
    %1558 = vadd.xlane.f32.xlu0 %v1557
    %v1559 = vpop.xlane.xlu0 %1558
    %v1560 = vsel %vm118, %v1554, 0.0
    %1561 = vadd.xlane.f32.xlu0 %v1560
    %v1562 = vpop.xlane.xlu0 %1561
    %v1563 = vmul.f32 %v1559, %v761
    %v1564 = vmul.f32 %v1562, %v761
    %v1565 = vsub.f32 %v1553, %v1563
    %v1566 = vsub.f32 %v1554, %v1564
    %v1567 = vmul.f32 %v1565, %v1565
    %v1568 = vmul.f32 %v1566, %v1566
    %v1569 = vsel %vm118, %v1567, 0.0
    %1570 = vadd.xlane.f32.xlu0 %v1569
    %v1571 = vpop.xlane.xlu0 %1570
    %v1572 = vsel %vm118, %v1568, 0.0
    %1573 = vadd.xlane.f32.xlu0 %v1572
    %v1574 = vpop.xlane.xlu0 %1573
    %v1575 = vmul.f32 %v1571, %v761
    %v1576 = vmul.f32 %v1574, %v761
    %v1577 = vadd.f32 %v1575, 1e-05
    %v1578 = vadd.f32 %v1576, 1e-05
    %v1579 = vrsqrt.pop %v1577
    %v1580 = vmul.f32 %v1579, %v1577
    %v1581 = vmul.f32 %v1580, %v1579
    %v1582 = vmul.f32 0.5, %v1581
    %v1583 = vsub.f32 1.5, %v1582
    %v1584 = vmul.f32 %v1579, %v1583
    %vm1585 = vweird.f32 %v1577
    %vm1586 = vweird.f32 %v1579
    %vm1587 = vmor %vm1585, %vm1586
    %v1588 = vsel %vm1587, %v1579, %v1584
    %v1589 = vrsqrt.pop %v1578
    %v1590 = vmul.f32 %v1589, %v1578
    %v1591 = vmul.f32 %v1590, %v1589
    %v1592 = vmul.f32 0.5, %v1591
    %v1593 = vsub.f32 1.5, %v1592
    %v1594 = vmul.f32 %v1589, %v1593
    %vm1595 = vweird.f32 %v1578
    %vm1596 = vweird.f32 %v1589
    %vm1597 = vmor %vm1595, %vm1596
    %v1598 = vsel %vm1597, %v1589, %v1594
    %v1599 = vmul.f32 %v1565, %v1588
    %v1600 = vmul.f32 %v1566, %v1598
    %v1601 = vperm.slane %v1555, 0
    %v1602 = vmul.f32 %v1599, %v1601
    %v1603 = vmul.f32 %v1600, %v1601
    %v1604 = vperm.slane %v1556, 0
    %v1605 = vadd.f32 %v1602, %v1604
    %v1606 = vadd.f32 %v1603, %v1604
    %v1607 = vld [vmem:[#allocation7 + $0x10] sm:$0xff]
    %v1608 = vld [vmem:[#allocation7 + $0x28] sm:$0xff]
    %v1609 = vld [vmem:[#allocation7 + $0x40] sm:$0xff]
    %v1610 = vld [vmem:[#allocation7 + $0x58] sm:$0xff]
    %v1611 = vld [vmem:[%s8 + $0xb] sm:$0x1]
    %v1612 = vperm.slane %v1611, 0
    %v1614 = vsel %vm118, %v1605, 0
    %v1617 = vsel %vm118, %v1606, 0
    %1619 = vmatpush.msra.mxu0 0.0
    %1620 = vmatpush.msra.mxu0 0.0
    %1621 = vmatpush.msra.mxu0 0.0
    %1622 = vmatpush.msra.mxu0 0.0
    %1623 = vmatpush.msra.mxu0 0.0
    %1624 = vmatpush.msra.mxu0 0.0
    %1625 = vmatpush.msra.mxu0 0.0
    %1626 = vmatpush.msra.mxu0 0.0
    %1627 = vmatpush.msra.mxu0 0.0
    %1628 = vmatpush.msra.mxu0 0.0
    %1629 = vmatpush.msra.mxu0 0.0
    %1630 = vmatpush.msra.mxu0 0.0
    %1631 = vmatpush.msra.mxu0 %v1610
    %1632 = vmatpush.msra.mxu0 %v1609
    %1633 = vmatpush.msra.mxu0 %v1608
    %1634 = vmatpush.msra.mxu0 %v1607
    %1635 = vmatmul.f32.gmra.mxu0 %v1614
    %v1636 = vpop.f32.mrf.mxu0
    %v1637 = vadd.f32 %v1612, %v1636
    %1638 = vmatmul.f32.gmra.mxu0 %v1617
    %v1639 = vpop.f32.mrf.mxu0
    %v1640 = vadd.f32 %v1612, %v1639
    %1641 = vdwg.mxu0
    %v1642 = vmax.f32 %v1637, 0.0
    %v1643 = vmax.f32 %v1640, 0.0
    %v1644 = vld [vmem:[%s8 + $0xc] sm:$0x1]
    %v1645 = vperm.slane %v1644, 0
    %1650 = vrot.lane.b32.xlu0 %v1607, 64
    %v1651 = vpop.permute.xlu0 %1650
    %1652 = vrot.lane.b32.xlu0 %v1608, 64
    %v1653 = vpop.permute.xlu0 %1652
    %1654 = vrot.lane.b32.xlu0 %v1609, 64
    %v1655 = vpop.permute.xlu0 %1654
    %1656 = vrot.lane.b32.xlu0 %v1610, 64
    %v1657 = vpop.permute.xlu0 %1656
    %vm1658 = vcmask 523264
    %v1660 = vsel %vm1658, %v1642, 0
    %v1663 = vsel %vm1658, %v1643, 0
    %v1665 = vsel %vm1658, %v1651, 0
    %v1667 = vsel %vm1658, %v1653, 0
    %v1669 = vsel %vm1658, %v1655, 0
    %v1671 = vsel %vm1658, %v1657, 0
    %1673 = vmatpush.xpose.msra.mxu0 0.0
    %1674 = vmatpush.xpose.msra.mxu0 0.0
    %1675 = vmatpush.xpose.msra.mxu0 0.0
    %1676 = vmatpush.xpose.msra.mxu0 0.0
    %1677 = vmatpush.xpose.msra.mxu0 0.0
    %1678 = vmatpush.xpose.msra.mxu0 0.0
    %1679 = vmatpush.xpose.msra.mxu0 0.0
    %1680 = vmatpush.xpose.msra.mxu0 0.0
    %1681 = vmatpush.xpose.msra.mxu0 0.0
    %1682 = vmatpush.xpose.msra.mxu0 0.0
    %1683 = vmatpush.xpose.msra.mxu0 0.0
    %1684 = vmatpush.xpose.msra.mxu0 0.0
    %1685 = vmatpush.xpose.msra.mxu0 %v1671
    %1686 = vmatpush.xpose.msra.mxu0 %v1669
    %1687 = vmatpush.xpose.msra.mxu0 %v1667
    %1688 = vmatpush.xpose.msra.mxu0 %v1665
    %1689 = vmatmul.f32.gmra.mxu0 %v1660
    %v1690 = vpop.f32.mrf.mxu0
    %v1691 = vadd.f32 %v1645, %v1690
    %1692 = vmatmul.f32.gmra.mxu0 %v1663
    %v1693 = vpop.f32.mrf.mxu0
    %v1694 = vadd.f32 %v1645, %v1693
    %1695 = vdwg.mxu0
    %v1696 = vadd.f32 %v1605, %v1691
    %v1697 = vadd.f32 %v1606, %v1694
    %v1698 = vld [vmem:[%s8 + $0xd] sm:$0x1]
    %v1699 = vld [vmem:[%s8 + $0xe] sm:$0x1]
    %v1700 = vsel %vm118, %v1696, 0.0
    %1701 = vadd.xlane.f32.xlu0 %v1700
    %v1702 = vpop.xlane.xlu0 %1701
    %v1703 = vsel %vm118, %v1697, 0.0
    %1704 = vadd.xlane.f32.xlu0 %v1703
    %v1705 = vpop.xlane.xlu0 %1704
    %v1706 = vmul.f32 %v1702, %v761
    %v1707 = vmul.f32 %v1705, %v761
    %v1708 = vsub.f32 %v1696, %v1706
    %v1709 = vsub.f32 %v1697, %v1707
    %v1710 = vmul.f32 %v1708, %v1708
    %v1711 = vmul.f32 %v1709, %v1709
    %v1712 = vsel %vm118, %v1710, 0.0
    %1713 = vadd.xlane.f32.xlu0 %v1712
    %v1714 = vpop.xlane.xlu0 %1713
    %v1715 = vsel %vm118, %v1711, 0.0
    %1716 = vadd.xlane.f32.xlu0 %v1715
    %v1717 = vpop.xlane.xlu0 %1716
    %v1718 = vmul.f32 %v1714, %v761
    %v1719 = vmul.f32 %v1717, %v761
    %v1720 = vadd.f32 %v1718, 1e-05
    %v1721 = vadd.f32 %v1719, 1e-05
    %v1722 = vrsqrt.pop %v1720
    %v1723 = vmul.f32 %v1722, %v1720
    %v1724 = vmul.f32 %v1723, %v1722
    %v1725 = vmul.f32 0.5, %v1724
    %v1726 = vsub.f32 1.5, %v1725
    %v1727 = vmul.f32 %v1722, %v1726
    %vm1728 = vweird.f32 %v1720
    %vm1729 = vweird.f32 %v1722
    %vm1730 = vmor %vm1728, %vm1729
    %v1731 = vsel %vm1730, %v1722, %v1727
    %v1732 = vrsqrt.pop %v1721
    %v1733 = vmul.f32 %v1732, %v1721
    %v1734 = vmul.f32 %v1733, %v1732
    %v1735 = vmul.f32 0.5, %v1734
    %v1736 = vsub.f32 1.5, %v1735
    %v1737 = vmul.f32 %v1732, %v1736
    %vm1738 = vweird.f32 %v1721
    %vm1739 = vweird.f32 %v1732
    %vm1740 = vmor %vm1738, %vm1739
    %v1741 = vsel %vm1740, %v1732, %v1737
    %v1742 = vmul.f32 %v1708, %v1731
    %v1743 = vmul.f32 %v1709, %v1741
    %v1744 = vperm.slane %v1698, 0
    %v1745 = vmul.f32 %v1742, %v1744
    %v1746 = vmul.f32 %v1743, %v1744
    %v1747 = vperm.slane %v1699, 0
    %v1748 = vadd.f32 %v1745, %v1747
    %v1749 = vadd.f32 %v1746, %v1747
    %v1750 = vld [vmem:[%s9] sm:$0x1]
    %v1751 = vld [vmem:[%s10] sm:$0x1]
    %v1752 = vsel %vm118, %v1748, 0.0
    %1753 = vadd.xlane.f32.xlu0 %v1752
    %v1754 = vpop.xlane.xlu0 %1753
    %v1755 = vsel %vm118, %v1749, 0.0
    %1756 = vadd.xlane.f32.xlu0 %v1755
    %v1757 = vpop.xlane.xlu0 %1756
    %v1758 = vmul.f32 %v1754, %v761
    %v1759 = vmul.f32 %v1757, %v761
    %v1760 = vsub.f32 %v1748, %v1758
    %v1761 = vsub.f32 %v1749, %v1759
    %v1762 = vmul.f32 %v1760, %v1760
    %v1763 = vmul.f32 %v1761, %v1761
    %v1764 = vsel %vm118, %v1762, 0.0
    %1765 = vadd.xlane.f32.xlu0 %v1764
    %v1766 = vpop.xlane.xlu0 %1765
    %v1767 = vsel %vm118, %v1763, 0.0
    %1768 = vadd.xlane.f32.xlu0 %v1767
    %v1769 = vpop.xlane.xlu0 %1768
    %v1770 = vmul.f32 %v1766, %v761
    %v1771 = vmul.f32 %v1769, %v761
    %v1772 = vadd.f32 %v1770, 1e-05
    %v1773 = vadd.f32 %v1771, 1e-05
    %v1774 = vrsqrt.pop %v1772
    %v1775 = vmul.f32 %v1774, %v1772
    %v1776 = vmul.f32 %v1775, %v1774
    %v1777 = vmul.f32 0.5, %v1776
    %v1778 = vsub.f32 1.5, %v1777
    %v1779 = vmul.f32 %v1774, %v1778
    %vm1780 = vweird.f32 %v1772
    %vm1781 = vweird.f32 %v1774
    %vm1782 = vmor %vm1780, %vm1781
    %v1783 = vsel %vm1782, %v1774, %v1779
    %v1784 = vrsqrt.pop %v1773
    %v1785 = vmul.f32 %v1784, %v1773
    %v1786 = vmul.f32 %v1785, %v1784
    %v1787 = vmul.f32 0.5, %v1786
    %v1788 = vsub.f32 1.5, %v1787
    %v1789 = vmul.f32 %v1784, %v1788
    %vm1790 = vweird.f32 %v1773
    %vm1791 = vweird.f32 %v1784
    %vm1792 = vmor %vm1790, %vm1791
    %v1793 = vsel %vm1792, %v1784, %v1789
    %v1794 = vmul.f32 %v1760, %v1783
    %v1795 = vmul.f32 %v1761, %v1793
    %v1797 = vperm.slane %v1750, 0
    %v1799 = vmul.f32 %v1794, %v1797
    %v1800 = vmul.f32 %v1795, %v1797
    %v1802 = vperm.slane %v1751, 0
    %v1804 = vadd.f32 %v1799, %v1802
    %v1805 = vadd.f32 %v1800, %v1802
    %1806 = vst.msk [vmem:[#allocation8] sm:$0xff] %vm118, %v1804
    %1807 = vst.msk [vmem:[#allocation8 + $0x8] sm:$0xff] %vm118, %v1805
    %v1808 = vadd.f32 %v1748, %v88
    %v1809 = vadd.f32 %v1749, %v89
    %s1810 = scalar_lea.vmem [#allocation7], 96
    %v1811 = vld [vmem:[%s1810] sm:$0xff]
    %v1812 = vld [vmem:[%s1810 + $0x18] sm:$0xff]
    %v1813 = vld [vmem:[%s1810 + $0x30] sm:$0xff]
    %v1814 = vld [vmem:[%s1810 + $0x48] sm:$0xff]
    %s1815 = scalar_lea.vmem %s8, 16
    %v1816 = vld [vmem:[%s1815] sm:$0x1]
    %v1817 = vperm.slane %v1816, 0
    %v1819 = vsel %vm118, %v1808, 0
    %v1822 = vsel %vm118, %v1809, 0
    %1824 = vmatpush.msra.mxu0 0.0
    %1825 = vmatpush.msra.mxu0 0.0
    %1826 = vmatpush.msra.mxu0 0.0
    %1827 = vmatpush.msra.mxu0 0.0
    %1828 = vmatpush.msra.mxu0 0.0
    %1829 = vmatpush.msra.mxu0 0.0
    %1830 = vmatpush.msra.mxu0 0.0
    %1831 = vmatpush.msra.mxu0 0.0
    %1832 = vmatpush.msra.mxu0 0.0
    %1833 = vmatpush.msra.mxu0 0.0
    %1834 = vmatpush.msra.mxu0 0.0
    %1835 = vmatpush.msra.mxu0 0.0
    %1836 = vmatpush.msra.mxu0 %v1814
    %1837 = vmatpush.msra.mxu0 %v1813
    %1838 = vmatpush.msra.mxu0 %v1812
    %1839 = vmatpush.msra.mxu0 %v1811
    %1840 = vmatmul.f32.gmra.mxu0 %v1819
    %v1841 = vpop.f32.mrf.mxu0
    %v1842 = vadd.f32 %v1817, %v1841
    %1843 = vmatmul.f32.gmra.mxu0 %v1822
    %v1844 = vpop.f32.mrf.mxu0
    %v1845 = vadd.f32 %v1817, %v1844
    %1846 = vdwg.mxu0
    %v1847 = vld [vmem:[%s1815 + $0x1] sm:$0x1]
    %v1848 = vperm.slane %v1847, 0
    %1853 = vrot.lane.b32.xlu0 %v1811, 64
    %v1854 = vpop.permute.xlu0 %1853
    %1855 = vrot.lane.b32.xlu0 %v1812, 64
    %v1856 = vpop.permute.xlu0 %1855
    %1857 = vrot.lane.b32.xlu0 %v1813, 64
    %v1858 = vpop.permute.xlu0 %1857
    %1859 = vrot.lane.b32.xlu0 %v1814, 64
    %v1860 = vpop.permute.xlu0 %1859
    %v1866 = vsel %vm118, %v1748, 0
    %v1869 = vsel %vm118, %v1749, 0
    %1871 = vmatpush.msra.mxu0 0.0
    %1872 = vmatpush.msra.mxu0 0.0
    %1873 = vmatpush.msra.mxu0 0.0
    %1874 = vmatpush.msra.mxu0 0.0
    %1875 = vmatpush.msra.mxu0 0.0
    %1876 = vmatpush.msra.mxu0 0.0
    %1877 = vmatpush.msra.mxu0 0.0
    %1878 = vmatpush.msra.mxu0 0.0
    %1879 = vmatpush.msra.mxu0 0.0
    %1880 = vmatpush.msra.mxu0 0.0
    %1881 = vmatpush.msra.mxu0 0.0
    %1882 = vmatpush.msra.mxu0 0.0
    %1883 = vmatpush.msra.mxu0 %v1860
    %1884 = vmatpush.msra.mxu0 %v1858
    %1885 = vmatpush.msra.mxu0 %v1856
    %1886 = vmatpush.msra.mxu0 %v1854
    %1887 = vmatmul.f32.gmra.mxu0 %v1866
    %v1888 = vpop.f32.mrf.mxu0
    %v1889 = vadd.f32 %v1848, %v1888
    %1890 = vmatmul.f32.gmra.mxu0 %v1869
    %v1891 = vpop.f32.mrf.mxu0
    %v1892 = vadd.f32 %v1848, %v1891
    %1893 = vdwg.mxu0
    %v1894 = vld [vmem:[%s1815 + $0x2] sm:$0x1]
    %1897 = vrot.lane.b32.xlu0 %v1842, 120
    %v1898 = vpop.permute.xlu0 %1897
    %1899 = vrot.lane.b32.xlu0 %v1845, 120
    %v1900 = vpop.permute.xlu0 %1899
    %1901 = vrot.lane.b32.xlu0 %v1842, 112
    %v1902 = vpop.permute.xlu0 %1901
    %1903 = vrot.lane.b32.xlu0 %v1845, 112
    %v1904 = vpop.permute.xlu0 %1903
    %1905 = vrot.lane.b32.xlu0 %v1842, 104
    %v1906 = vpop.permute.xlu0 %1905
    %1907 = vrot.lane.b32.xlu0 %v1845, 104
    %v1908 = vpop.permute.xlu0 %1907
    %1911 = vrot.lane.b32.xlu0 %v1889, 120
    %v1912 = vpop.permute.xlu0 %1911
    %1913 = vrot.lane.b32.xlu0 %v1892, 120
    %v1914 = vpop.permute.xlu0 %1913
    %1917 = vrot.lane.b32.xlu0 %v1889, 112
    %v1918 = vpop.permute.xlu0 %1917
    %1919 = vrot.lane.b32.xlu0 %v1892, 112
    %v1920 = vpop.permute.xlu0 %1919
    %1923 = vrot.lane.b32.xlu0 %v1889, 104
    %v1924 = vpop.permute.xlu0 %1923
    %1925 = vrot.lane.b32.xlu0 %v1892, 104
    %v1926 = vpop.permute.xlu0 %1925
    %1929 = vrot.lane.b32.xlu0 %v1842, 96
    %v1930 = vpop.permute.xlu0 %1929
    %1931 = vrot.lane.b32.xlu0 %v1845, 96
    %v1932 = vpop.permute.xlu0 %1931
    %v1933 = vsel %vm234, %v1842, 0
    %v1935 = vsel %vm234, %v1845, 0
    %v1937 = vsel %vm234, %v1930, 0
    %v1939 = vsel %vm234, %v1932, 0
    %1941 = vmatpush.xpose.msra.mxu0 0.0
    %1942 = vmatpush.xpose.msra.mxu0 0.0
    %1943 = vmatpush.xpose.msra.mxu0 0.0
    %1944 = vmatpush.xpose.msra.mxu0 0.0
    %1945 = vmatpush.xpose.msra.mxu0 0.0
    %1946 = vmatpush.xpose.msra.mxu0 0.0
    %1947 = vmatpush.xpose.msra.mxu0 0.0
    %1948 = vmatpush.xpose.msra.mxu0 0.0
    %1949 = vmatpush.xpose.msra.mxu0 0.0
    %1950 = vmatpush.xpose.msra.mxu0 0.0
    %1951 = vmatpush.xpose.msra.mxu0 0.0
    %1952 = vmatpush.xpose.msra.mxu0 0.0
    %1953 = vmatpush.xpose.msra.mxu0 0.0
    %1954 = vmatpush.xpose.msra.mxu0 0.0
    %1955 = vmatpush.xpose.msra.mxu0 %v1939
    %1956 = vmatpush.xpose.msra.mxu0 %v1937
    %1957 = vmatmul.f32.gmra.mxu0 %v1933
    %v1958 = vpop.f32.mrf.mxu0
    %v1959 = vadd.f32 %v106, %v1958
    %1960 = vmatmul.f32.gmra.mxu0 %v1935
    %v1961 = vpop.f32.mrf.mxu0
    %v1962 = vadd.f32 %v107, %v1961
    %1963 = vdwg.mxu0
    %1964 = vrot.lane.b32.xlu0 %v1898, 96
    %v1965 = vpop.permute.xlu0 %1964
    %1966 = vrot.lane.b32.xlu0 %v1900, 96
    %v1967 = vpop.permute.xlu0 %1966
    %v1968 = vsel %vm234, %v1898, 0
    %v1970 = vsel %vm234, %v1900, 0
    %v1972 = vsel %vm234, %v1965, 0
    %v1974 = vsel %vm234, %v1967, 0
    %1976 = vmatpush.xpose.msra.mxu0 0.0
    %1977 = vmatpush.xpose.msra.mxu0 0.0
    %1978 = vmatpush.xpose.msra.mxu0 0.0
    %1979 = vmatpush.xpose.msra.mxu0 0.0
    %1980 = vmatpush.xpose.msra.mxu0 0.0
    %1981 = vmatpush.xpose.msra.mxu0 0.0
    %1982 = vmatpush.xpose.msra.mxu0 0.0
    %1983 = vmatpush.xpose.msra.mxu0 0.0
    %1984 = vmatpush.xpose.msra.mxu0 0.0
    %1985 = vmatpush.xpose.msra.mxu0 0.0
    %1986 = vmatpush.xpose.msra.mxu0 0.0
    %1987 = vmatpush.xpose.msra.mxu0 0.0
    %1988 = vmatpush.xpose.msra.mxu0 0.0
    %1989 = vmatpush.xpose.msra.mxu0 0.0
    %1990 = vmatpush.xpose.msra.mxu0 %v1974
    %1991 = vmatpush.xpose.msra.mxu0 %v1972
    %1992 = vmatmul.f32.gmra.mxu0 %v1968
    %v1993 = vpop.f32.mrf.mxu0
    %v1994 = vadd.f32 %v106, %v1993
    %1995 = vmatmul.f32.gmra.mxu0 %v1970
    %v1996 = vpop.f32.mrf.mxu0
    %v1997 = vadd.f32 %v107, %v1996
    %1998 = vdwg.mxu0
    %1999 = vrot.lane.b32.xlu0 %v1902, 96
    %v2000 = vpop.permute.xlu0 %1999
    %2001 = vrot.lane.b32.xlu0 %v1904, 96
    %v2002 = vpop.permute.xlu0 %2001
    %v2003 = vsel %vm234, %v1902, 0
    %v2005 = vsel %vm234, %v1904, 0
    %v2007 = vsel %vm234, %v2000, 0
    %v2009 = vsel %vm234, %v2002, 0
    %2011 = vmatpush.xpose.msra.mxu0 0.0
    %2012 = vmatpush.xpose.msra.mxu0 0.0
    %2013 = vmatpush.xpose.msra.mxu0 0.0
    %2014 = vmatpush.xpose.msra.mxu0 0.0
    %2015 = vmatpush.xpose.msra.mxu0 0.0
    %2016 = vmatpush.xpose.msra.mxu0 0.0
    %2017 = vmatpush.xpose.msra.mxu0 0.0
    %2018 = vmatpush.xpose.msra.mxu0 0.0
    %2019 = vmatpush.xpose.msra.mxu0 0.0
    %2020 = vmatpush.xpose.msra.mxu0 0.0
    %2021 = vmatpush.xpose.msra.mxu0 0.0
    %2022 = vmatpush.xpose.msra.mxu0 0.0
    %2023 = vmatpush.xpose.msra.mxu0 0.0
    %2024 = vmatpush.xpose.msra.mxu0 0.0
    %2025 = vmatpush.xpose.msra.mxu0 %v2009
    %2026 = vmatpush.xpose.msra.mxu0 %v2007
    %2027 = vmatmul.f32.gmra.mxu0 %v2003
    %v2028 = vpop.f32.mrf.mxu0
    %v2029 = vadd.f32 %v106, %v2028
    %2030 = vmatmul.f32.gmra.mxu0 %v2005
    %v2031 = vpop.f32.mrf.mxu0
    %v2032 = vadd.f32 %v107, %v2031
    %2033 = vdwg.mxu0
    %2034 = vrot.lane.b32.xlu0 %v1906, 96
    %v2035 = vpop.permute.xlu0 %2034
    %2036 = vrot.lane.b32.xlu0 %v1908, 96
    %v2037 = vpop.permute.xlu0 %2036
    %v2038 = vsel %vm234, %v1906, 0
    %v2040 = vsel %vm234, %v1908, 0
    %v2042 = vsel %vm234, %v2035, 0
    %v2044 = vsel %vm234, %v2037, 0
    %2046 = vmatpush.xpose.msra.mxu0 0.0
    %2047 = vmatpush.xpose.msra.mxu0 0.0
    %2048 = vmatpush.xpose.msra.mxu0 0.0
    %2049 = vmatpush.xpose.msra.mxu0 0.0
    %2050 = vmatpush.xpose.msra.mxu0 0.0
    %2051 = vmatpush.xpose.msra.mxu0 0.0
    %2052 = vmatpush.xpose.msra.mxu0 0.0
    %2053 = vmatpush.xpose.msra.mxu0 0.0
    %2054 = vmatpush.xpose.msra.mxu0 0.0
    %2055 = vmatpush.xpose.msra.mxu0 0.0
    %2056 = vmatpush.xpose.msra.mxu0 0.0
    %2057 = vmatpush.xpose.msra.mxu0 0.0
    %2058 = vmatpush.xpose.msra.mxu0 0.0
    %2059 = vmatpush.xpose.msra.mxu0 0.0
    %2060 = vmatpush.xpose.msra.mxu0 %v2044
    %2061 = vmatpush.xpose.msra.mxu0 %v2042
    %2062 = vmatmul.f32.gmra.mxu0 %v2038
    %v2063 = vpop.f32.mrf.mxu0
    %v2064 = vadd.f32 %v106, %v2063
    %2065 = vmatmul.f32.gmra.mxu0 %v2040
    %v2066 = vpop.f32.mrf.mxu0
    %v2067 = vadd.f32 %v107, %v2066
    %2068 = vdwg.mxu0
    %v2069 = vsel %vm371, %v1959, -inf
    %2070 = vmax.xlane.f32.xlu0 %v2069
    %v2071 = vpop.xlane.xlu0 %2070
    %v2072 = vsel %vm371, %v1962, -inf
    %2073 = vmax.xlane.f32.xlu0 %v2072
    %v2074 = vpop.xlane.xlu0 %2073
    %v2075 = vsel %vm371, %v1994, -inf
    %2076 = vmax.xlane.f32.xlu0 %v2075
    %v2077 = vpop.xlane.xlu0 %2076
    %v2078 = vsel %vm371, %v1997, -inf
    %2079 = vmax.xlane.f32.xlu0 %v2078
    %v2080 = vpop.xlane.xlu0 %2079
    %v2081 = vsel %vm371, %v2029, -inf
    %2082 = vmax.xlane.f32.xlu0 %v2081
    %v2083 = vpop.xlane.xlu0 %2082
    %v2084 = vsel %vm371, %v2032, -inf
    %2085 = vmax.xlane.f32.xlu0 %v2084
    %v2086 = vpop.xlane.xlu0 %2085
    %v2087 = vsel %vm371, %v2064, -inf
    %2088 = vmax.xlane.f32.xlu0 %v2087
    %v2089 = vpop.xlane.xlu0 %2088
    %v2090 = vsel %vm371, %v2067, -inf
    %2091 = vmax.xlane.f32.xlu0 %v2090
    %v2092 = vpop.xlane.xlu0 %2091
    %v2093 = vsub.f32 %v1959, %v2071
    %v2094 = vsub.f32 %v1962, %v2074
    %v2095 = vsub.f32 %v1994, %v2077
    %v2096 = vsub.f32 %v1997, %v2080
    %v2097 = vsub.f32 %v2029, %v2083
    %v2098 = vsub.f32 %v2032, %v2086
    %v2099 = vsub.f32 %v2064, %v2089
    %v2100 = vsub.f32 %v2067, %v2092
    %v2101 = vmul.f32 %v2093, 1.442695
    %v2102 = vpow.pop %v2101
    %v2103 = vmul.f32 %v2094, 1.442695
    %v2104 = vpow.pop %v2103
    %v2105 = vmul.f32 %v2095, 1.442695
    %v2106 = vpow.pop %v2105
    %v2107 = vmul.f32 %v2096, 1.442695
    %v2108 = vpow.pop %v2107
    %v2109 = vmul.f32 %v2097, 1.442695
    %v2110 = vpow.pop %v2109
    %v2111 = vmul.f32 %v2098, 1.442695
    %v2112 = vpow.pop %v2111
    %v2113 = vmul.f32 %v2099, 1.442695
    %v2114 = vpow.pop %v2113
    %v2115 = vmul.f32 %v2100, 1.442695
    %v2116 = vpow.pop %v2115
    %v2117 = vsel %vm371, %v2102, 0.0
    %2118 = vadd.xlane.f32.xlu0 %v2117
    %v2119 = vpop.xlane.xlu0 %2118
    %v2120 = vsel %vm371, %v2104, 0.0
    %2121 = vadd.xlane.f32.xlu0 %v2120
    %v2122 = vpop.xlane.xlu0 %2121
    %v2123 = vsel %vm371, %v2106, 0.0
    %2124 = vadd.xlane.f32.xlu0 %v2123
    %v2125 = vpop.xlane.xlu0 %2124
    %v2126 = vsel %vm371, %v2108, 0.0
    %2127 = vadd.xlane.f32.xlu0 %v2126
    %v2128 = vpop.xlane.xlu0 %2127
    %v2129 = vsel %vm371, %v2110, 0.0
    %2130 = vadd.xlane.f32.xlu0 %v2129
    %v2131 = vpop.xlane.xlu0 %2130
    %v2132 = vsel %vm371, %v2112, 0.0
    %2133 = vadd.xlane.f32.xlu0 %v2132
    %v2134 = vpop.xlane.xlu0 %2133
    %v2135 = vsel %vm371, %v2114, 0.0
    %2136 = vadd.xlane.f32.xlu0 %v2135
    %v2137 = vpop.xlane.xlu0 %2136
    %v2138 = vsel %vm371, %v2116, 0.0
    %2139 = vadd.xlane.f32.xlu0 %v2138
    %v2140 = vpop.xlane.xlu0 %2139
    %v2141 = vrcp.pop %v2119
    %v2142 = vrcp.pop %v2122
    %v2143 = vrcp.pop %v2125
    %v2144 = vrcp.pop %v2128
    %v2145 = vrcp.pop %v2131
    %v2146 = vrcp.pop %v2134
    %v2147 = vrcp.pop %v2137
    %v2148 = vrcp.pop %v2140
    %v2149 = vmul.f32 %v2119, %v2141
    %v2150 = vmul.f32 %v2122, %v2142
    %v2151 = vmul.f32 %v2125, %v2143
    %v2152 = vmul.f32 %v2128, %v2144
    %v2153 = vmul.f32 %v2131, %v2145
    %v2154 = vmul.f32 %v2134, %v2146
    %v2155 = vmul.f32 %v2137, %v2147
    %v2156 = vmul.f32 %v2140, %v2148
    %v2157 = vsub.f32 2.0, %v2149
    %v2158 = vsub.f32 2.0, %v2150
    %v2159 = vsub.f32 2.0, %v2151
    %v2160 = vsub.f32 2.0, %v2152
    %v2161 = vsub.f32 2.0, %v2153
    %v2162 = vsub.f32 2.0, %v2154
    %v2163 = vsub.f32 2.0, %v2155
    %v2164 = vsub.f32 2.0, %v2156
    %v2165 = vmul.f32 %v2141, %v2157
    %v2166 = vmul.f32 %v2142, %v2158
    %v2167 = vmul.f32 %v2143, %v2159
    %v2168 = vmul.f32 %v2144, %v2160
    %v2169 = vmul.f32 %v2145, %v2161
    %v2170 = vmul.f32 %v2146, %v2162
    %v2171 = vmul.f32 %v2147, %v2163
    %v2172 = vmul.f32 %v2148, %v2164
    %v2173 = vmul.f32 %v2102, %v2165
    %v2174 = vmul.f32 %v2104, %v2166
    %v2175 = vmul.f32 %v2106, %v2167
    %v2176 = vmul.f32 %v2108, %v2168
    %v2177 = vmul.f32 %v2110, %v2169
    %v2178 = vmul.f32 %v2112, %v2170
    %v2179 = vmul.f32 %v2114, %v2171
    %v2180 = vmul.f32 %v2116, %v2172
    %v2182 = vsel %vm371, %v2173, 0
    %v2185 = vsel %vm371, %v2174, 0
    %2187 = vmatpush.msra.mxu0 0.0
    %2188 = vmatpush.msra.mxu0 0.0
    %2189 = vmatpush.msra.mxu0 0.0
    %2190 = vmatpush.msra.mxu0 0.0
    %2191 = vmatpush.msra.mxu0 0.0
    %2192 = vmatpush.msra.mxu0 0.0
    %2193 = vmatpush.msra.mxu0 0.0
    %2194 = vmatpush.msra.mxu0 0.0
    %2195 = vmatpush.msra.mxu0 0.0
    %2196 = vmatpush.msra.mxu0 0.0
    %2197 = vmatpush.msra.mxu0 0.0
    %2198 = vmatpush.msra.mxu0 0.0
    %2199 = vmatpush.msra.mxu0 0.0
    %2200 = vmatpush.msra.mxu0 0.0
    %2201 = vmatpush.msra.mxu0 %v1892
    %2202 = vmatpush.msra.mxu0 %v1889
    %2203 = vmatmul.f32.gmra.mxu0 %v2182
    %v2204 = vpop.f32.mrf.mxu0
    %v2205 = vadd.f32 0.0, %v2204
    %2206 = vmatmul.f32.gmra.mxu0 %v2185
    %v2207 = vpop.f32.mrf.mxu0
    %v2208 = vadd.f32 0.0, %v2207
    %2209 = vdwg.mxu0
    %v2211 = vsel %vm371, %v2175, 0
    %v2214 = vsel %vm371, %v2176, 0
    %2216 = vmatpush.msra.mxu0 0.0
    %2217 = vmatpush.msra.mxu0 0.0
    %2218 = vmatpush.msra.mxu0 0.0
    %2219 = vmatpush.msra.mxu0 0.0
    %2220 = vmatpush.msra.mxu0 0.0
    %2221 = vmatpush.msra.mxu0 0.0
    %2222 = vmatpush.msra.mxu0 0.0
    %2223 = vmatpush.msra.mxu0 0.0
    %2224 = vmatpush.msra.mxu0 0.0
    %2225 = vmatpush.msra.mxu0 0.0
    %2226 = vmatpush.msra.mxu0 0.0
    %2227 = vmatpush.msra.mxu0 0.0
    %2228 = vmatpush.msra.mxu0 0.0
    %2229 = vmatpush.msra.mxu0 0.0
    %2230 = vmatpush.msra.mxu0 %v1914
    %2231 = vmatpush.msra.mxu0 %v1912
    %2232 = vmatmul.f32.gmra.mxu0 %v2211
    %v2233 = vpop.f32.mrf.mxu0
    %v2234 = vadd.f32 0.0, %v2233
    %2235 = vmatmul.f32.gmra.mxu0 %v2214
    %v2236 = vpop.f32.mrf.mxu0
    %v2237 = vadd.f32 0.0, %v2236
    %2238 = vdwg.mxu0
    %v2240 = vsel %vm371, %v2177, 0
    %v2243 = vsel %vm371, %v2178, 0
    %2245 = vmatpush.msra.mxu0 0.0
    %2246 = vmatpush.msra.mxu0 0.0
    %2247 = vmatpush.msra.mxu0 0.0
    %2248 = vmatpush.msra.mxu0 0.0
    %2249 = vmatpush.msra.mxu0 0.0
    %2250 = vmatpush.msra.mxu0 0.0
    %2251 = vmatpush.msra.mxu0 0.0
    %2252 = vmatpush.msra.mxu0 0.0
    %2253 = vmatpush.msra.mxu0 0.0
    %2254 = vmatpush.msra.mxu0 0.0
    %2255 = vmatpush.msra.mxu0 0.0
    %2256 = vmatpush.msra.mxu0 0.0
    %2257 = vmatpush.msra.mxu0 0.0
    %2258 = vmatpush.msra.mxu0 0.0
    %2259 = vmatpush.msra.mxu0 %v1920
    %2260 = vmatpush.msra.mxu0 %v1918
    %2261 = vmatmul.f32.gmra.mxu0 %v2240
    %v2262 = vpop.f32.mrf.mxu0
    %v2263 = vadd.f32 0.0, %v2262
    %2264 = vmatmul.f32.gmra.mxu0 %v2243
    %v2265 = vpop.f32.mrf.mxu0
    %v2266 = vadd.f32 0.0, %v2265
    %2267 = vdwg.mxu0
    %v2269 = vsel %vm371, %v2179, 0
    %v2272 = vsel %vm371, %v2180, 0
    %2274 = vmatpush.msra.mxu0 0.0
    %2275 = vmatpush.msra.mxu0 0.0
    %2276 = vmatpush.msra.mxu0 0.0
    %2277 = vmatpush.msra.mxu0 0.0
    %2278 = vmatpush.msra.mxu0 0.0
    %2279 = vmatpush.msra.mxu0 0.0
    %2280 = vmatpush.msra.mxu0 0.0
    %2281 = vmatpush.msra.mxu0 0.0
    %2282 = vmatpush.msra.mxu0 0.0
    %2283 = vmatpush.msra.mxu0 0.0
    %2284 = vmatpush.msra.mxu0 0.0
    %2285 = vmatpush.msra.mxu0 0.0
    %2286 = vmatpush.msra.mxu0 0.0
    %2287 = vmatpush.msra.mxu0 0.0
    %2288 = vmatpush.msra.mxu0 %v1926
    %2289 = vmatpush.msra.mxu0 %v1924
    %2290 = vmatmul.f32.gmra.mxu0 %v2269
    %v2291 = vpop.f32.mrf.mxu0
    %v2292 = vadd.f32 0.0, %v2291
    %2293 = vmatmul.f32.gmra.mxu0 %v2272
    %v2294 = vpop.f32.mrf.mxu0
    %v2295 = vadd.f32 0.0, %v2294
    %2296 = vdwg.mxu0
    %2297 = vrot.lane.b32.xlu0 %v1811, 32
    %v2298 = vpop.permute.xlu0 %2297
    %v2301 = vsel %vm234, %v2205, 0
    %v2304 = vsel %vm234, %v2208, 0
    %2306 = vmatpush.msra.mxu0 0.0
    %2307 = vmatpush.msra.mxu0 0.0
    %2308 = vmatpush.msra.mxu0 0.0
    %2309 = vmatpush.msra.mxu0 0.0
    %2310 = vmatpush.msra.mxu0 0.0
    %2311 = vmatpush.msra.mxu0 0.0
    %2312 = vmatpush.msra.mxu0 0.0
    %2313 = vmatpush.msra.mxu0 0.0
    %2314 = vmatpush.msra.mxu0 0.0
    %2315 = vmatpush.msra.mxu0 0.0
    %2316 = vmatpush.msra.mxu0 0.0
    %2317 = vmatpush.msra.mxu0 0.0
    %2318 = vmatpush.msra.mxu0 0.0
    %2319 = vmatpush.msra.mxu0 0.0
    %2320 = vmatpush.msra.mxu0 0.0
    %2321 = vmatpush.msra.mxu0 %v2298
    %2322 = vmatmul.f32.gmra.mxu0 %v2301
    %v2323 = vpop.f32.mrf.mxu0
    %v2324 = vadd.f32 0.0, %v2323
    %2325 = vmatmul.f32.gmra.mxu0 %v2304
    %v2326 = vpop.f32.mrf.mxu0
    %v2327 = vadd.f32 0.0, %v2326
    %2328 = vdwg.mxu0
    %2329 = vrot.lane.b32.xlu0 %v1812, 32
    %v2330 = vpop.permute.xlu0 %2329
    %v2333 = vsel %vm234, %v2234, 0
    %v2336 = vsel %vm234, %v2237, 0
    %2338 = vmatpush.msra.mxu0 0.0
    %2339 = vmatpush.msra.mxu0 0.0
    %2340 = vmatpush.msra.mxu0 0.0
    %2341 = vmatpush.msra.mxu0 0.0
    %2342 = vmatpush.msra.mxu0 0.0
    %2343 = vmatpush.msra.mxu0 0.0
    %2344 = vmatpush.msra.mxu0 0.0
    %2345 = vmatpush.msra.mxu0 0.0
    %2346 = vmatpush.msra.mxu0 0.0
    %2347 = vmatpush.msra.mxu0 0.0
    %2348 = vmatpush.msra.mxu0 0.0
    %2349 = vmatpush.msra.mxu0 0.0
    %2350 = vmatpush.msra.mxu0 0.0
    %2351 = vmatpush.msra.mxu0 0.0
    %2352 = vmatpush.msra.mxu0 0.0
    %2353 = vmatpush.msra.mxu0 %v2330
    %2354 = vmatmul.f32.gmra.mxu0 %v2333
    %v2355 = vpop.f32.mrf.mxu0
    %v2356 = vadd.f32 0.0, %v2355
    %2357 = vmatmul.f32.gmra.mxu0 %v2336
    %v2358 = vpop.f32.mrf.mxu0
    %v2359 = vadd.f32 0.0, %v2358
    %2360 = vdwg.mxu0
    %2361 = vrot.lane.b32.xlu0 %v1813, 32
    %v2362 = vpop.permute.xlu0 %2361
    %v2365 = vsel %vm234, %v2263, 0
    %v2368 = vsel %vm234, %v2266, 0
    %2370 = vmatpush.msra.mxu0 0.0
    %2371 = vmatpush.msra.mxu0 0.0
    %2372 = vmatpush.msra.mxu0 0.0
    %2373 = vmatpush.msra.mxu0 0.0
    %2374 = vmatpush.msra.mxu0 0.0
    %2375 = vmatpush.msra.mxu0 0.0
    %2376 = vmatpush.msra.mxu0 0.0
    %2377 = vmatpush.msra.mxu0 0.0
    %2378 = vmatpush.msra.mxu0 0.0
    %2379 = vmatpush.msra.mxu0 0.0
    %2380 = vmatpush.msra.mxu0 0.0
    %2381 = vmatpush.msra.mxu0 0.0
    %2382 = vmatpush.msra.mxu0 0.0
    %2383 = vmatpush.msra.mxu0 0.0
    %2384 = vmatpush.msra.mxu0 0.0
    %2385 = vmatpush.msra.mxu0 %v2362
    %2386 = vmatmul.f32.gmra.mxu0 %v2365
    %v2387 = vpop.f32.mrf.mxu0
    %v2388 = vadd.f32 0.0, %v2387
    %2389 = vmatmul.f32.gmra.mxu0 %v2368
    %v2390 = vpop.f32.mrf.mxu0
    %v2391 = vadd.f32 0.0, %v2390
    %2392 = vdwg.mxu0
    %2393 = vrot.lane.b32.xlu0 %v1814, 32
    %v2394 = vpop.permute.xlu0 %2393
    %v2397 = vsel %vm234, %v2292, 0
    %v2400 = vsel %vm234, %v2295, 0
    %2402 = vmatpush.msra.mxu0 0.0
    %2403 = vmatpush.msra.mxu0 0.0
    %2404 = vmatpush.msra.mxu0 0.0
    %2405 = vmatpush.msra.mxu0 0.0
    %2406 = vmatpush.msra.mxu0 0.0
    %2407 = vmatpush.msra.mxu0 0.0
    %2408 = vmatpush.msra.mxu0 0.0
    %2409 = vmatpush.msra.mxu0 0.0
    %2410 = vmatpush.msra.mxu0 0.0
    %2411 = vmatpush.msra.mxu0 0.0
    %2412 = vmatpush.msra.mxu0 0.0
    %2413 = vmatpush.msra.mxu0 0.0
    %2414 = vmatpush.msra.mxu0 0.0
    %2415 = vmatpush.msra.mxu0 0.0
    %2416 = vmatpush.msra.mxu0 0.0
    %2417 = vmatpush.msra.mxu0 %v2394
    %2418 = vmatmul.f32.gmra.mxu0 %v2397
    %v2419 = vpop.f32.mrf.mxu0
    %v2420 = vadd.f32 0.0, %v2419
    %2421 = vmatmul.f32.gmra.mxu0 %v2400
    %v2422 = vpop.f32.mrf.mxu0
    %v2423 = vadd.f32 0.0, %v2422
    %2424 = vdwg.mxu0
    %v2425 = vsel %vm118, %v2324, 0.0
    %v2426 = vsel %vm118, %v2356, 0.0
    %v2427 = vadd.f32 %v2425, %v2426
    %v2428 = vsel %vm118, %v2388, 0.0
    %v2429 = vadd.f32 %v2427, %v2428
    %v2430 = vsel %vm118, %v2420, 0.0
    %v2431 = vadd.f32 %v2429, %v2430
    %v2432 = vsel %vm118, %v2327, 0.0
    %v2433 = vsel %vm118, %v2359, 0.0
    %v2434 = vadd.f32 %v2432, %v2433
    %v2435 = vsel %vm118, %v2391, 0.0
    %v2436 = vadd.f32 %v2434, %v2435
    %v2437 = vsel %vm118, %v2423, 0.0
    %v2438 = vadd.f32 %v2436, %v2437
    %v2439 = vperm.slane %v1894, 0
    %v2440 = vadd.f32 %v2431, %v2439
    %v2441 = vadd.f32 %v2438, %v2439
    %v2442 = vadd.f32 %v1748, %v2440
    %v2443 = vadd.f32 %v1749, %v2441
    %v2444 = vld [vmem:[%s1815 + $0x3] sm:$0x1]
    %v2445 = vld [vmem:[%s1815 + $0x4] sm:$0x1]
    %v2446 = vsel %vm118, %v2442, 0.0
    %2447 = vadd.xlane.f32.xlu0 %v2446
    %v2448 = vpop.xlane.xlu0 %2447
    %v2449 = vsel %vm118, %v2443, 0.0
    %2450 = vadd.xlane.f32.xlu0 %v2449
    %v2451 = vpop.xlane.xlu0 %2450
    %v2452 = vmul.f32 %v2448, %v761
    %v2453 = vmul.f32 %v2451, %v761
    %v2454 = vsub.f32 %v2442, %v2452
    %v2455 = vsub.f32 %v2443, %v2453
    %v2456 = vmul.f32 %v2454, %v2454
    %v2457 = vmul.f32 %v2455, %v2455
    %v2458 = vsel %vm118, %v2456, 0.0
    %2459 = vadd.xlane.f32.xlu0 %v2458
    %v2460 = vpop.xlane.xlu0 %2459
    %v2461 = vsel %vm118, %v2457, 0.0
    %2462 = vadd.xlane.f32.xlu0 %v2461
    %v2463 = vpop.xlane.xlu0 %2462
    %v2464 = vmul.f32 %v2460, %v761
    %v2465 = vmul.f32 %v2463, %v761
    %v2466 = vadd.f32 %v2464, 1e-05
    %v2467 = vadd.f32 %v2465, 1e-05
    %v2468 = vrsqrt.pop %v2466
    %v2469 = vmul.f32 %v2468, %v2466
    %v2470 = vmul.f32 %v2469, %v2468
    %v2471 = vmul.f32 0.5, %v2470
    %v2472 = vsub.f32 1.5, %v2471
    %v2473 = vmul.f32 %v2468, %v2472
    %vm2474 = vweird.f32 %v2466
    %vm2475 = vweird.f32 %v2468
    %vm2476 = vmor %vm2474, %vm2475
    %v2477 = vsel %vm2476, %v2468, %v2473
    %v2478 = vrsqrt.pop %v2467
    %v2479 = vmul.f32 %v2478, %v2467
    %v2480 = vmul.f32 %v2479, %v2478
    %v2481 = vmul.f32 0.5, %v2480
    %v2482 = vsub.f32 1.5, %v2481
    %v2483 = vmul.f32 %v2478, %v2482
    %vm2484 = vweird.f32 %v2467
    %vm2485 = vweird.f32 %v2478
    %vm2486 = vmor %vm2484, %vm2485
    %v2487 = vsel %vm2486, %v2478, %v2483
    %v2488 = vmul.f32 %v2454, %v2477
    %v2489 = vmul.f32 %v2455, %v2487
    %v2490 = vperm.slane %v2444, 0
    %v2491 = vmul.f32 %v2488, %v2490
    %v2492 = vmul.f32 %v2489, %v2490
    %v2493 = vperm.slane %v2445, 0
    %v2494 = vadd.f32 %v2491, %v2493
    %v2495 = vadd.f32 %v2492, %v2493
    %v2496 = vadd.f32 %v2494, %v88
    %v2497 = vadd.f32 %v2495, %v89
    %v2498 = vld [vmem:[%s1810 + $0x8] sm:$0xff]
    %v2499 = vld [vmem:[%s1810 + $0x20] sm:$0xff]
    %v2500 = vld [vmem:[%s1810 + $0x38] sm:$0xff]
    %v2501 = vld [vmem:[%s1810 + $0x50] sm:$0xff]
    %v2502 = vld [vmem:[%s1815 + $0x5] sm:$0x1]
    %v2503 = vperm.slane %v2502, 0
    %v2505 = vsel %vm118, %v2496, 0
    %v2508 = vsel %vm118, %v2497, 0
    %2510 = vmatpush.msra.mxu0 0.0
    %2511 = vmatpush.msra.mxu0 0.0
    %2512 = vmatpush.msra.mxu0 0.0
    %2513 = vmatpush.msra.mxu0 0.0
    %2514 = vmatpush.msra.mxu0 0.0
    %2515 = vmatpush.msra.mxu0 0.0
    %2516 = vmatpush.msra.mxu0 0.0
    %2517 = vmatpush.msra.mxu0 0.0
    %2518 = vmatpush.msra.mxu0 0.0
    %2519 = vmatpush.msra.mxu0 0.0
    %2520 = vmatpush.msra.mxu0 0.0
    %2521 = vmatpush.msra.mxu0 0.0
    %2522 = vmatpush.msra.mxu0 %v2501
    %2523 = vmatpush.msra.mxu0 %v2500
    %2524 = vmatpush.msra.mxu0 %v2499
    %2525 = vmatpush.msra.mxu0 %v2498
    %2526 = vmatmul.f32.gmra.mxu0 %v2505
    %v2527 = vpop.f32.mrf.mxu0
    %v2528 = vadd.f32 %v2503, %v2527
    %2529 = vmatmul.f32.gmra.mxu0 %v2508
    %v2530 = vpop.f32.mrf.mxu0
    %v2531 = vadd.f32 %v2503, %v2530
    %2532 = vdwg.mxu0
    %v2533 = vld [vmem:[%s1815 + $0x6] sm:$0x1]
    %v2534 = vperm.slane %v2533, 0
    %2539 = vrot.lane.b32.xlu0 %v2498, 96
    %v2540 = vpop.permute.xlu0 %2539
    %2541 = vrot.lane.b32.xlu0 %v2499, 96
    %v2542 = vpop.permute.xlu0 %2541
    %2543 = vrot.lane.b32.xlu0 %v2500, 96
    %v2544 = vpop.permute.xlu0 %2543
    %2545 = vrot.lane.b32.xlu0 %v2501, 96
    %v2546 = vpop.permute.xlu0 %2545
    %2551 = vmatpush.msra.mxu0 0.0
    %2552 = vmatpush.msra.mxu0 0.0
    %2553 = vmatpush.msra.mxu0 0.0
    %2554 = vmatpush.msra.mxu0 0.0
    %2555 = vmatpush.msra.mxu0 0.0
    %2556 = vmatpush.msra.mxu0 0.0
    %2557 = vmatpush.msra.mxu0 0.0
    %2558 = vmatpush.msra.mxu0 0.0
    %2559 = vmatpush.msra.mxu0 0.0
    %2560 = vmatpush.msra.mxu0 0.0
    %2561 = vmatpush.msra.mxu0 0.0
    %2562 = vmatpush.msra.mxu0 0.0
    %2563 = vmatpush.msra.mxu0 %v2546
    %2564 = vmatpush.msra.mxu0 %v2544
    %2565 = vmatpush.msra.mxu0 %v2542
    %2566 = vmatpush.msra.mxu0 %v2540
    %2567 = vmatmul.f32.gmra.mxu0 %v862
    %v2568 = vpop.f32.mrf.mxu0
    %v2569 = vadd.f32 %v2534, %v2568
    %2570 = vmatmul.f32.gmra.mxu0 %v865
    %v2571 = vpop.f32.mrf.mxu0
    %v2572 = vadd.f32 %v2534, %v2571
    %2573 = vmatmul.f32.gmra.mxu0 %v868
    %v2574 = vpop.f32.mrf.mxu0
    %v2575 = vadd.f32 %v2534, %v2574
    %2576 = vmatmul.f32.gmra.mxu0 %v871
    %v2577 = vpop.f32.mrf.mxu0
    %v2578 = vadd.f32 %v2534, %v2577
    %2579 = vdwg.mxu0
    %v2580 = vld [vmem:[%s1815 + $0x7] sm:$0x1]
    %v2581 = vperm.slane %v2580, 0
    %2582 = vrot.lane.b32.xlu0 %v2498, 64
    %v2583 = vpop.permute.xlu0 %2582
    %2584 = vrot.lane.b32.xlu0 %v2499, 64
    %v2585 = vpop.permute.xlu0 %2584
    %2586 = vrot.lane.b32.xlu0 %v2500, 64
    %v2587 = vpop.permute.xlu0 %2586
    %2588 = vrot.lane.b32.xlu0 %v2501, 64
    %v2589 = vpop.permute.xlu0 %2588
    %2594 = vmatpush.msra.mxu0 0.0
    %2595 = vmatpush.msra.mxu0 0.0
    %2596 = vmatpush.msra.mxu0 0.0
    %2597 = vmatpush.msra.mxu0 0.0
    %2598 = vmatpush.msra.mxu0 0.0
    %2599 = vmatpush.msra.mxu0 0.0
    %2600 = vmatpush.msra.mxu0 0.0
    %2601 = vmatpush.msra.mxu0 0.0
    %2602 = vmatpush.msra.mxu0 0.0
    %2603 = vmatpush.msra.mxu0 0.0
    %2604 = vmatpush.msra.mxu0 0.0
    %2605 = vmatpush.msra.mxu0 0.0
    %2606 = vmatpush.msra.mxu0 %v2589
    %2607 = vmatpush.msra.mxu0 %v2587
    %2608 = vmatpush.msra.mxu0 %v2585
    %2609 = vmatpush.msra.mxu0 %v2583
    %2610 = vmatmul.f32.gmra.mxu0 %v917
    %v2611 = vpop.f32.mrf.mxu0
    %v2612 = vadd.f32 %v2581, %v2611
    %2613 = vmatmul.f32.gmra.mxu0 %v920
    %v2614 = vpop.f32.mrf.mxu0
    %v2615 = vadd.f32 %v2581, %v2614
    %2616 = vmatmul.f32.gmra.mxu0 %v923
    %v2617 = vpop.f32.mrf.mxu0
    %v2618 = vadd.f32 %v2581, %v2617
    %2619 = vmatmul.f32.gmra.mxu0 %v926
    %v2620 = vpop.f32.mrf.mxu0
    %v2621 = vadd.f32 %v2581, %v2620
    %2622 = vdwg.mxu0
    %v2623 = vld [vmem:[%s1815 + $0x8] sm:$0x1]
    %2626 = vrot.lane.b32.xlu0 %v2528, 120
    %v2627 = vpop.permute.xlu0 %2626
    %2628 = vrot.lane.b32.xlu0 %v2531, 120
    %v2629 = vpop.permute.xlu0 %2628
    %2630 = vrot.lane.b32.xlu0 %v2528, 112
    %v2631 = vpop.permute.xlu0 %2630
    %2632 = vrot.lane.b32.xlu0 %v2531, 112
    %v2633 = vpop.permute.xlu0 %2632
    %2634 = vrot.lane.b32.xlu0 %v2528, 104
    %v2635 = vpop.permute.xlu0 %2634
    %2636 = vrot.lane.b32.xlu0 %v2531, 104
    %v2637 = vpop.permute.xlu0 %2636
    %2642 = vrot.lane.b32.xlu0 %v2569, 120
    %v2643 = vpop.permute.xlu0 %2642
    %2644 = vrot.lane.b32.xlu0 %v2572, 120
    %v2645 = vpop.permute.xlu0 %2644
    %2646 = vrot.lane.b32.xlu0 %v2575, 120
    %v2647 = vpop.permute.xlu0 %2646
    %2648 = vrot.lane.b32.xlu0 %v2578, 120
    %v2649 = vpop.permute.xlu0 %2648
    %2650 = vrot.lane.b32.xlu0 %v2569, 112
    %v2651 = vpop.permute.xlu0 %2650
    %2652 = vrot.lane.b32.xlu0 %v2572, 112
    %v2653 = vpop.permute.xlu0 %2652
    %2654 = vrot.lane.b32.xlu0 %v2575, 112
    %v2655 = vpop.permute.xlu0 %2654
    %2656 = vrot.lane.b32.xlu0 %v2578, 112
    %v2657 = vpop.permute.xlu0 %2656
    %2658 = vrot.lane.b32.xlu0 %v2569, 104
    %v2659 = vpop.permute.xlu0 %2658
    %2660 = vrot.lane.b32.xlu0 %v2572, 104
    %v2661 = vpop.permute.xlu0 %2660
    %2662 = vrot.lane.b32.xlu0 %v2575, 104
    %v2663 = vpop.permute.xlu0 %2662
    %2664 = vrot.lane.b32.xlu0 %v2578, 104
    %v2665 = vpop.permute.xlu0 %2664
    %2670 = vrot.lane.b32.xlu0 %v2612, 120
    %v2671 = vpop.permute.xlu0 %2670
    %2672 = vrot.lane.b32.xlu0 %v2615, 120
    %v2673 = vpop.permute.xlu0 %2672
    %2674 = vrot.lane.b32.xlu0 %v2618, 120
    %v2675 = vpop.permute.xlu0 %2674
    %2676 = vrot.lane.b32.xlu0 %v2621, 120
    %v2677 = vpop.permute.xlu0 %2676
    %2682 = vrot.lane.b32.xlu0 %v2612, 112
    %v2683 = vpop.permute.xlu0 %2682
    %2684 = vrot.lane.b32.xlu0 %v2615, 112
    %v2685 = vpop.permute.xlu0 %2684
    %2686 = vrot.lane.b32.xlu0 %v2618, 112
    %v2687 = vpop.permute.xlu0 %2686
    %2688 = vrot.lane.b32.xlu0 %v2621, 112
    %v2689 = vpop.permute.xlu0 %2688
    %2694 = vrot.lane.b32.xlu0 %v2612, 104
    %v2695 = vpop.permute.xlu0 %2694
    %2696 = vrot.lane.b32.xlu0 %v2615, 104
    %v2697 = vpop.permute.xlu0 %2696
    %2698 = vrot.lane.b32.xlu0 %v2618, 104
    %v2699 = vpop.permute.xlu0 %2698
    %2700 = vrot.lane.b32.xlu0 %v2621, 104
    %v2701 = vpop.permute.xlu0 %2700
    %v2706 = vsel %vm234, %v2528, 0
    %v2708 = vsel %vm234, %v2531, 0
    %v2710 = vsel %vm234, %v2569, 0
    %v2712 = vsel %vm234, %v2572, 0
    %v2714 = vsel %vm234, %v2575, 0
    %v2716 = vsel %vm234, %v2578, 0
    %2718 = vmatpush.xpose.msra.mxu0 0.0
    %2719 = vmatpush.xpose.msra.mxu0 0.0
    %2720 = vmatpush.xpose.msra.mxu0 0.0
    %2721 = vmatpush.xpose.msra.mxu0 0.0
    %2722 = vmatpush.xpose.msra.mxu0 0.0
    %2723 = vmatpush.xpose.msra.mxu0 0.0
    %2724 = vmatpush.xpose.msra.mxu0 0.0
    %2725 = vmatpush.xpose.msra.mxu0 0.0
    %2726 = vmatpush.xpose.msra.mxu0 0.0
    %2727 = vmatpush.xpose.msra.mxu0 0.0
    %2728 = vmatpush.xpose.msra.mxu0 0.0
    %2729 = vmatpush.xpose.msra.mxu0 0.0
    %2730 = vmatpush.xpose.msra.mxu0 %v2716
    %2731 = vmatpush.xpose.msra.mxu0 %v2714
    %2732 = vmatpush.xpose.msra.mxu0 %v2712
    %2733 = vmatpush.xpose.msra.mxu0 %v2710
    %2734 = vmatmul.f32.gmra.mxu0 %v2706
    %v2735 = vpop.f32.mrf.mxu0
    %v2736 = vadd.f32 %v108, %v2735
    %2737 = vmatmul.f32.gmra.mxu0 %v2708
    %v2738 = vpop.f32.mrf.mxu0
    %v2739 = vadd.f32 %v109, %v2738
    %2740 = vdwg.mxu0
    %v2741 = vsel %vm234, %v2627, 0
    %v2743 = vsel %vm234, %v2629, 0
    %v2745 = vsel %vm234, %v2643, 0
    %v2747 = vsel %vm234, %v2645, 0
    %v2749 = vsel %vm234, %v2647, 0
    %v2751 = vsel %vm234, %v2649, 0
    %2753 = vmatpush.xpose.msra.mxu0 0.0
    %2754 = vmatpush.xpose.msra.mxu0 0.0
    %2755 = vmatpush.xpose.msra.mxu0 0.0
    %2756 = vmatpush.xpose.msra.mxu0 0.0
    %2757 = vmatpush.xpose.msra.mxu0 0.0
    %2758 = vmatpush.xpose.msra.mxu0 0.0
    %2759 = vmatpush.xpose.msra.mxu0 0.0
    %2760 = vmatpush.xpose.msra.mxu0 0.0
    %2761 = vmatpush.xpose.msra.mxu0 0.0
    %2762 = vmatpush.xpose.msra.mxu0 0.0
    %2763 = vmatpush.xpose.msra.mxu0 0.0
    %2764 = vmatpush.xpose.msra.mxu0 0.0
    %2765 = vmatpush.xpose.msra.mxu0 %v2751
    %2766 = vmatpush.xpose.msra.mxu0 %v2749
    %2767 = vmatpush.xpose.msra.mxu0 %v2747
    %2768 = vmatpush.xpose.msra.mxu0 %v2745
    %2769 = vmatmul.f32.gmra.mxu0 %v2741
    %v2770 = vpop.f32.mrf.mxu0
    %v2771 = vadd.f32 %v108, %v2770
    %2772 = vmatmul.f32.gmra.mxu0 %v2743
    %v2773 = vpop.f32.mrf.mxu0
    %v2774 = vadd.f32 %v109, %v2773
    %2775 = vdwg.mxu0
    %v2776 = vsel %vm234, %v2631, 0
    %v2778 = vsel %vm234, %v2633, 0
    %v2780 = vsel %vm234, %v2651, 0
    %v2782 = vsel %vm234, %v2653, 0
    %v2784 = vsel %vm234, %v2655, 0
    %v2786 = vsel %vm234, %v2657, 0
    %2788 = vmatpush.xpose.msra.mxu0 0.0
    %2789 = vmatpush.xpose.msra.mxu0 0.0
    %2790 = vmatpush.xpose.msra.mxu0 0.0
    %2791 = vmatpush.xpose.msra.mxu0 0.0
    %2792 = vmatpush.xpose.msra.mxu0 0.0
    %2793 = vmatpush.xpose.msra.mxu0 0.0
    %2794 = vmatpush.xpose.msra.mxu0 0.0
    %2795 = vmatpush.xpose.msra.mxu0 0.0
    %2796 = vmatpush.xpose.msra.mxu0 0.0
    %2797 = vmatpush.xpose.msra.mxu0 0.0
    %2798 = vmatpush.xpose.msra.mxu0 0.0
    %2799 = vmatpush.xpose.msra.mxu0 0.0
    %2800 = vmatpush.xpose.msra.mxu0 %v2786
    %2801 = vmatpush.xpose.msra.mxu0 %v2784
    %2802 = vmatpush.xpose.msra.mxu0 %v2782
    %2803 = vmatpush.xpose.msra.mxu0 %v2780
    %2804 = vmatmul.f32.gmra.mxu0 %v2776
    %v2805 = vpop.f32.mrf.mxu0
    %v2806 = vadd.f32 %v108, %v2805
    %2807 = vmatmul.f32.gmra.mxu0 %v2778
    %v2808 = vpop.f32.mrf.mxu0
    %v2809 = vadd.f32 %v109, %v2808
    %2810 = vdwg.mxu0
    %v2811 = vsel %vm234, %v2635, 0
    %v2813 = vsel %vm234, %v2637, 0
    %v2815 = vsel %vm234, %v2659, 0
    %v2817 = vsel %vm234, %v2661, 0
    %v2819 = vsel %vm234, %v2663, 0
    %v2821 = vsel %vm234, %v2665, 0
    %2823 = vmatpush.xpose.msra.mxu0 0.0
    %2824 = vmatpush.xpose.msra.mxu0 0.0
    %2825 = vmatpush.xpose.msra.mxu0 0.0
    %2826 = vmatpush.xpose.msra.mxu0 0.0
    %2827 = vmatpush.xpose.msra.mxu0 0.0
    %2828 = vmatpush.xpose.msra.mxu0 0.0
    %2829 = vmatpush.xpose.msra.mxu0 0.0
    %2830 = vmatpush.xpose.msra.mxu0 0.0
    %2831 = vmatpush.xpose.msra.mxu0 0.0
    %2832 = vmatpush.xpose.msra.mxu0 0.0
    %2833 = vmatpush.xpose.msra.mxu0 0.0
    %2834 = vmatpush.xpose.msra.mxu0 0.0
    %2835 = vmatpush.xpose.msra.mxu0 %v2821
    %2836 = vmatpush.xpose.msra.mxu0 %v2819
    %2837 = vmatpush.xpose.msra.mxu0 %v2817
    %2838 = vmatpush.xpose.msra.mxu0 %v2815
    %2839 = vmatmul.f32.gmra.mxu0 %v2811
    %v2840 = vpop.f32.mrf.mxu0
    %v2841 = vadd.f32 %v108, %v2840
    %2842 = vmatmul.f32.gmra.mxu0 %v2813
    %v2843 = vpop.f32.mrf.mxu0
    %v2844 = vadd.f32 %v109, %v2843
    %2845 = vdwg.mxu0
    %v2846 = vsel %vm118, %v2736, -inf
    %2847 = vmax.xlane.f32.xlu0 %v2846
    %v2848 = vpop.xlane.xlu0 %2847
    %v2849 = vsel %vm118, %v2739, -inf
    %2850 = vmax.xlane.f32.xlu0 %v2849
    %v2851 = vpop.xlane.xlu0 %2850
    %v2852 = vsel %vm118, %v2771, -inf
    %2853 = vmax.xlane.f32.xlu0 %v2852
    %v2854 = vpop.xlane.xlu0 %2853
    %v2855 = vsel %vm118, %v2774, -inf
    %2856 = vmax.xlane.f32.xlu0 %v2855
    %v2857 = vpop.xlane.xlu0 %2856
    %v2858 = vsel %vm118, %v2806, -inf
    %2859 = vmax.xlane.f32.xlu0 %v2858
    %v2860 = vpop.xlane.xlu0 %2859
    %v2861 = vsel %vm118, %v2809, -inf
    %2862 = vmax.xlane.f32.xlu0 %v2861
    %v2863 = vpop.xlane.xlu0 %2862
    %v2864 = vsel %vm118, %v2841, -inf
    %2865 = vmax.xlane.f32.xlu0 %v2864
    %v2866 = vpop.xlane.xlu0 %2865
    %v2867 = vsel %vm118, %v2844, -inf
    %2868 = vmax.xlane.f32.xlu0 %v2867
    %v2869 = vpop.xlane.xlu0 %2868
    %v2870 = vsub.f32 %v2736, %v2848
    %v2871 = vsub.f32 %v2739, %v2851
    %v2872 = vsub.f32 %v2771, %v2854
    %v2873 = vsub.f32 %v2774, %v2857
    %v2874 = vsub.f32 %v2806, %v2860
    %v2875 = vsub.f32 %v2809, %v2863
    %v2876 = vsub.f32 %v2841, %v2866
    %v2877 = vsub.f32 %v2844, %v2869
    %v2878 = vmul.f32 %v2870, 1.442695
    %v2879 = vpow.pop %v2878
    %v2880 = vmul.f32 %v2871, 1.442695
    %v2881 = vpow.pop %v2880
    %v2882 = vmul.f32 %v2872, 1.442695
    %v2883 = vpow.pop %v2882
    %v2884 = vmul.f32 %v2873, 1.442695
    %v2885 = vpow.pop %v2884
    %v2886 = vmul.f32 %v2874, 1.442695
    %v2887 = vpow.pop %v2886
    %v2888 = vmul.f32 %v2875, 1.442695
    %v2889 = vpow.pop %v2888
    %v2890 = vmul.f32 %v2876, 1.442695
    %v2891 = vpow.pop %v2890
    %v2892 = vmul.f32 %v2877, 1.442695
    %v2893 = vpow.pop %v2892
    %v2894 = vsel %vm118, %v2879, 0.0
    %2895 = vadd.xlane.f32.xlu0 %v2894
    %v2896 = vpop.xlane.xlu0 %2895
    %v2897 = vsel %vm118, %v2881, 0.0
    %2898 = vadd.xlane.f32.xlu0 %v2897
    %v2899 = vpop.xlane.xlu0 %2898
    %v2900 = vsel %vm118, %v2883, 0.0
    %2901 = vadd.xlane.f32.xlu0 %v2900
    %v2902 = vpop.xlane.xlu0 %2901
    %v2903 = vsel %vm118, %v2885, 0.0
    %2904 = vadd.xlane.f32.xlu0 %v2903
    %v2905 = vpop.xlane.xlu0 %2904
    %v2906 = vsel %vm118, %v2887, 0.0
    %2907 = vadd.xlane.f32.xlu0 %v2906
    %v2908 = vpop.xlane.xlu0 %2907
    %v2909 = vsel %vm118, %v2889, 0.0
    %2910 = vadd.xlane.f32.xlu0 %v2909
    %v2911 = vpop.xlane.xlu0 %2910
    %v2912 = vsel %vm118, %v2891, 0.0
    %2913 = vadd.xlane.f32.xlu0 %v2912
    %v2914 = vpop.xlane.xlu0 %2913
    %v2915 = vsel %vm118, %v2893, 0.0
    %2916 = vadd.xlane.f32.xlu0 %v2915
    %v2917 = vpop.xlane.xlu0 %2916
    %v2918 = vrcp.pop %v2896
    %v2919 = vrcp.pop %v2899
    %v2920 = vrcp.pop %v2902
    %v2921 = vrcp.pop %v2905
    %v2922 = vrcp.pop %v2908
    %v2923 = vrcp.pop %v2911
    %v2924 = vrcp.pop %v2914
    %v2925 = vrcp.pop %v2917
    %v2926 = vmul.f32 %v2896, %v2918
    %v2927 = vmul.f32 %v2899, %v2919
    %v2928 = vmul.f32 %v2902, %v2920
    %v2929 = vmul.f32 %v2905, %v2921
    %v2930 = vmul.f32 %v2908, %v2922
    %v2931 = vmul.f32 %v2911, %v2923
    %v2932 = vmul.f32 %v2914, %v2924
    %v2933 = vmul.f32 %v2917, %v2925
    %v2934 = vsub.f32 2.0, %v2926
    %v2935 = vsub.f32 2.0, %v2927
    %v2936 = vsub.f32 2.0, %v2928
    %v2937 = vsub.f32 2.0, %v2929
    %v2938 = vsub.f32 2.0, %v2930
    %v2939 = vsub.f32 2.0, %v2931
    %v2940 = vsub.f32 2.0, %v2932
    %v2941 = vsub.f32 2.0, %v2933
    %v2942 = vmul.f32 %v2918, %v2934
    %v2943 = vmul.f32 %v2919, %v2935
    %v2944 = vmul.f32 %v2920, %v2936
    %v2945 = vmul.f32 %v2921, %v2937
    %v2946 = vmul.f32 %v2922, %v2938
    %v2947 = vmul.f32 %v2923, %v2939
    %v2948 = vmul.f32 %v2924, %v2940
    %v2949 = vmul.f32 %v2925, %v2941
    %v2950 = vmul.f32 %v2879, %v2942
    %v2951 = vmul.f32 %v2881, %v2943
    %v2952 = vmul.f32 %v2883, %v2944
    %v2953 = vmul.f32 %v2885, %v2945
    %v2954 = vmul.f32 %v2887, %v2946
    %v2955 = vmul.f32 %v2889, %v2947
    %v2956 = vmul.f32 %v2891, %v2948
    %v2957 = vmul.f32 %v2893, %v2949
    %v2959 = vsel %vm118, %v2950, 0
    %v2962 = vsel %vm118, %v2951, 0
    %2964 = vmatpush.msra.mxu0 0.0
    %2965 = vmatpush.msra.mxu0 0.0
    %2966 = vmatpush.msra.mxu0 0.0
    %2967 = vmatpush.msra.mxu0 0.0
    %2968 = vmatpush.msra.mxu0 0.0
    %2969 = vmatpush.msra.mxu0 0.0
    %2970 = vmatpush.msra.mxu0 0.0
    %2971 = vmatpush.msra.mxu0 0.0
    %2972 = vmatpush.msra.mxu0 0.0
    %2973 = vmatpush.msra.mxu0 0.0
    %2974 = vmatpush.msra.mxu0 0.0
    %2975 = vmatpush.msra.mxu0 0.0
    %2976 = vmatpush.msra.mxu0 %v2621
    %2977 = vmatpush.msra.mxu0 %v2618
    %2978 = vmatpush.msra.mxu0 %v2615
    %2979 = vmatpush.msra.mxu0 %v2612
    %2980 = vmatmul.f32.gmra.mxu0 %v2959
    %v2981 = vpop.f32.mrf.mxu0
    %v2982 = vadd.f32 0.0, %v2981
    %2983 = vmatmul.f32.gmra.mxu0 %v2962
    %v2984 = vpop.f32.mrf.mxu0
    %v2985 = vadd.f32 0.0, %v2984
    %2986 = vdwg.mxu0
    %v2988 = vsel %vm118, %v2952, 0
    %v2991 = vsel %vm118, %v2953, 0
    %2993 = vmatpush.msra.mxu0 0.0
    %2994 = vmatpush.msra.mxu0 0.0
    %2995 = vmatpush.msra.mxu0 0.0
    %2996 = vmatpush.msra.mxu0 0.0
    %2997 = vmatpush.msra.mxu0 0.0
    %2998 = vmatpush.msra.mxu0 0.0
    %2999 = vmatpush.msra.mxu0 0.0
    %3000 = vmatpush.msra.mxu0 0.0
    %3001 = vmatpush.msra.mxu0 0.0
    %3002 = vmatpush.msra.mxu0 0.0
    %3003 = vmatpush.msra.mxu0 0.0
    %3004 = vmatpush.msra.mxu0 0.0
    %3005 = vmatpush.msra.mxu0 %v2677
    %3006 = vmatpush.msra.mxu0 %v2675
    %3007 = vmatpush.msra.mxu0 %v2673
    %3008 = vmatpush.msra.mxu0 %v2671
    %3009 = vmatmul.f32.gmra.mxu0 %v2988
    %v3010 = vpop.f32.mrf.mxu0
    %v3011 = vadd.f32 0.0, %v3010
    %3012 = vmatmul.f32.gmra.mxu0 %v2991
    %v3013 = vpop.f32.mrf.mxu0
    %v3014 = vadd.f32 0.0, %v3013
    %3015 = vdwg.mxu0
    %v3017 = vsel %vm118, %v2954, 0
    %v3020 = vsel %vm118, %v2955, 0
    %3022 = vmatpush.msra.mxu0 0.0
    %3023 = vmatpush.msra.mxu0 0.0
    %3024 = vmatpush.msra.mxu0 0.0
    %3025 = vmatpush.msra.mxu0 0.0
    %3026 = vmatpush.msra.mxu0 0.0
    %3027 = vmatpush.msra.mxu0 0.0
    %3028 = vmatpush.msra.mxu0 0.0
    %3029 = vmatpush.msra.mxu0 0.0
    %3030 = vmatpush.msra.mxu0 0.0
    %3031 = vmatpush.msra.mxu0 0.0
    %3032 = vmatpush.msra.mxu0 0.0
    %3033 = vmatpush.msra.mxu0 0.0
    %3034 = vmatpush.msra.mxu0 %v2689
    %3035 = vmatpush.msra.mxu0 %v2687
    %3036 = vmatpush.msra.mxu0 %v2685
    %3037 = vmatpush.msra.mxu0 %v2683
    %3038 = vmatmul.f32.gmra.mxu0 %v3017
    %v3039 = vpop.f32.mrf.mxu0
    %v3040 = vadd.f32 0.0, %v3039
    %3041 = vmatmul.f32.gmra.mxu0 %v3020
    %v3042 = vpop.f32.mrf.mxu0
    %v3043 = vadd.f32 0.0, %v3042
    %3044 = vdwg.mxu0
    %v3046 = vsel %vm118, %v2956, 0
    %v3049 = vsel %vm118, %v2957, 0
    %3051 = vmatpush.msra.mxu0 0.0
    %3052 = vmatpush.msra.mxu0 0.0
    %3053 = vmatpush.msra.mxu0 0.0
    %3054 = vmatpush.msra.mxu0 0.0
    %3055 = vmatpush.msra.mxu0 0.0
    %3056 = vmatpush.msra.mxu0 0.0
    %3057 = vmatpush.msra.mxu0 0.0
    %3058 = vmatpush.msra.mxu0 0.0
    %3059 = vmatpush.msra.mxu0 0.0
    %3060 = vmatpush.msra.mxu0 0.0
    %3061 = vmatpush.msra.mxu0 0.0
    %3062 = vmatpush.msra.mxu0 0.0
    %3063 = vmatpush.msra.mxu0 %v2701
    %3064 = vmatpush.msra.mxu0 %v2699
    %3065 = vmatpush.msra.mxu0 %v2697
    %3066 = vmatpush.msra.mxu0 %v2695
    %3067 = vmatmul.f32.gmra.mxu0 %v3046
    %v3068 = vpop.f32.mrf.mxu0
    %v3069 = vadd.f32 0.0, %v3068
    %3070 = vmatmul.f32.gmra.mxu0 %v3049
    %v3071 = vpop.f32.mrf.mxu0
    %v3072 = vadd.f32 0.0, %v3071
    %3073 = vdwg.mxu0
    %3074 = vrot.lane.b32.xlu0 %v2498, 32
    %v3075 = vpop.permute.xlu0 %3074
    %v3078 = vsel %vm234, %v2982, 0
    %v3081 = vsel %vm234, %v2985, 0
    %3083 = vmatpush.msra.mxu0 0.0
    %3084 = vmatpush.msra.mxu0 0.0
    %3085 = vmatpush.msra.mxu0 0.0
    %3086 = vmatpush.msra.mxu0 0.0
    %3087 = vmatpush.msra.mxu0 0.0
    %3088 = vmatpush.msra.mxu0 0.0
    %3089 = vmatpush.msra.mxu0 0.0
    %3090 = vmatpush.msra.mxu0 0.0
    %3091 = vmatpush.msra.mxu0 0.0
    %3092 = vmatpush.msra.mxu0 0.0
    %3093 = vmatpush.msra.mxu0 0.0
    %3094 = vmatpush.msra.mxu0 0.0
    %3095 = vmatpush.msra.mxu0 0.0
    %3096 = vmatpush.msra.mxu0 0.0
    %3097 = vmatpush.msra.mxu0 0.0
    %3098 = vmatpush.msra.mxu0 %v3075
    %3099 = vmatmul.f32.gmra.mxu0 %v3078
    %v3100 = vpop.f32.mrf.mxu0
    %v3101 = vadd.f32 0.0, %v3100
    %3102 = vmatmul.f32.gmra.mxu0 %v3081
    %v3103 = vpop.f32.mrf.mxu0
    %v3104 = vadd.f32 0.0, %v3103
    %3105 = vdwg.mxu0
    %3106 = vrot.lane.b32.xlu0 %v2499, 32
    %v3107 = vpop.permute.xlu0 %3106
    %v3110 = vsel %vm234, %v3011, 0
    %v3113 = vsel %vm234, %v3014, 0
    %3115 = vmatpush.msra.mxu0 0.0
    %3116 = vmatpush.msra.mxu0 0.0
    %3117 = vmatpush.msra.mxu0 0.0
    %3118 = vmatpush.msra.mxu0 0.0
    %3119 = vmatpush.msra.mxu0 0.0
    %3120 = vmatpush.msra.mxu0 0.0
    %3121 = vmatpush.msra.mxu0 0.0
    %3122 = vmatpush.msra.mxu0 0.0
    %3123 = vmatpush.msra.mxu0 0.0
    %3124 = vmatpush.msra.mxu0 0.0
    %3125 = vmatpush.msra.mxu0 0.0
    %3126 = vmatpush.msra.mxu0 0.0
    %3127 = vmatpush.msra.mxu0 0.0
    %3128 = vmatpush.msra.mxu0 0.0
    %3129 = vmatpush.msra.mxu0 0.0
    %3130 = vmatpush.msra.mxu0 %v3107
    %3131 = vmatmul.f32.gmra.mxu0 %v3110
    %v3132 = vpop.f32.mrf.mxu0
    %v3133 = vadd.f32 0.0, %v3132
    %3134 = vmatmul.f32.gmra.mxu0 %v3113
    %v3135 = vpop.f32.mrf.mxu0
    %v3136 = vadd.f32 0.0, %v3135
    %3137 = vdwg.mxu0
    %3138 = vrot.lane.b32.xlu0 %v2500, 32
    %v3139 = vpop.permute.xlu0 %3138
    %v3142 = vsel %vm234, %v3040, 0
    %v3145 = vsel %vm234, %v3043, 0
    %3147 = vmatpush.msra.mxu0 0.0
    %3148 = vmatpush.msra.mxu0 0.0
    %3149 = vmatpush.msra.mxu0 0.0
    %3150 = vmatpush.msra.mxu0 0.0
    %3151 = vmatpush.msra.mxu0 0.0
    %3152 = vmatpush.msra.mxu0 0.0
    %3153 = vmatpush.msra.mxu0 0.0
    %3154 = vmatpush.msra.mxu0 0.0
    %3155 = vmatpush.msra.mxu0 0.0
    %3156 = vmatpush.msra.mxu0 0.0
    %3157 = vmatpush.msra.mxu0 0.0
    %3158 = vmatpush.msra.mxu0 0.0
    %3159 = vmatpush.msra.mxu0 0.0
    %3160 = vmatpush.msra.mxu0 0.0
    %3161 = vmatpush.msra.mxu0 0.0
    %3162 = vmatpush.msra.mxu0 %v3139
    %3163 = vmatmul.f32.gmra.mxu0 %v3142
    %v3164 = vpop.f32.mrf.mxu0
    %v3165 = vadd.f32 0.0, %v3164
    %3166 = vmatmul.f32.gmra.mxu0 %v3145
    %v3167 = vpop.f32.mrf.mxu0
    %v3168 = vadd.f32 0.0, %v3167
    %3169 = vdwg.mxu0
    %3170 = vrot.lane.b32.xlu0 %v2501, 32
    %v3171 = vpop.permute.xlu0 %3170
    %v3174 = vsel %vm234, %v3069, 0
    %v3177 = vsel %vm234, %v3072, 0
    %3179 = vmatpush.msra.mxu0 0.0
    %3180 = vmatpush.msra.mxu0 0.0
    %3181 = vmatpush.msra.mxu0 0.0
    %3182 = vmatpush.msra.mxu0 0.0
    %3183 = vmatpush.msra.mxu0 0.0
    %3184 = vmatpush.msra.mxu0 0.0
    %3185 = vmatpush.msra.mxu0 0.0
    %3186 = vmatpush.msra.mxu0 0.0
    %3187 = vmatpush.msra.mxu0 0.0
    %3188 = vmatpush.msra.mxu0 0.0
    %3189 = vmatpush.msra.mxu0 0.0
    %3190 = vmatpush.msra.mxu0 0.0
    %3191 = vmatpush.msra.mxu0 0.0
    %3192 = vmatpush.msra.mxu0 0.0
    %3193 = vmatpush.msra.mxu0 0.0
    %3194 = vmatpush.msra.mxu0 %v3171
    %3195 = vmatmul.f32.gmra.mxu0 %v3174
    %v3196 = vpop.f32.mrf.mxu0
    %v3197 = vadd.f32 0.0, %v3196
    %3198 = vmatmul.f32.gmra.mxu0 %v3177
    %v3199 = vpop.f32.mrf.mxu0
    %v3200 = vadd.f32 0.0, %v3199
    %3201 = vdwg.mxu0
    %v3202 = vsel %vm118, %v3101, 0.0
    %v3203 = vsel %vm118, %v3133, 0.0
    %v3204 = vadd.f32 %v3202, %v3203
    %v3205 = vsel %vm118, %v3165, 0.0
    %v3206 = vadd.f32 %v3204, %v3205
    %v3207 = vsel %vm118, %v3197, 0.0
    %v3208 = vadd.f32 %v3206, %v3207
    %v3209 = vsel %vm118, %v3104, 0.0
    %v3210 = vsel %vm118, %v3136, 0.0
    %v3211 = vadd.f32 %v3209, %v3210
    %v3212 = vsel %vm118, %v3168, 0.0
    %v3213 = vadd.f32 %v3211, %v3212
    %v3214 = vsel %vm118, %v3200, 0.0
    %v3215 = vadd.f32 %v3213, %v3214
    %v3216 = vperm.slane %v2623, 0
    %v3217 = vadd.f32 %v3208, %v3216
    %v3218 = vadd.f32 %v3215, %v3216
    %v3219 = vadd.f32 %v2494, %v3217
    %v3220 = vadd.f32 %v2495, %v3218
    %v3221 = vld [vmem:[%s1815 + $0x9] sm:$0x1]
    %v3222 = vld [vmem:[%s1815 + $0xa] sm:$0x1]
    %v3223 = vsel %vm118, %v3219, 0.0
    %3224 = vadd.xlane.f32.xlu0 %v3223
    %v3225 = vpop.xlane.xlu0 %3224
    %v3226 = vsel %vm118, %v3220, 0.0
    %3227 = vadd.xlane.f32.xlu0 %v3226
    %v3228 = vpop.xlane.xlu0 %3227
    %v3229 = vmul.f32 %v3225, %v761
    %v3230 = vmul.f32 %v3228, %v761
    %v3231 = vsub.f32 %v3219, %v3229
    %v3232 = vsub.f32 %v3220, %v3230
    %v3233 = vmul.f32 %v3231, %v3231
    %v3234 = vmul.f32 %v3232, %v3232
    %v3235 = vsel %vm118, %v3233, 0.0
    %3236 = vadd.xlane.f32.xlu0 %v3235
    %v3237 = vpop.xlane.xlu0 %3236
    %v3238 = vsel %vm118, %v3234, 0.0
    %3239 = vadd.xlane.f32.xlu0 %v3238
    %v3240 = vpop.xlane.xlu0 %3239
    %v3241 = vmul.f32 %v3237, %v761
    %v3242 = vmul.f32 %v3240, %v761
    %v3243 = vadd.f32 %v3241, 1e-05
    %v3244 = vadd.f32 %v3242, 1e-05
    %v3245 = vrsqrt.pop %v3243
    %v3246 = vmul.f32 %v3245, %v3243
    %v3247 = vmul.f32 %v3246, %v3245
    %v3248 = vmul.f32 0.5, %v3247
    %v3249 = vsub.f32 1.5, %v3248
    %v3250 = vmul.f32 %v3245, %v3249
    %vm3251 = vweird.f32 %v3243
    %vm3252 = vweird.f32 %v3245
    %vm3253 = vmor %vm3251, %vm3252
    %v3254 = vsel %vm3253, %v3245, %v3250
    %v3255 = vrsqrt.pop %v3244
    %v3256 = vmul.f32 %v3255, %v3244
    %v3257 = vmul.f32 %v3256, %v3255
    %v3258 = vmul.f32 0.5, %v3257
    %v3259 = vsub.f32 1.5, %v3258
    %v3260 = vmul.f32 %v3255, %v3259
    %vm3261 = vweird.f32 %v3244
    %vm3262 = vweird.f32 %v3255
    %vm3263 = vmor %vm3261, %vm3262
    %v3264 = vsel %vm3263, %v3255, %v3260
    %v3265 = vmul.f32 %v3231, %v3254
    %v3266 = vmul.f32 %v3232, %v3264
    %v3267 = vperm.slane %v3221, 0
    %v3268 = vmul.f32 %v3265, %v3267
    %v3269 = vmul.f32 %v3266, %v3267
    %v3270 = vperm.slane %v3222, 0
    %v3271 = vadd.f32 %v3268, %v3270
    %v3272 = vadd.f32 %v3269, %v3270
    %v3273 = vld [vmem:[%s1810 + $0x10] sm:$0xff]
    %v3274 = vld [vmem:[%s1810 + $0x28] sm:$0xff]
    %v3275 = vld [vmem:[%s1810 + $0x40] sm:$0xff]
    %v3276 = vld [vmem:[%s1810 + $0x58] sm:$0xff]
    %v3277 = vld [vmem:[%s1815 + $0xb] sm:$0x1]
    %v3278 = vperm.slane %v3277, 0
    %v3280 = vsel %vm118, %v3271, 0
    %v3283 = vsel %vm118, %v3272, 0
    %3285 = vmatpush.msra.mxu0 0.0
    %3286 = vmatpush.msra.mxu0 0.0
    %3287 = vmatpush.msra.mxu0 0.0
    %3288 = vmatpush.msra.mxu0 0.0
    %3289 = vmatpush.msra.mxu0 0.0
    %3290 = vmatpush.msra.mxu0 0.0
    %3291 = vmatpush.msra.mxu0 0.0
    %3292 = vmatpush.msra.mxu0 0.0
    %3293 = vmatpush.msra.mxu0 0.0
    %3294 = vmatpush.msra.mxu0 0.0
    %3295 = vmatpush.msra.mxu0 0.0
    %3296 = vmatpush.msra.mxu0 0.0
    %3297 = vmatpush.msra.mxu0 %v3276
    %3298 = vmatpush.msra.mxu0 %v3275
    %3299 = vmatpush.msra.mxu0 %v3274
    %3300 = vmatpush.msra.mxu0 %v3273
    %3301 = vmatmul.f32.gmra.mxu0 %v3280
    %v3302 = vpop.f32.mrf.mxu0
    %v3303 = vadd.f32 %v3278, %v3302
    %3304 = vmatmul.f32.gmra.mxu0 %v3283
    %v3305 = vpop.f32.mrf.mxu0
    %v3306 = vadd.f32 %v3278, %v3305
    %3307 = vdwg.mxu0
    %v3308 = vmax.f32 %v3303, 0.0
    %v3309 = vmax.f32 %v3306, 0.0
    %v3310 = vld [vmem:[%s1815 + $0xc] sm:$0x1]
    %v3311 = vperm.slane %v3310, 0
    %3316 = vrot.lane.b32.xlu0 %v3273, 64
    %v3317 = vpop.permute.xlu0 %3316
    %3318 = vrot.lane.b32.xlu0 %v3274, 64
    %v3319 = vpop.permute.xlu0 %3318
    %3320 = vrot.lane.b32.xlu0 %v3275, 64
    %v3321 = vpop.permute.xlu0 %3320
    %3322 = vrot.lane.b32.xlu0 %v3276, 64
    %v3323 = vpop.permute.xlu0 %3322
    %v3325 = vsel %vm1658, %v3308, 0
    %v3328 = vsel %vm1658, %v3309, 0
    %v3330 = vsel %vm1658, %v3317, 0
    %v3332 = vsel %vm1658, %v3319, 0
    %v3334 = vsel %vm1658, %v3321, 0
    %v3336 = vsel %vm1658, %v3323, 0
    %3338 = vmatpush.xpose.msra.mxu0 0.0
    %3339 = vmatpush.xpose.msra.mxu0 0.0
    %3340 = vmatpush.xpose.msra.mxu0 0.0
    %3341 = vmatpush.xpose.msra.mxu0 0.0
    %3342 = vmatpush.xpose.msra.mxu0 0.0
    %3343 = vmatpush.xpose.msra.mxu0 0.0
    %3344 = vmatpush.xpose.msra.mxu0 0.0
    %3345 = vmatpush.xpose.msra.mxu0 0.0
    %3346 = vmatpush.xpose.msra.mxu0 0.0
    %3347 = vmatpush.xpose.msra.mxu0 0.0
    %3348 = vmatpush.xpose.msra.mxu0 0.0
    %3349 = vmatpush.xpose.msra.mxu0 0.0
    %3350 = vmatpush.xpose.msra.mxu0 %v3336
    %3351 = vmatpush.xpose.msra.mxu0 %v3334
    %3352 = vmatpush.xpose.msra.mxu0 %v3332
    %3353 = vmatpush.xpose.msra.mxu0 %v3330
    %3354 = vmatmul.f32.gmra.mxu0 %v3325
    %v3355 = vpop.f32.mrf.mxu0
    %v3356 = vadd.f32 %v3311, %v3355
    %3357 = vmatmul.f32.gmra.mxu0 %v3328
    %v3358 = vpop.f32.mrf.mxu0
    %v3359 = vadd.f32 %v3311, %v3358
    %3360 = vdwg.mxu0
    %v3361 = vadd.f32 %v3271, %v3356
    %v3362 = vadd.f32 %v3272, %v3359
    %v3363 = vld [vmem:[%s1815 + $0xd] sm:$0x1]
    %v3364 = vld [vmem:[%s1815 + $0xe] sm:$0x1]
    %v3365 = vsel %vm118, %v3361, 0.0
    %3366 = vadd.xlane.f32.xlu0 %v3365
    %v3367 = vpop.xlane.xlu0 %3366
    %v3368 = vsel %vm118, %v3362, 0.0
    %3369 = vadd.xlane.f32.xlu0 %v3368
    %v3370 = vpop.xlane.xlu0 %3369
    %v3371 = vmul.f32 %v3367, %v761
    %v3372 = vmul.f32 %v3370, %v761
    %v3373 = vsub.f32 %v3361, %v3371
    %v3374 = vsub.f32 %v3362, %v3372
    %v3375 = vmul.f32 %v3373, %v3373
    %v3376 = vmul.f32 %v3374, %v3374
    %v3377 = vsel %vm118, %v3375, 0.0
    %3378 = vadd.xlane.f32.xlu0 %v3377
    %v3379 = vpop.xlane.xlu0 %3378
    %v3380 = vsel %vm118, %v3376, 0.0
    %3381 = vadd.xlane.f32.xlu0 %v3380
    %v3382 = vpop.xlane.xlu0 %3381
    %v3383 = vmul.f32 %v3379, %v761
    %v3384 = vmul.f32 %v3382, %v761
    %v3385 = vadd.f32 %v3383, 1e-05
    %v3386 = vadd.f32 %v3384, 1e-05
    %v3387 = vrsqrt.pop %v3385
    %v3388 = vmul.f32 %v3387, %v3385
    %v3389 = vmul.f32 %v3388, %v3387
    %v3390 = vmul.f32 0.5, %v3389
    %v3391 = vsub.f32 1.5, %v3390
    %v3392 = vmul.f32 %v3387, %v3391
    %vm3393 = vweird.f32 %v3385
    %vm3394 = vweird.f32 %v3387
    %vm3395 = vmor %vm3393, %vm3394
    %v3396 = vsel %vm3395, %v3387, %v3392
    %v3397 = vrsqrt.pop %v3386
    %v3398 = vmul.f32 %v3397, %v3386
    %v3399 = vmul.f32 %v3398, %v3397
    %v3400 = vmul.f32 0.5, %v3399
    %v3401 = vsub.f32 1.5, %v3400
    %v3402 = vmul.f32 %v3397, %v3401
    %vm3403 = vweird.f32 %v3386
    %vm3404 = vweird.f32 %v3397
    %vm3405 = vmor %vm3403, %vm3404
    %v3406 = vsel %vm3405, %v3397, %v3402
    %v3407 = vmul.f32 %v3373, %v3396
    %v3408 = vmul.f32 %v3374, %v3406
    %v3409 = vperm.slane %v3363, 0
    %v3410 = vmul.f32 %v3407, %v3409
    %v3411 = vmul.f32 %v3408, %v3409
    %v3412 = vperm.slane %v3364, 0
    %v3413 = vadd.f32 %v3410, %v3412
    %v3414 = vadd.f32 %v3411, %v3412
    %v3415 = vld [vmem:[%s9] sm:$0x1]
    %v3416 = vld [vmem:[%s10] sm:$0x1]
    %v3417 = vsel %vm118, %v3413, 0.0
    %3418 = vadd.xlane.f32.xlu0 %v3417
    %v3419 = vpop.xlane.xlu0 %3418
    %v3420 = vsel %vm118, %v3414, 0.0
    %3421 = vadd.xlane.f32.xlu0 %v3420
    %v3422 = vpop.xlane.xlu0 %3421
    %v3423 = vmul.f32 %v3419, %v761
    %v3424 = vmul.f32 %v3422, %v761
    %v3425 = vsub.f32 %v3413, %v3423
    %v3426 = vsub.f32 %v3414, %v3424
    %v3427 = vmul.f32 %v3425, %v3425
    %v3428 = vmul.f32 %v3426, %v3426
    %v3429 = vsel %vm118, %v3427, 0.0
    %3430 = vadd.xlane.f32.xlu0 %v3429
    %v3431 = vpop.xlane.xlu0 %3430
    %v3432 = vsel %vm118, %v3428, 0.0
    %3433 = vadd.xlane.f32.xlu0 %v3432
    %v3434 = vpop.xlane.xlu0 %3433
    %v3435 = vmul.f32 %v3431, %v761
    %v3436 = vmul.f32 %v3434, %v761
    %v3437 = vadd.f32 %v3435, 1e-05
    %v3438 = vadd.f32 %v3436, 1e-05
    %v3439 = vrsqrt.pop %v3437
    %v3440 = vmul.f32 %v3439, %v3437
    %v3441 = vmul.f32 %v3440, %v3439
    %v3442 = vmul.f32 0.5, %v3441
    %v3443 = vsub.f32 1.5, %v3442
    %v3444 = vmul.f32 %v3439, %v3443
    %vm3445 = vweird.f32 %v3437
    %vm3446 = vweird.f32 %v3439
    %vm3447 = vmor %vm3445, %vm3446
    %v3448 = vsel %vm3447, %v3439, %v3444
    %v3449 = vrsqrt.pop %v3438
    %v3450 = vmul.f32 %v3449, %v3438
    %v3451 = vmul.f32 %v3450, %v3449
    %v3452 = vmul.f32 0.5, %v3451
    %v3453 = vsub.f32 1.5, %v3452
    %v3454 = vmul.f32 %v3449, %v3453
    %vm3455 = vweird.f32 %v3438
    %vm3456 = vweird.f32 %v3449
    %vm3457 = vmor %vm3455, %vm3456
    %v3458 = vsel %vm3457, %v3449, %v3454
    %v3459 = vmul.f32 %v3425, %v3448
    %v3460 = vmul.f32 %v3426, %v3458
    %v3462 = vperm.slane %v3415, 0
    %v3464 = vmul.f32 %v3459, %v3462
    %v3465 = vmul.f32 %v3460, %v3462
    %v3467 = vperm.slane %v3416, 0
    %v3469 = vadd.f32 %v3464, %v3467
    %v3470 = vadd.f32 %v3465, %v3467
    %s3471 = scalar_lea.vmem [#allocation8], 16
    %3472 = vst.msk [vmem:[%s3471] sm:$0xff] %vm118, %v3469
    %3473 = vst.msk [vmem:[%s3471 + $0x8] sm:$0xff] %vm118, %v3470
    // Predicated region
    $region58: #{detr_decoder_forward.1} parent=1 // pred_check
      _
    $region59: #{detr_decoder_forward.1} parent=1 // pred_check_branch
      %3475 = sbr.rel (0) target = $region61
    $region60: #{detr_decoder_forward.1} parent=1 // pred_region
      %3477 = vsyncadd [#allocation4], 0
      %s3478 = sshll.u32 [#allocation8], 4
      %s3479 = int_to_ptr.vmem [resolvable:$true] %s3478
      %s3480 = sshll.u32 %s11, 4
      %s3481 = int_to_ptr.hbm [resolvable:$true] %s3480
      %3486 = dma.vmem_to_hbm [thread:$0]  %s3479, 512, %s3481, [#allocation4], 128, 128, 8
    $region61: #{detr_decoder_forward.1} parent=1 // pred_fallthru
      _
    // Predicated region
    $region62: #{detr_decoder_forward.1} parent=1 // pred_check
      _
    $region63: #{detr_decoder_forward.1} parent=1 // pred_check_branch
      %3488 = sbr.rel (0) target = $region65
    $region64: #{detr_decoder_forward.1} parent=1 // pred_region
      %3490 = dma.done [#allocation4], 512
    $region65: #{detr_decoder_forward.1} parent=1 // pred_fallthru
      _
    %3491 = vsyncpa [#allocation3], 1
    %3492 = vsyncpa [#allocation6], 1
    %3493 = vsyncpa [#allocation4], 1

</llo_original>
